<compile_context>
chip_gen: v6e
topology: v6e:2x2x1
jax: 0.10.0
libtpu: 0.0.40
codegen_flags: <defaults>
</compile_context>

<pallas_src>
import functools

import jax
import jax.numpy as jnp
from jax.experimental import pallas as pl
from jax.experimental.pallas import tpu as pltpu


# ----------------------------------------------------------------------------
# Pallas kernel: one grid step == one block of Tb timesteps.
# ----------------------------------------------------------------------------
def _vgae_block_kernel(adj_ref, xw_ref, b1_ref, wcat_ref, bcat_ref,
                       ms_ref, *, tb, z_dim, n_nodes):
    tz = 2 * z_dim
    xw = xw_ref[...]        # (N, h_dim)   bf16  (precomputed X @ W1)
    wcat = wcat_ref[...]    # (h_dim, 2z)  bf16  ([Wm | Wls])
    b1 = b1_ref[...]        # (1, h_dim)   f32
    bcat = bcat_ref[...]    # (1, 2z)      f32   ([bm | bls])

    # --- GCN layer 1 for the whole block in ONE MXU call ---------------------
    # adj_ref is the flattened (tb*N, N) slice for this block of timesteps.
    h_all = jnp.dot(adj_ref[...], xw,
                    preferred_element_type=jnp.float32) + b1        # (tb*N, h) f32
    h_all = jnp.maximum(h_all, 0.0).astype(jnp.bfloat16)            # (tb*N, h) bf16

    # --- fused mean/logstd linear, batched over all tb*N rows ----------------
    hc_all = jnp.dot(h_all, wcat,
                     preferred_element_type=jnp.float32)            # (tb*N, 2z) f32

    # --- second propagation (block-diagonal in t), lane-packed output --------
    for t in range(tb):                                   # static unrolled loop
        r0 = t * n_nodes
        adj_t = adj_ref[pl.ds(r0, n_nodes), :]            # (N, N)  bf16, static slice
        hc_t = hc_all[r0:r0 + n_nodes, :].astype(jnp.bfloat16)      # (N, 2z)
        ms_t = jnp.dot(adj_t, hc_t,
                       preferred_element_type=jnp.float32) + bcat   # (N, 2z) f32
        ms_ref[:, pl.ds(t * tz, tz)] = ms_t               # columns [t*2z, (t+1)*2z)


def _choose_tb(T, two_z, n_nodes, max_block_bytes=8 << 20):
    """Pick timesteps-per-block: divisor of T, nblk >= 2 (megacore), block fits a
    VMEM budget, preferring lane-dense (tb*2z % 128 == 0) and larger tb."""
    best, best_key = 1, None
    for tb in range(1, T + 1):
        if T % tb:
            continue
        nblk = T // tb
        if T >= 2 and nblk < 2:      # keep >= 2 blocks so both v7x TCs get work
            continue
        blk = 2 * (tb * n_nodes * n_nodes * 2 + n_nodes * tb * two_z * 4)
        if blk > max_block_bytes:
            continue
        lanes = tb * two_z
        key = (lanes % 128 == 0, min(lanes, 512), tb)
        if best_key is None or key > best_key:
            best, best_key = tb, key
    return best


def vgae_forward(adj, xs, w1, b1, wm, bm, wls, bls, *, tb=None):
    """VGAE forward. Returns (mean (T,N,z), logstd (T,N,z), kld scalar)."""
    T, N, _ = adj.shape
    h_dim = w1.shape[1]
    z_dim = wm.shape[1]
    tz = 2 * z_dim

    if tb is None:
        tb = _choose_tb(T, tz, N)
    assert T % tb == 0, "tb must divide T"
    nblk = T // tb

    # t-invariant projection hoisted out of the kernel (f32, then bf16 at MXU).
    xw = (xs.astype(jnp.float32) @ w1.astype(jnp.float32)).astype(jnp.bfloat16)

    # Fused mean/logstd head parameters.
    wcat = jnp.concatenate([wm, wls], axis=1).astype(jnp.bfloat16)        # (h, 2z)
    bcat = jnp.concatenate([bm, bls], axis=0).reshape(1, tz).astype(jnp.float32)
    b1_2d = b1.reshape(1, h_dim).astype(jnp.float32)

    # adj normalized in f32 (gcn_norm_dense), stored/streamed as flat bf16 (T*N, N).
    adj_2d = adj.astype(jnp.bfloat16).reshape(T * N, N)

    kernel = functools.partial(_vgae_block_kernel, tb=tb, z_dim=z_dim, n_nodes=N)

    # VMEM budget: double-buffered adj + output blocks, resident params, f32
    # intermediates, ~25% headroom.
    blk_bytes = 2 * (tb * N * N * 2) + 2 * (N * tb * tz * 4)
    resid_bytes = N * h_dim * 2 + h_dim * tz * 2 + (h_dim + tz) * 4
    interm_bytes = 2 * tb * N * (h_dim + tz) * 4
    vmem_limit = int((blk_bytes + resid_bytes + interm_bytes) * 1.25) + (4 << 20)
    vmem_limit = min(max(vmem_limit, 16 << 20), 100 << 20)

    grid_spec = pltpu.PrefetchScalarGridSpec(
        num_scalar_prefetch=0,
        grid=(nblk,),
        in_specs=[
            pl.BlockSpec((tb * N, N), lambda b: (b, 0)),            # adj block (2-D)
            pl.BlockSpec((N, h_dim), lambda b: (0, 0)),             # xw = X W1
            pl.BlockSpec((1, h_dim), lambda b: (0, 0)),             # b1
            pl.BlockSpec((h_dim, tz), lambda b: (0, 0)),            # [Wm|Wls]
            pl.BlockSpec((1, tz), lambda b: (0, 0)),                # [bm|bls]
        ],
        out_specs=pl.BlockSpec((N, tb * tz), lambda b: (0, b)),     # lane-packed out
    )

    ms_packed = pl.pallas_call(
        kernel,
        out_shape=jax.ShapeDtypeStruct((N, T * tz), jnp.float32),
        grid_spec=grid_spec,
        compiler_params=pltpu.CompilerParams(
            dimension_semantics=("parallel",),     # timestep blocks are independent
            vmem_limit_bytes=vmem_limit),
    )(adj_2d, xw, b1_2d, wcat, bcat)

    # (N, T*2z) -> (T, N, 2z); column block g holds [mean_g | logstd_g].
    ms = jnp.transpose(ms_packed.reshape(N, T, tz), (1, 0, 2))
    mean = ms[:, :, :z_dim]
    logstd = ms[:, :, z_dim:]

    # self.kld = stack(kld).mean(), computed from the returned f32 mean/logstd.
    kld_t = -0.5 * jnp.mean(
        jnp.sum(1.0 + 2.0 * logstd - mean ** 2 - jnp.exp(logstd) ** 2, axis=-1),
        axis=-1)
    kld = jnp.mean(kld_t)
    return mean, logstd, kld


# ----------------------------------------------------------------------------
# Glue: build the gcn_norm'd dense adjacency from edge lists (plain JAX, f32).
# ----------------------------------------------------------------------------
def gcn_norm_dense(src, dst, ew, n_nodes):
    """Dense A_hat such that (A_hat @ X)[i] = sum_j norm_{j->i} X[j],
    matching PyG gcn_norm with add_self_loops=True, fill_value=1."""
    loops = jnp.arange(n_nodes, dtype=src.dtype)
    src_sl = jnp.concatenate([src, loops])
    dst_sl = jnp.concatenate([dst, loops])
    w_sl = jnp.concatenate([ew, jnp.ones((n_nodes,), jnp.float32)])

    deg = jnp.zeros((n_nodes,), jnp.float32).at[dst_sl].add(w_sl)
    dinv = jnp.where(deg > 0, 1.0 / jnp.sqrt(deg), 0.0)
    norm = dinv[src_sl] * w_sl * dinv[dst_sl]

    a = jnp.zeros((n_nodes, n_nodes), jnp.float32)
    a = a.at[dst_sl, src_sl].add(norm)   # row = target, col = source
    return a


def reference_forward(adj, xs, w1, b1, wm, bm, wls, bls):
    def one(a):
        h = jnp.maximum(a @ (xs @ w1) + b1, 0.0)
        m = a @ (h @ wm) + bm
        s = a @ (h @ wls) + bls
        return m, s
    m, s = jax.vmap(one)(adj)
    kld_t = -0.5 * jnp.mean(
        jnp.sum(1.0 + 2.0 * s - m ** 2 - jnp.exp(s) ** 2, axis=-1), axis=-1)
    return m, s, jnp.mean(kld_t)


# ----------------------------------------------------------------------------
if __name__ == "__main__":
    # Small deterministic problem: T timesteps of a graph with N nodes.
    # (T=16, z=8 -> tb=8 gives a lane-dense 128-wide output block and nblk=2.)
    T, N, E = 16, 128, 96
    X_DIM, H_DIM, Z_DIM = 16, 32, 8

    key = jax.random.PRNGKey(0)
    keys = jax.random.split(key, 10)

    xs = jax.random.normal(keys[0], (N, X_DIM), jnp.float32)

    # Per-timestep masked edge lists (what data.ei_masked / ew_masked return).
    src = jax.random.randint(keys[1], (T, E), 0, N)
    dst = jax.random.randint(keys[2], (T, E), 0, N)
    ew = jax.random.uniform(keys[3], (T, E), jnp.float32, 0.1, 1.0)
    adj = jnp.stack([gcn_norm_dense(src[t], dst[t], ew[t], N) for t in range(T)])

    # Deterministic parameter init (GCNConv: weight (in, out), bias (out,)).
    def glorot(k, shape):
        lim = jnp.sqrt(6.0 / (shape[0] + shape[1]))
        return jax.random.uniform(k, shape, jnp.float32, -lim, lim)

    w1 = glorot(keys[4], (X_DIM, H_DIM))
    b1 = jnp.zeros((H_DIM,), jnp.float32)
    wm = glorot(keys[5], (H_DIM, Z_DIM))
    bm = jnp.zeros((Z_DIM,), jnp.float32)
    wls = glorot(keys[6], (H_DIM, Z_DIM))
    bls = jnp.zeros((Z_DIM,), jnp.float32)

    mean, logstd, kld = jax.block_until_ready(
        jax.jit(vgae_forward)(adj, xs, w1, b1, wm, bm, wls, bls))

    m_ref, s_ref, kld_ref = reference_forward(adj, xs, w1, b1, wm, bm, wls, bls)
    assert mean.shape == (T, N, Z_DIM) and logstd.shape == (T, N, Z_DIM)

    # bf16 MXU path -> loosened tolerances vs the all-f32 reference.
    assert jnp.allclose(mean, m_ref, atol=3e-2, rtol=3e-2)
    assert jnp.allclose(logstd, s_ref, atol=3e-2, rtol=3e-2)
    assert jnp.allclose(kld, kld_ref, atol=1e-1, rtol=5e-2)

    # TODO(synk): score/loss_fn (edge decode + BCE) operate on sampled edge
    # lists at train time and are not part of forward(); not implemented here.
    print("KERNEL_OK")
</pallas_src>

<mosaic_0001>
module attributes {stable_mosaic.version = 11 : i64} {
  func.func @_vgae_block_kernel(%arg0: i32, %arg1: memref<1024x128xbf16, #tpu.memory_space<vmem>>, %arg2: memref<128x32xbf16, #tpu.memory_space<vmem>>, %arg3: memref<1x32xf32, #tpu.memory_space<vmem>>, %arg4: memref<32x16xbf16, #tpu.memory_space<vmem>>, %arg5: memref<1x16xf32, #tpu.memory_space<vmem>>, %arg6: memref<128x128xf32, #tpu.memory_space<vmem>>) attributes {dimension_semantics = [#tpu.dimension_semantics<parallel>], iteration_bounds = array<i64: 2>, scalar_prefetch = 0 : i64, scratch_operands = 0 : i64, tpu.core_type = #tpu.core_type<tc>, window_params = [{transform_indices = @transform_0, window_bounds = array<i64: 1024, 128>}, {pipeline_mode = #tpu.pipeline_mode<synchronous>, transform_indices = @transform_1, window_bounds = array<i64: 128, 32>}, {pipeline_mode = #tpu.pipeline_mode<synchronous>, transform_indices = @transform_2, window_bounds = array<i64: 1, 32>}, {pipeline_mode = #tpu.pipeline_mode<synchronous>, transform_indices = @transform_3, window_bounds = array<i64: 32, 16>}, {pipeline_mode = #tpu.pipeline_mode<synchronous>, transform_indices = @transform_4, window_bounds = array<i64: 1, 16>}, {transform_indices = @transform_5, window_bounds = array<i64: 128, 128>}]} {
    %c0 = arith.constant 0 : index
    %c0_0 = arith.constant 0 : index
    %0 = vector.load %arg2[%c0, %c0_0] : memref<128x32xbf16, #tpu.memory_space<vmem>>, vector<128x32xbf16>
    %c0_1 = arith.constant 0 : index
    %c0_2 = arith.constant 0 : index
    %1 = vector.load %arg4[%c0_1, %c0_2] : memref<32x16xbf16, #tpu.memory_space<vmem>>, vector<32x16xbf16>
    %c0_3 = arith.constant 0 : index
    %c0_4 = arith.constant 0 : index
    %2 = vector.load %arg3[%c0_3, %c0_4] : memref<1x32xf32, #tpu.memory_space<vmem>>, vector<1x32xf32>
    %c0_5 = arith.constant 0 : index
    %c0_6 = arith.constant 0 : index
    %3 = vector.load %arg5[%c0_5, %c0_6] : memref<1x16xf32, #tpu.memory_space<vmem>>, vector<1x16xf32>
    %c0_7 = arith.constant 0 : index
    %c0_8 = arith.constant 0 : index
    %4 = vector.load %arg1[%c0_7, %c0_8] : memref<1024x128xbf16, #tpu.memory_space<vmem>>, vector<1024x128xbf16>
    %cst = arith.constant dense<0.000000e+00> : vector<1024x32xf32>
    %5 = tpu.matmul %4, %0, %cst {dimension_numbers = #tpu.dot_dimension_numbers<[1], [0], [0], [1], [0, 0, 1, 1], [], []>} : vector<1024x128xbf16>, vector<128x32xbf16>, vector<1024x32xf32> -> vector<1024x32xf32>
    %6 = vector.broadcast %2 : vector<1x32xf32> to vector<1024x32xf32>
    %7 = arith.addf %5, %6 : vector<1024x32xf32>
    %cst_9 = arith.constant 0.000000e+00 : f32
    %8 = vector.broadcast %cst_9 : f32 to vector<1024x32xf32>
    %9 = arith.maximumf %7, %8 : vector<1024x32xf32>
    %10 = arith.truncf %9 : vector<1024x32xf32> to vector<1024x32xbf16>
    %cst_10 = arith.constant dense<0.000000e+00> : vector<1024x16xf32>
    %11 = tpu.matmul %10, %1, %cst_10 {dimension_numbers = #tpu.dot_dimension_numbers<[1], [0], [0], [1], [0, 0, 1, 1], [], []>} : vector<1024x32xbf16>, vector<32x16xbf16>, vector<1024x16xf32> -> vector<1024x16xf32>
    %c0_11 = arith.constant 0 : index
    %c0_12 = arith.constant 0 : index
    %12 = vector.load %arg1[%c0_11, %c0_12] : memref<1024x128xbf16, #tpu.memory_space<vmem>>, vector<128x128xbf16>
    %13 = vector.extract_strided_slice %11 {offsets = [0, 0], sizes = [128, 16], strides = [1, 1]} : vector<1024x16xf32> to vector<128x16xf32>
    %14 = arith.truncf %13 : vector<128x16xf32> to vector<128x16xbf16>
    %cst_13 = arith.constant dense<0.000000e+00> : vector<128x16xf32>
    %15 = tpu.matmul %12, %14, %cst_13 {dimension_numbers = #tpu.dot_dimension_numbers<[1], [0], [0], [1], [0, 0, 1, 1], [], []>} : vector<128x128xbf16>, vector<128x16xbf16>, vector<128x16xf32> -> vector<128x16xf32>
    %16 = vector.broadcast %3 : vector<1x16xf32> to vector<128x16xf32>
    %17 = arith.addf %15, %16 : vector<128x16xf32>
    %c0_14 = arith.constant 0 : index
    %c0_15 = arith.constant 0 : index
    %18 = vector.load %arg6[%c0_14, %c0_15] : memref<128x128xf32, #tpu.memory_space<vmem>>, vector<128x16xf32>
    tpu.vector_store %arg6[%c0_14, %c0_15], %17 {strides = array<i32>} : memref<128x128xf32, #tpu.memory_space<vmem>>, vector<128x16xf32>,
    %c128 = arith.constant 128 : index
    %c0_16 = arith.constant 0 : index
    %19 = vector.load %arg1[%c128, %c0_16] : memref<1024x128xbf16, #tpu.memory_space<vmem>>, vector<128x128xbf16>
    %20 = vector.extract_strided_slice %11 {offsets = [128, 0], sizes = [128, 16], strides = [1, 1]} : vector<1024x16xf32> to vector<128x16xf32>
    %21 = arith.truncf %20 : vector<128x16xf32> to vector<128x16xbf16>
    %cst_17 = arith.constant dense<0.000000e+00> : vector<128x16xf32>
    %22 = tpu.matmul %19, %21, %cst_17 {dimension_numbers = #tpu.dot_dimension_numbers<[1], [0], [0], [1], [0, 0, 1, 1], [], []>} : vector<128x128xbf16>, vector<128x16xbf16>, vector<128x16xf32> -> vector<128x16xf32>
    %23 = vector.broadcast %3 : vector<1x16xf32> to vector<128x16xf32>
    %24 = arith.addf %22, %23 : vector<128x16xf32>
    %c0_18 = arith.constant 0 : index
    %c16 = arith.constant 16 : index
    %25 = vector.load %arg6[%c0_18, %c16] : memref<128x128xf32, #tpu.memory_space<vmem>>, vector<128x16xf32>
    tpu.vector_store %arg6[%c0_18, %c16], %24 {strides = array<i32>} : memref<128x128xf32, #tpu.memory_space<vmem>>, vector<128x16xf32>,
    %c256 = arith.constant 256 : index
    %c0_19 = arith.constant 0 : index
    %26 = vector.load %arg1[%c256, %c0_19] : memref<1024x128xbf16, #tpu.memory_space<vmem>>, vector<128x128xbf16>
    %27 = vector.extract_strided_slice %11 {offsets = [256, 0], sizes = [128, 16], strides = [1, 1]} : vector<1024x16xf32> to vector<128x16xf32>
    %28 = arith.truncf %27 : vector<128x16xf32> to vector<128x16xbf16>
    %cst_20 = arith.constant dense<0.000000e+00> : vector<128x16xf32>
    %29 = tpu.matmul %26, %28, %cst_20 {dimension_numbers = #tpu.dot_dimension_numbers<[1], [0], [0], [1], [0, 0, 1, 1], [], []>} : vector<128x128xbf16>, vector<128x16xbf16>, vector<128x16xf32> -> vector<128x16xf32>
    %30 = vector.broadcast %3 : vector<1x16xf32> to vector<128x16xf32>
    %31 = arith.addf %29, %30 : vector<128x16xf32>
    %c0_21 = arith.constant 0 : index
    %c32 = arith.constant 32 : index
    %32 = vector.load %arg6[%c0_21, %c32] : memref<128x128xf32, #tpu.memory_space<vmem>>, vector<128x16xf32>
    tpu.vector_store %arg6[%c0_21, %c32], %31 {strides = array<i32>} : memref<128x128xf32, #tpu.memory_space<vmem>>, vector<128x16xf32>,
    %c384 = arith.constant 384 : index
    %c0_22 = arith.constant 0 : index
    %33 = vector.load %arg1[%c384, %c0_22] : memref<1024x128xbf16, #tpu.memory_space<vmem>>, vector<128x128xbf16>
    %34 = vector.extract_strided_slice %11 {offsets = [384, 0], sizes = [128, 16], strides = [1, 1]} : vector<1024x16xf32> to vector<128x16xf32>
    %35 = arith.truncf %34 : vector<128x16xf32> to vector<128x16xbf16>
    %cst_23 = arith.constant dense<0.000000e+00> : vector<128x16xf32>
    %36 = tpu.matmul %33, %35, %cst_23 {dimension_numbers = #tpu.dot_dimension_numbers<[1], [0], [0], [1], [0, 0, 1, 1], [], []>} : vector<128x128xbf16>, vector<128x16xbf16>, vector<128x16xf32> -> vector<128x16xf32>
    %37 = vector.broadcast %3 : vector<1x16xf32> to vector<128x16xf32>
    %38 = arith.addf %36, %37 : vector<128x16xf32>
    %c0_24 = arith.constant 0 : index
    %c48 = arith.constant 48 : index
    %39 = vector.load %arg6[%c0_24, %c48] : memref<128x128xf32, #tpu.memory_space<vmem>>, vector<128x16xf32>
    tpu.vector_store %arg6[%c0_24, %c48], %38 {strides = array<i32>} : memref<128x128xf32, #tpu.memory_space<vmem>>, vector<128x16xf32>,
    %c512 = arith.constant 512 : index
    %c0_25 = arith.constant 0 : index
    %40 = vector.load %arg1[%c512, %c0_25] : memref<1024x128xbf16, #tpu.memory_space<vmem>>, vector<128x128xbf16>
    %41 = vector.extract_strided_slice %11 {offsets = [512, 0], sizes = [128, 16], strides = [1, 1]} : vector<1024x16xf32> to vector<128x16xf32>
    %42 = arith.truncf %41 : vector<128x16xf32> to vector<128x16xbf16>
    %cst_26 = arith.constant dense<0.000000e+00> : vector<128x16xf32>
    %43 = tpu.matmul %40, %42, %cst_26 {dimension_numbers = #tpu.dot_dimension_numbers<[1], [0], [0], [1], [0, 0, 1, 1], [], []>} : vector<128x128xbf16>, vector<128x16xbf16>, vector<128x16xf32> -> vector<128x16xf32>
    %44 = vector.broadcast %3 : vector<1x16xf32> to vector<128x16xf32>
    %45 = arith.addf %43, %44 : vector<128x16xf32>
    %c0_27 = arith.constant 0 : index
    %c64 = arith.constant 64 : index
    %46 = vector.load %arg6[%c0_27, %c64] : memref<128x128xf32, #tpu.memory_space<vmem>>, vector<128x16xf32>
    tpu.vector_store %arg6[%c0_27, %c64], %45 {strides = array<i32>} : memref<128x128xf32, #tpu.memory_space<vmem>>, vector<128x16xf32>,
    %c640 = arith.constant 640 : index
    %c0_28 = arith.constant 0 : index
    %47 = vector.load %arg1[%c640, %c0_28] : memref<1024x128xbf16, #tpu.memory_space<vmem>>, vector<128x128xbf16>
    %48 = vector.extract_strided_slice %11 {offsets = [640, 0], sizes = [128, 16], strides = [1, 1]} : vector<1024x16xf32> to vector<128x16xf32>
    %49 = arith.truncf %48 : vector<128x16xf32> to vector<128x16xbf16>
    %cst_29 = arith.constant dense<0.000000e+00> : vector<128x16xf32>
    %50 = tpu.matmul %47, %49, %cst_29 {dimension_numbers = #tpu.dot_dimension_numbers<[1], [0], [0], [1], [0, 0, 1, 1], [], []>} : vector<128x128xbf16>, vector<128x16xbf16>, vector<128x16xf32> -> vector<128x16xf32>
    %51 = vector.broadcast %3 : vector<1x16xf32> to vector<128x16xf32>
    %52 = arith.addf %50, %51 : vector<128x16xf32>
    %c0_30 = arith.constant 0 : index
    %c80 = arith.constant 80 : index
    %53 = vector.load %arg6[%c0_30, %c80] : memref<128x128xf32, #tpu.memory_space<vmem>>, vector<128x16xf32>
    tpu.vector_store %arg6[%c0_30, %c80], %52 {strides = array<i32>} : memref<128x128xf32, #tpu.memory_space<vmem>>, vector<128x16xf32>,
    %c768 = arith.constant 768 : index
    %c0_31 = arith.constant 0 : index
    %54 = vector.load %arg1[%c768, %c0_31] : memref<1024x128xbf16, #tpu.memory_space<vmem>>, vector<128x128xbf16>
    %55 = vector.extract_strided_slice %11 {offsets = [768, 0], sizes = [128, 16], strides = [1, 1]} : vector<1024x16xf32> to vector<128x16xf32>
    %56 = arith.truncf %55 : vector<128x16xf32> to vector<128x16xbf16>
    %cst_32 = arith.constant dense<0.000000e+00> : vector<128x16xf32>
    %57 = tpu.matmul %54, %56, %cst_32 {dimension_numbers = #tpu.dot_dimension_numbers<[1], [0], [0], [1], [0, 0, 1, 1], [], []>} : vector<128x128xbf16>, vector<128x16xbf16>, vector<128x16xf32> -> vector<128x16xf32>
    %58 = vector.broadcast %3 : vector<1x16xf32> to vector<128x16xf32>
    %59 = arith.addf %57, %58 : vector<128x16xf32>
    %c0_33 = arith.constant 0 : index
    %c96 = arith.constant 96 : index
    %60 = vector.load %arg6[%c0_33, %c96] : memref<128x128xf32, #tpu.memory_space<vmem>>, vector<128x16xf32>
    tpu.vector_store %arg6[%c0_33, %c96], %59 {strides = array<i32>} : memref<128x128xf32, #tpu.memory_space<vmem>>, vector<128x16xf32>,
    %c896 = arith.constant 896 : index
    %c0_34 = arith.constant 0 : index
    %61 = vector.load %arg1[%c896, %c0_34] : memref<1024x128xbf16, #tpu.memory_space<vmem>>, vector<128x128xbf16>
    %62 = vector.extract_strided_slice %11 {offsets = [896, 0], sizes = [128, 16], strides = [1, 1]} : vector<1024x16xf32> to vector<128x16xf32>
    %63 = arith.truncf %62 : vector<128x16xf32> to vector<128x16xbf16>
    %cst_35 = arith.constant dense<0.000000e+00> : vector<128x16xf32>
    %64 = tpu.matmul %61, %63, %cst_35 {dimension_numbers = #tpu.dot_dimension_numbers<[1], [0], [0], [1], [0, 0, 1, 1], [], []>} : vector<128x128xbf16>, vector<128x16xbf16>, vector<128x16xf32> -> vector<128x16xf32>
    %65 = vector.broadcast %3 : vector<1x16xf32> to vector<128x16xf32>
    %66 = arith.addf %64, %65 : vector<128x16xf32>
    %c0_36 = arith.constant 0 : index
    %c112 = arith.constant 112 : index
    %67 = vector.load %arg6[%c0_36, %c112] : memref<128x128xf32, #tpu.memory_space<vmem>>, vector<128x16xf32>
    tpu.vector_store %arg6[%c0_36, %c112], %66 {strides = array<i32>} : memref<128x128xf32, #tpu.memory_space<vmem>>, vector<128x16xf32>,
    return
  }
  func.func @transform_0(%arg0: i32) -> (i32, i32) {
    %c0_i32 = arith.constant 0 : i32
    %c0_i32_0 = arith.constant 0 : i32
    return %arg0, %c0_i32 : i32, i32
  }
  func.func @transform_1(%arg0: i32) -> (i32, i32) {
    %c0_i32 = arith.constant 0 : i32
    %c0_i32_0 = arith.constant 0 : i32
    %c0_i32_1 = arith.constant 0 : i32
    return %c0_i32, %c0_i32_0 : i32, i32
  }
  func.func @transform_2(%arg0: i32) -> (i32, i32) {
    %c0_i32 = arith.constant 0 : i32
    %c0_i32_0 = arith.constant 0 : i32
    %c0_i32_1 = arith.constant 0 : i32
    return %c0_i32, %c0_i32_0 : i32, i32
  }
  func.func @transform_3(%arg0: i32) -> (i32, i32) {
    %c0_i32 = arith.constant 0 : i32
    %c0_i32_0 = arith.constant 0 : i32
    %c0_i32_1 = arith.constant 0 : i32
    return %c0_i32, %c0_i32_0 : i32, i32
  }
  func.func @transform_4(%arg0: i32) -> (i32, i32) {
    %c0_i32 = arith.constant 0 : i32
    %c0_i32_0 = arith.constant 0 : i32
    %c0_i32_1 = arith.constant 0 : i32
    return %c0_i32, %c0_i32_0 : i32, i32
  }
  func.func @transform_5(%arg0: i32) -> (i32, i32) {
    %c0_i32 = arith.constant 0 : i32
    %c0_i32_0 = arith.constant 0 : i32
    return %c0_i32, %arg0 : i32, i32
  }
}

</mosaic_0001>

<llo_original>
// kernel: vgae_forward.1
$region0: #{vgae_forward.1}
  #allocation0 [shape = 'u32[]', space=smem, size = 0x4, offset = 0x4, fixed_abs, tag = 'smem constant byte address 0x4 - core index']
  #allocation1 [shape = 'u32[144,128]{1,0:T(1,128)}', space=vmem, size = 0x12000, scoped, tag = 'internal scratch']
  %s0 = inlined_call_operand.vmem [shape: bf16[2048,128], index: 0, kind: input, shape index: {}]
  %s1 = inlined_call_operand.vmem [shape: bf16[128,32], index: 1, kind: input, shape index: {}]
  %s2 = inlined_call_operand.vmem [shape: f32[1,32], index: 2, kind: input, shape index: {}]
  %s3 = inlined_call_operand.vmem [shape: bf16[32,16], index: 3, kind: input, shape index: {}]
  %s4 = inlined_call_operand.vmem [shape: f32[1,16], index: 4, kind: input, shape index: {}]
  %s5 = inlined_call_operand.vmem [shape: f32[128,256], index: 5, kind: output, shape index: {}]
  %s6 = sld [smem:[#allocation0]]
  $region87: #{vgae_forward.1} parent=0
    _
  %s8 = ssub.s32 1, %s6
  %s9 = scalar_select 0, %s8, %s6
  $region1: #{vgae_forward.1} parent=0
    #allocation2 [shape = 'u8[131072]{0}', space=vmem, size = 0x20000, scoped, tag = 'output window, operand 0']
    loop: start=0, step=1, limit=4
    $region2: #{vgae_forward.1} parent=1 // loop_pre_header
      _
    $region3: #{vgae_forward.1} parent=1 // loop_header
      %s11 = sphi 0, %s15
      %p12 = scmp.ge.s32.totalorder %s11, 4
      %s21 = sphi 0, %s23
      %s24 = sphi 0, %s21
      %s25 = sphi 0, %s24
      %s41 = sphi 0, %s25
      %s45 = sphi 0, %s45
      %s47 = sphi 0, %s45
      %s48 = sphi 0, %s47
      %s62 = sphi 0, %s48
      %s66 = sphi 0, %s66
      %s68 = sphi 0, %s66
      %s69 = sphi 0, %s68
      %s83 = sphi 0, %s69
      %s87 = sphi 0, %s87
      %s89 = sphi 0, %s87
      %s90 = sphi 0, %s89
      %s104 = sphi 0, %s90
      %s108 = sphi 0, %s108
      %s110 = sphi 0, %s108
      %s111 = sphi 0, %s110
      %s125 = sphi 0, %s111
      %s131 = sphi 0, %s133
      %s134 = sphi 0, %s131
      %s135 = sphi 0, %s134
      %s151 = sphi 0, %s135
    $region4: #{vgae_forward.1} parent=1 // loop_header_branch
      %14 = sbr.rel (%p12) target = $region8
    $region5: #{vgae_forward.1} parent=1 // loop_body
      %s16 = ssub.s32 %s11, 1
      %s17 = ssub.s32 %s11, 2
      %s18 = sadd.s32 %s11, 1
      %s19 = ssub.s32 %s11, %s18
      %p20 = scmp.eq.s32.totalorder %s19, 0
      %s22 = sadd.s32 %s21, 1
      %s23 = scalar_select %p20, %s21, %s22
      %p26 = pneg %p20
      %p27 = scmp.eq.s32.totalorder %s11, 1
      %p28 = por %p26, %p27
      %p29 = scmp.ne.s32.totalorder %s21, %s24
      %p30 = scmp.eq.s32.totalorder %s11, 0
      %p31 = por %p29, %p30
      %p32 = scmp.ne.s32.totalorder %s21, %s24
      %p33 = scmp.eq.s32.totalorder %s16, 1
      %p34 = por %p32, %p33
      %p35 = scmp.ne.s32.totalorder %s24, %s25
      %p36 = scmp.eq.s32.totalorder %s16, 0
      %p37 = por %p35, %p36
      %p38 = scmp.ne.s32.totalorder %s24, %s25
      %p39 = scmp.eq.s32.totalorder %s17, 1
      %p40 = por %p38, %p39
      %p42 = scmp.ne.s32.totalorder %s25, %s41
      %p43 = scmp.eq.s32.totalorder %s17, 0
      %p44 = por %p42, %p43
      %s46 = sadd.s32 %s45, 1
      %p49 = scmp.eq.s32.totalorder %s11, 1
      %p50 = scmp.ne.s32.totalorder %s45, %s47
      %p51 = scmp.eq.s32.totalorder %s11, 0
      %p52 = por %p50, %p51
      %p53 = scmp.ne.s32.totalorder %s45, %s47
      %p54 = scmp.eq.s32.totalorder %s16, 1
      %p55 = por %p53, %p54
      %p56 = scmp.ne.s32.totalorder %s47, %s48
      %p57 = scmp.eq.s32.totalorder %s16, 0
      %p58 = por %p56, %p57
      %p59 = scmp.ne.s32.totalorder %s47, %s48
      %p60 = scmp.eq.s32.totalorder %s17, 1
      %p61 = por %p59, %p60
      %p63 = scmp.ne.s32.totalorder %s48, %s62
      %p64 = scmp.eq.s32.totalorder %s17, 0
      %p65 = por %p63, %p64
      %s67 = sadd.s32 %s66, 1
      %p70 = scmp.eq.s32.totalorder %s11, 1
      %p71 = scmp.ne.s32.totalorder %s66, %s68
      %p72 = scmp.eq.s32.totalorder %s11, 0
      %p73 = por %p71, %p72
      %p74 = scmp.ne.s32.totalorder %s66, %s68
      %p75 = scmp.eq.s32.totalorder %s16, 1
      %p76 = por %p74, %p75
      %p77 = scmp.ne.s32.totalorder %s68, %s69
      %p78 = scmp.eq.s32.totalorder %s16, 0
      %p79 = por %p77, %p78
      %p80 = scmp.ne.s32.totalorder %s68, %s69
      %p81 = scmp.eq.s32.totalorder %s17, 1
      %p82 = por %p80, %p81
      %p84 = scmp.ne.s32.totalorder %s69, %s83
      %p85 = scmp.eq.s32.totalorder %s17, 0
      %p86 = por %p84, %p85
      %s88 = sadd.s32 %s87, 1
      %p91 = scmp.eq.s32.totalorder %s11, 1
      %p92 = scmp.ne.s32.totalorder %s87, %s89
      %p93 = scmp.eq.s32.totalorder %s11, 0
      %p94 = por %p92, %p93
      %p95 = scmp.ne.s32.totalorder %s87, %s89
      %p96 = scmp.eq.s32.totalorder %s16, 1
      %p97 = por %p95, %p96
      %p98 = scmp.ne.s32.totalorder %s89, %s90
      %p99 = scmp.eq.s32.totalorder %s16, 0
      %p100 = por %p98, %p99
      %p101 = scmp.ne.s32.totalorder %s89, %s90
      %p102 = scmp.eq.s32.totalorder %s17, 1
      %p103 = por %p101, %p102
      %p105 = scmp.ne.s32.totalorder %s90, %s104
      %p106 = scmp.eq.s32.totalorder %s17, 0
      %p107 = por %p105, %p106
      %s109 = sadd.s32 %s108, 1
      %p112 = scmp.eq.s32.totalorder %s11, 1
      %p113 = scmp.ne.s32.totalorder %s108, %s110
      %p114 = scmp.eq.s32.totalorder %s11, 0
      %p115 = por %p113, %p114
      %p116 = scmp.ne.s32.totalorder %s108, %s110
      %p117 = scmp.eq.s32.totalorder %s16, 1
      %p118 = por %p116, %p117
      %p119 = scmp.ne.s32.totalorder %s110, %s111
      %p120 = scmp.eq.s32.totalorder %s16, 0
      %p121 = por %p119, %p120
      %p122 = scmp.ne.s32.totalorder %s110, %s111
      %p123 = scmp.eq.s32.totalorder %s17, 1
      %p124 = por %p122, %p123
      %p126 = scmp.ne.s32.totalorder %s111, %s125
      %p127 = scmp.eq.s32.totalorder %s17, 0
      %p128 = por %p126, %p127
      %s129 = ssub.s32 %s11, %s18
      %p130 = scmp.eq.s32.totalorder %s129, 0
      %s132 = sadd.s32 %s131, 1
      %s133 = scalar_select %p130, %s131, %s132
      %p136 = pneg %p130
      %p137 = scmp.eq.s32.totalorder %s11, 1
      %p138 = por %p136, %p137
      %p139 = scmp.ne.s32.totalorder %s131, %s134
      %p140 = scmp.eq.s32.totalorder %s11, 0
      %p141 = por %p139, %p140
      %p142 = scmp.ne.s32.totalorder %s131, %s134
      %p143 = scmp.eq.s32.totalorder %s16, 1
      %p144 = por %p142, %p143
      %p145 = scmp.ne.s32.totalorder %s134, %s135
      %p146 = scmp.eq.s32.totalorder %s16, 0
      %p147 = por %p145, %p146
      %p148 = scmp.ne.s32.totalorder %s134, %s135
      %p149 = scmp.eq.s32.totalorder %s17, 1
      %p150 = por %p148, %p149
      %p152 = scmp.ne.s32.totalorder %s135, %s151
      %p153 = scmp.eq.s32.totalorder %s17, 0
      %p154 = por %p152, %p153
      %p155 = scmp.le.s32.totalorder 1, %s11
      %p156 = scmp.lt.s32.totalorder %s11, 3
      %p157 = pnand %p155, %p156
      %p158 = pneg %p157
      // Predicated region
      $region9: #{vgae_forward.1} parent=5 // pred_check
        _
      $region10: #{vgae_forward.1} parent=5 // pred_check_branch
        %160 = sbr.rel (%p157) target = $region12
      $region11: #{vgae_forward.1} parent=5 // pred_region
        %s161 = ssub.s32 %s11, 1
        // Predicated region
        $region13: #{vgae_forward.1} parent=11 // pred_check
          %p162 = pneg %p58
        $region14: #{vgae_forward.1} parent=11 // pred_check_branch
          %164 = sbr.rel (%p162) target = $region16
        $region15: #{vgae_forward.1} parent=11 // pred_region
          _
        $region16: #{vgae_forward.1} parent=11 // pred_fallthru
          _
        // Predicated region
        $region17: #{vgae_forward.1} parent=11 // pred_check
          %p165 = pneg %p79
        $region18: #{vgae_forward.1} parent=11 // pred_check_branch
          %167 = sbr.rel (%p165) target = $region20
        $region19: #{vgae_forward.1} parent=11 // pred_region
          _
        $region20: #{vgae_forward.1} parent=11 // pred_fallthru
          _
        // Predicated region
        $region21: #{vgae_forward.1} parent=11 // pred_check
          %p168 = pneg %p100
        $region22: #{vgae_forward.1} parent=11 // pred_check_branch
          %170 = sbr.rel (%p168) target = $region24
        $region23: #{vgae_forward.1} parent=11 // pred_region
          _
        $region24: #{vgae_forward.1} parent=11 // pred_fallthru
          _
        // Predicated region
        $region25: #{vgae_forward.1} parent=11 // pred_check
          %p171 = pneg %p121
        $region26: #{vgae_forward.1} parent=11 // pred_check_branch
          %173 = sbr.rel (%p171) target = $region28
        $region27: #{vgae_forward.1} parent=11 // pred_region
          _
        $region28: #{vgae_forward.1} parent=11 // pred_fallthru
          _
      $region12: #{vgae_forward.1} parent=5 // pred_fallthru
        _
      %p174 = scmp.lt.s32.totalorder %s11, 2
      // Predicated region
      $region29: #{vgae_forward.1} parent=5 // pred_check
        %p175 = pneg %p174
      $region30: #{vgae_forward.1} parent=5 // pred_check_branch
        %177 = sbr.rel (%p175) target = $region32
      $region31: #{vgae_forward.1} parent=5 // pred_region
        // Predicated region
        $region33: #{vgae_forward.1} parent=31 // pred_check
          %p178 = pneg %p31
        $region34: #{vgae_forward.1} parent=31 // pred_check_branch
          %180 = sbr.rel (%p178) target = $region36
        $region35: #{vgae_forward.1} parent=31 // pred_region
          %s181 = smul.u32 128, %s11
          %p182 = scmp.lt.s32.totalorder %s181, 255
          %s183 = scalar_select %p182, %s181, 255
          %s184 = smul.addr %s183, 4
          %s185 = scalar_lea.vmem %s0, %s184
          %s186 = smul.u32 128, %s11
        $region36: #{vgae_forward.1} parent=31 // pred_fallthru
          _
      $region32: #{vgae_forward.1} parent=5 // pred_fallthru
        _
      %p187 = scmp.le.s32.totalorder 1, %s11
      %p188 = scmp.lt.s32.totalorder %s11, 3
      %p189 = pnand %p187, %p188
      %p190 = pneg %p189
      // Predicated region
      $region37: #{vgae_forward.1} parent=5 // pred_check
        _
      $region38: #{vgae_forward.1} parent=5 // pred_check_branch
        %192 = sbr.rel (%p189) target = $region40
      $region39: #{vgae_forward.1} parent=5 // pred_region
        %s193 = ssub.s32 %s11, 1
        %s194 = smul.u32 128, %s16
        %p195 = scmp.lt.s32.totalorder %s194, 255
        %s196 = scalar_select %p195, %s194, 255
        %s197 = smul.addr %s196, 4
        %s198 = scalar_lea.vmem %s0, %s197
        %p199 = pneg %p37
        %p200 = pneg %p34
        %p201 = pneg %p58
        %p202 = pneg %p55
        %p203 = pneg %p79
        %p204 = pneg %p76
        %p205 = pneg %p100
        %p206 = pneg %p97
        %p207 = pneg %p121
        %p208 = pneg %p118
        %p209 = pneg %p147
        %p210 = pneg %p144
        %s211 = sand.u32 %s134, 1
        %s212 = sand.u32 %s134, 1
        %s213 = smul.addr %s212, 128
        %s214 = scalar_lea.vmem [#allocation2], %s213
        %s215 = smul.u32 128, %s16
        %p216 = scmp.lt.s32.totalorder %s215, 255
        %s217 = scalar_select %p216, %s215, 255
        %s218 = smul.addr %s217, 4
        %s219 = scalar_lea.vmem %s0, %s218
        %s220 = smul.u32 128, %s16
        %v222 = vld [vmem:[%s1] sm:$0xf]
        %v223 = vld [vmem:[%s1 + $0x4] sm:$0xf]
        %v224 = vld [vmem:[%s1 + $0x8] sm:$0xf]
        %v225 = vld [vmem:[%s1 + $0xc] sm:$0xf]
        %v226 = vld [vmem:[%s1 + $0x10] sm:$0xf]
        %v227 = vld [vmem:[%s1 + $0x14] sm:$0xf]
        %v228 = vld [vmem:[%s1 + $0x18] sm:$0xf]
        %v229 = vld [vmem:[%s1 + $0x1c] sm:$0xf]
        %v230 = vld [vmem:[%s1 + $0x20] sm:$0xf]
        %v231 = vld [vmem:[%s1 + $0x24] sm:$0xf]
        %v232 = vld [vmem:[%s1 + $0x28] sm:$0xf]
        %v233 = vld [vmem:[%s1 + $0x2c] sm:$0xf]
        %v234 = vld [vmem:[%s1 + $0x30] sm:$0xf]
        %v235 = vld [vmem:[%s1 + $0x34] sm:$0xf]
        %v236 = vld [vmem:[%s1 + $0x38] sm:$0xf]
        %v237 = vld [vmem:[%s1 + $0x3c] sm:$0xf]
        %v238 = vld [vmem:[%s3] sm:$0xf]
        %v239 = vld [vmem:[%s3 + $0x4] sm:$0xf]
        %v240 = vld [vmem:[%s3 + $0x8] sm:$0xf]
        %v241 = vld [vmem:[%s3 + $0xc] sm:$0xf]
        %v242 = vld [vmem:[%s2] sm:$0x1]
        %v243 = vld [vmem:[%s4] sm:$0x1]
        %v244 = vld [vmem:[%s219] sm:$0xf]
        %v245 = vld [vmem:[%s219 + $0x4] sm:$0xf]
        %v246 = vld [vmem:[%s219 + $0x8] sm:$0xf]
        %v247 = vld [vmem:[%s219 + $0xc] sm:$0xf]
        %v248 = vld [vmem:[%s219 + $0x10] sm:$0xf]
        %v249 = vld [vmem:[%s219 + $0x14] sm:$0xf]
        %v250 = vld [vmem:[%s219 + $0x18] sm:$0xf]
        %v251 = vld [vmem:[%s219 + $0x1c] sm:$0xf]
        %v252 = vld [vmem:[%s219 + $0x20] sm:$0xf]
        %v253 = vld [vmem:[%s219 + $0x24] sm:$0xf]
        %v254 = vld [vmem:[%s219 + $0x28] sm:$0xf]
        %v255 = vld [vmem:[%s219 + $0x2c] sm:$0xf]
        %v256 = vld [vmem:[%s219 + $0x30] sm:$0xf]
        %v257 = vld [vmem:[%s219 + $0x34] sm:$0xf]
        %v258 = vld [vmem:[%s219 + $0x38] sm:$0xf]
        %v259 = vld [vmem:[%s219 + $0x3c] sm:$0xf]
        %v260 = vld [vmem:[%s219 + $0x40] sm:$0xf]
        %v261 = vld [vmem:[%s219 + $0x44] sm:$0xf]
        %v262 = vld [vmem:[%s219 + $0x48] sm:$0xf]
        %v263 = vld [vmem:[%s219 + $0x4c] sm:$0xf]
        %v264 = vld [vmem:[%s219 + $0x50] sm:$0xf]
        %v265 = vld [vmem:[%s219 + $0x54] sm:$0xf]
        %v266 = vld [vmem:[%s219 + $0x58] sm:$0xf]
        %v267 = vld [vmem:[%s219 + $0x5c] sm:$0xf]
        %v268 = vld [vmem:[%s219 + $0x60] sm:$0xf]
        %v269 = vld [vmem:[%s219 + $0x64] sm:$0xf]
        %v270 = vld [vmem:[%s219 + $0x68] sm:$0xf]
        %v271 = vld [vmem:[%s219 + $0x6c] sm:$0xf]
        %v272 = vld [vmem:[%s219 + $0x70] sm:$0xf]
        %v273 = vld [vmem:[%s219 + $0x74] sm:$0xf]
        %v274 = vld [vmem:[%s219 + $0x78] sm:$0xf]
        %v275 = vld [vmem:[%s219 + $0x7c] sm:$0xf]
        %v276 = vld [vmem:[%s219 + $0x80] sm:$0xf]
        %v277 = vld [vmem:[%s219 + $0x84] sm:$0xf]
        %v278 = vld [vmem:[%s219 + $0x88] sm:$0xf]
        %v279 = vld [vmem:[%s219 + $0x8c] sm:$0xf]
        %v280 = vld [vmem:[%s219 + $0x90] sm:$0xf]
        %v281 = vld [vmem:[%s219 + $0x94] sm:$0xf]
        %v282 = vld [vmem:[%s219 + $0x98] sm:$0xf]
        %v283 = vld [vmem:[%s219 + $0x9c] sm:$0xf]
        %v284 = vld [vmem:[%s219 + $0xa0] sm:$0xf]
        %v285 = vld [vmem:[%s219 + $0xa4] sm:$0xf]
        %v286 = vld [vmem:[%s219 + $0xa8] sm:$0xf]
        %v287 = vld [vmem:[%s219 + $0xac] sm:$0xf]
        %v288 = vld [vmem:[%s219 + $0xb0] sm:$0xf]
        %v289 = vld [vmem:[%s219 + $0xb4] sm:$0xf]
        %v290 = vld [vmem:[%s219 + $0xb8] sm:$0xf]
        %v291 = vld [vmem:[%s219 + $0xbc] sm:$0xf]
        %v292 = vld [vmem:[%s219 + $0xc0] sm:$0xf]
        %v293 = vld [vmem:[%s219 + $0xc4] sm:$0xf]
        %v294 = vld [vmem:[%s219 + $0xc8] sm:$0xf]
        %v295 = vld [vmem:[%s219 + $0xcc] sm:$0xf]
        %v296 = vld [vmem:[%s219 + $0xd0] sm:$0xf]
        %v297 = vld [vmem:[%s219 + $0xd4] sm:$0xf]
        %v298 = vld [vmem:[%s219 + $0xd8] sm:$0xf]
        %v299 = vld [vmem:[%s219 + $0xdc] sm:$0xf]
        %v300 = vld [vmem:[%s219 + $0xe0] sm:$0xf]
        %v301 = vld [vmem:[%s219 + $0xe4] sm:$0xf]
        %v302 = vld [vmem:[%s219 + $0xe8] sm:$0xf]
        %v303 = vld [vmem:[%s219 + $0xec] sm:$0xf]
        %v304 = vld [vmem:[%s219 + $0xf0] sm:$0xf]
        %v305 = vld [vmem:[%s219 + $0xf4] sm:$0xf]
        %v306 = vld [vmem:[%s219 + $0xf8] sm:$0xf]
        %v307 = vld [vmem:[%s219 + $0xfc] sm:$0xf]
        %v308 = vld [vmem:[%s219 + $0x100] sm:$0xf]
        %v309 = vld [vmem:[%s219 + $0x104] sm:$0xf]
        %v310 = vld [vmem:[%s219 + $0x108] sm:$0xf]
        %v311 = vld [vmem:[%s219 + $0x10c] sm:$0xf]
        %v312 = vld [vmem:[%s219 + $0x110] sm:$0xf]
        %v313 = vld [vmem:[%s219 + $0x114] sm:$0xf]
        %v314 = vld [vmem:[%s219 + $0x118] sm:$0xf]
        %v315 = vld [vmem:[%s219 + $0x11c] sm:$0xf]
        %v316 = vld [vmem:[%s219 + $0x120] sm:$0xf]
        %v317 = vld [vmem:[%s219 + $0x124] sm:$0xf]
        %v318 = vld [vmem:[%s219 + $0x128] sm:$0xf]
        %v319 = vld [vmem:[%s219 + $0x12c] sm:$0xf]
        %v320 = vld [vmem:[%s219 + $0x130] sm:$0xf]
        %v321 = vld [vmem:[%s219 + $0x134] sm:$0xf]
        %v322 = vld [vmem:[%s219 + $0x138] sm:$0xf]
        %v323 = vld [vmem:[%s219 + $0x13c] sm:$0xf]
        %v324 = vld [vmem:[%s219 + $0x140] sm:$0xf]
        %v325 = vld [vmem:[%s219 + $0x144] sm:$0xf]
        %v326 = vld [vmem:[%s219 + $0x148] sm:$0xf]
        %v327 = vld [vmem:[%s219 + $0x14c] sm:$0xf]
        %v328 = vld [vmem:[%s219 + $0x150] sm:$0xf]
        %v329 = vld [vmem:[%s219 + $0x154] sm:$0xf]
        %v330 = vld [vmem:[%s219 + $0x158] sm:$0xf]
        %v331 = vld [vmem:[%s219 + $0x15c] sm:$0xf]
        %v332 = vld [vmem:[%s219 + $0x160] sm:$0xf]
        %v333 = vld [vmem:[%s219 + $0x164] sm:$0xf]
        %v334 = vld [vmem:[%s219 + $0x168] sm:$0xf]
        %v335 = vld [vmem:[%s219 + $0x16c] sm:$0xf]
        %v336 = vld [vmem:[%s219 + $0x170] sm:$0xf]
        %v337 = vld [vmem:[%s219 + $0x174] sm:$0xf]
        %v338 = vld [vmem:[%s219 + $0x178] sm:$0xf]
        %v339 = vld [vmem:[%s219 + $0x17c] sm:$0xf]
        %v340 = vld [vmem:[%s219 + $0x180] sm:$0xf]
        %v341 = vld [vmem:[%s219 + $0x184] sm:$0xf]
        %v342 = vld [vmem:[%s219 + $0x188] sm:$0xf]
        %v343 = vld [vmem:[%s219 + $0x18c] sm:$0xf]
        %v344 = vld [vmem:[%s219 + $0x190] sm:$0xf]
        %v345 = vld [vmem:[%s219 + $0x194] sm:$0xf]
        %v346 = vld [vmem:[%s219 + $0x198] sm:$0xf]
        %v347 = vld [vmem:[%s219 + $0x19c] sm:$0xf]
        %v348 = vld [vmem:[%s219 + $0x1a0] sm:$0xf]
        %v349 = vld [vmem:[%s219 + $0x1a4] sm:$0xf]
        %v350 = vld [vmem:[%s219 + $0x1a8] sm:$0xf]
        %v351 = vld [vmem:[%s219 + $0x1ac] sm:$0xf]
        %v352 = vld [vmem:[%s219 + $0x1b0] sm:$0xf]
        %v353 = vld [vmem:[%s219 + $0x1b4] sm:$0xf]
        %v354 = vld [vmem:[%s219 + $0x1b8] sm:$0xf]
        %v355 = vld [vmem:[%s219 + $0x1bc] sm:$0xf]
        %v356 = vld [vmem:[%s219 + $0x1c0] sm:$0xf]
        %v357 = vld [vmem:[%s219 + $0x1c4] sm:$0xf]
        %v358 = vld [vmem:[%s219 + $0x1c8] sm:$0xf]
        %v359 = vld [vmem:[%s219 + $0x1cc] sm:$0xf]
        %v360 = vld [vmem:[%s219 + $0x1d0] sm:$0xf]
        %v361 = vld [vmem:[%s219 + $0x1d4] sm:$0xf]
        %v362 = vld [vmem:[%s219 + $0x1d8] sm:$0xf]
        %v363 = vld [vmem:[%s219 + $0x1dc] sm:$0xf]
        %v364 = vld [vmem:[%s219 + $0x1e0] sm:$0xf]
        %v365 = vld [vmem:[%s219 + $0x1e4] sm:$0xf]
        %v366 = vld [vmem:[%s219 + $0x1e8] sm:$0xf]
        %v367 = vld [vmem:[%s219 + $0x1ec] sm:$0xf]
        %v368 = vld [vmem:[%s219 + $0x1f0] sm:$0xf]
        %v369 = vld [vmem:[%s219 + $0x1f4] sm:$0xf]
        %v370 = vld [vmem:[%s219 + $0x1f8] sm:$0xf]
        %v371 = vld [vmem:[%s219 + $0x1fc] sm:$0xf]
        %v373 = vlaneseq
        %v374 = vshrl.u32 %v373, 7
        %v375 = vsub.s32 0, %v374
        %v376 = vrot.slane %v242, %v375
        %v506 = vunpack.c.l.b16 %v244
        %v507 = vunpack.c.l.b16 %v245
        %v508 = vunpack.c.l.b16 %v246
        %v509 = vunpack.c.l.b16 %v247
        %v510 = vunpack.c.l.b16 %v248
        %v511 = vunpack.c.l.b16 %v249
        %v512 = vunpack.c.l.b16 %v250
        %v513 = vunpack.c.l.b16 %v251
        %v514 = vunpack.c.l.b16 %v252
        %v515 = vunpack.c.l.b16 %v253
        %v516 = vunpack.c.l.b16 %v254
        %v517 = vunpack.c.l.b16 %v255
        %v518 = vunpack.c.l.b16 %v256
        %v519 = vunpack.c.l.b16 %v257
        %v520 = vunpack.c.l.b16 %v258
        %v521 = vunpack.c.l.b16 %v259
        %v522 = vunpack.c.l.b16 %v260
        %v523 = vunpack.c.l.b16 %v261
        %v524 = vunpack.c.l.b16 %v262
        %v525 = vunpack.c.l.b16 %v263
        %v526 = vunpack.c.l.b16 %v264
        %v527 = vunpack.c.l.b16 %v265
        %v528 = vunpack.c.l.b16 %v266
        %v529 = vunpack.c.l.b16 %v267
        %v530 = vunpack.c.l.b16 %v268
        %v531 = vunpack.c.l.b16 %v269
        %v532 = vunpack.c.l.b16 %v270
        %v533 = vunpack.c.l.b16 %v271
        %v534 = vunpack.c.l.b16 %v272
        %v535 = vunpack.c.l.b16 %v273
        %v536 = vunpack.c.l.b16 %v274
        %v537 = vunpack.c.l.b16 %v275
        %v538 = vunpack.c.l.b16 %v276
        %v539 = vunpack.c.l.b16 %v277
        %v540 = vunpack.c.l.b16 %v278
        %v541 = vunpack.c.l.b16 %v279
        %v542 = vunpack.c.l.b16 %v280
        %v543 = vunpack.c.l.b16 %v281
        %v544 = vunpack.c.l.b16 %v282
        %v545 = vunpack.c.l.b16 %v283
        %v546 = vunpack.c.l.b16 %v284
        %v547 = vunpack.c.l.b16 %v285
        %v548 = vunpack.c.l.b16 %v286
        %v549 = vunpack.c.l.b16 %v287
        %v550 = vunpack.c.l.b16 %v288
        %v551 = vunpack.c.l.b16 %v289
        %v552 = vunpack.c.l.b16 %v290
        %v553 = vunpack.c.l.b16 %v291
        %v554 = vunpack.c.l.b16 %v292
        %v555 = vunpack.c.l.b16 %v293
        %v556 = vunpack.c.l.b16 %v294
        %v557 = vunpack.c.l.b16 %v295
        %v558 = vunpack.c.l.b16 %v296
        %v559 = vunpack.c.l.b16 %v297
        %v560 = vunpack.c.l.b16 %v298
        %v561 = vunpack.c.l.b16 %v299
        %v562 = vunpack.c.l.b16 %v300
        %v563 = vunpack.c.l.b16 %v301
        %v564 = vunpack.c.l.b16 %v302
        %v565 = vunpack.c.l.b16 %v303
        %v566 = vunpack.c.l.b16 %v304
        %v567 = vunpack.c.l.b16 %v305
        %v568 = vunpack.c.l.b16 %v306
        %v569 = vunpack.c.l.b16 %v307
        %v570 = vunpack.c.l.b16 %v308
        %v571 = vunpack.c.l.b16 %v309
        %v572 = vunpack.c.l.b16 %v310
        %v573 = vunpack.c.l.b16 %v311
        %v574 = vunpack.c.l.b16 %v312
        %v575 = vunpack.c.l.b16 %v313
        %v576 = vunpack.c.l.b16 %v314
        %v577 = vunpack.c.l.b16 %v315
        %v578 = vunpack.c.l.b16 %v316
        %v579 = vunpack.c.l.b16 %v317
        %v580 = vunpack.c.l.b16 %v318
        %v581 = vunpack.c.l.b16 %v319
        %v582 = vunpack.c.l.b16 %v320
        %v583 = vunpack.c.l.b16 %v321
        %v584 = vunpack.c.l.b16 %v322
        %v585 = vunpack.c.l.b16 %v323
        %v586 = vunpack.c.l.b16 %v324
        %v587 = vunpack.c.l.b16 %v325
        %v588 = vunpack.c.l.b16 %v326
        %v589 = vunpack.c.l.b16 %v327
        %v590 = vunpack.c.l.b16 %v328
        %v591 = vunpack.c.l.b16 %v329
        %v592 = vunpack.c.l.b16 %v330
        %v593 = vunpack.c.l.b16 %v331
        %v594 = vunpack.c.l.b16 %v332
        %v595 = vunpack.c.l.b16 %v333
        %v596 = vunpack.c.l.b16 %v334
        %v597 = vunpack.c.l.b16 %v335
        %v598 = vunpack.c.l.b16 %v336
        %v599 = vunpack.c.l.b16 %v337
        %v600 = vunpack.c.l.b16 %v338
        %v601 = vunpack.c.l.b16 %v339
        %v602 = vunpack.c.l.b16 %v340
        %v603 = vunpack.c.l.b16 %v341
        %v604 = vunpack.c.l.b16 %v342
        %v605 = vunpack.c.l.b16 %v343
        %v606 = vunpack.c.l.b16 %v344
        %v607 = vunpack.c.l.b16 %v345
        %v608 = vunpack.c.l.b16 %v346
        %v609 = vunpack.c.l.b16 %v347
        %v610 = vunpack.c.l.b16 %v348
        %v611 = vunpack.c.l.b16 %v349
        %v612 = vunpack.c.l.b16 %v350
        %v613 = vunpack.c.l.b16 %v351
        %v614 = vunpack.c.l.b16 %v352
        %v615 = vunpack.c.l.b16 %v353
        %v616 = vunpack.c.l.b16 %v354
        %v617 = vunpack.c.l.b16 %v355
        %v618 = vunpack.c.l.b16 %v356
        %v619 = vunpack.c.l.b16 %v357
        %v620 = vunpack.c.l.b16 %v358
        %v621 = vunpack.c.l.b16 %v359
        %v622 = vunpack.c.l.b16 %v360
        %v623 = vunpack.c.l.b16 %v361
        %v624 = vunpack.c.l.b16 %v362
        %v625 = vunpack.c.l.b16 %v363
        %v626 = vunpack.c.l.b16 %v364
        %v627 = vunpack.c.l.b16 %v365
        %v628 = vunpack.c.l.b16 %v366
        %v629 = vunpack.c.l.b16 %v367
        %v630 = vunpack.c.l.b16 %v368
        %v631 = vunpack.c.l.b16 %v369
        %v632 = vunpack.c.l.b16 %v370
        %v633 = vunpack.c.l.b16 %v371
        %v634 = vpack.c.b16 %v507, %v506
        %v635 = vpack.c.b16 %v509, %v508
        %v636 = vpack.c.b16 %v511, %v510
        %v637 = vpack.c.b16 %v513, %v512
        %v638 = vpack.c.b16 %v515, %v514
        %v639 = vpack.c.b16 %v517, %v516
        %v640 = vpack.c.b16 %v519, %v518
        %v641 = vpack.c.b16 %v521, %v520
        %v642 = vpack.c.b16 %v523, %v522
        %v643 = vpack.c.b16 %v525, %v524
        %v644 = vpack.c.b16 %v527, %v526
        %v645 = vpack.c.b16 %v529, %v528
        %v646 = vpack.c.b16 %v531, %v530
        %v647 = vpack.c.b16 %v533, %v532
        %v648 = vpack.c.b16 %v535, %v534
        %v649 = vpack.c.b16 %v537, %v536
        %v650 = vpack.c.b16 %v539, %v538
        %v651 = vpack.c.b16 %v541, %v540
        %v652 = vpack.c.b16 %v543, %v542
        %v653 = vpack.c.b16 %v545, %v544
        %v654 = vpack.c.b16 %v547, %v546
        %v655 = vpack.c.b16 %v549, %v548
        %v656 = vpack.c.b16 %v551, %v550
        %v657 = vpack.c.b16 %v553, %v552
        %v658 = vpack.c.b16 %v555, %v554
        %v659 = vpack.c.b16 %v557, %v556
        %v660 = vpack.c.b16 %v559, %v558
        %v661 = vpack.c.b16 %v561, %v560
        %v662 = vpack.c.b16 %v563, %v562
        %v663 = vpack.c.b16 %v565, %v564
        %v664 = vpack.c.b16 %v567, %v566
        %v665 = vpack.c.b16 %v569, %v568
        %v666 = vpack.c.b16 %v571, %v570
        %v667 = vpack.c.b16 %v573, %v572
        %v668 = vpack.c.b16 %v575, %v574
        %v669 = vpack.c.b16 %v577, %v576
        %v670 = vpack.c.b16 %v579, %v578
        %v671 = vpack.c.b16 %v581, %v580
        %v672 = vpack.c.b16 %v583, %v582
        %v673 = vpack.c.b16 %v585, %v584
        %v674 = vpack.c.b16 %v587, %v586
        %v675 = vpack.c.b16 %v589, %v588
        %v676 = vpack.c.b16 %v591, %v590
        %v677 = vpack.c.b16 %v593, %v592
        %v678 = vpack.c.b16 %v595, %v594
        %v679 = vpack.c.b16 %v597, %v596
        %v680 = vpack.c.b16 %v599, %v598
        %v681 = vpack.c.b16 %v601, %v600
        %v682 = vpack.c.b16 %v603, %v602
        %v683 = vpack.c.b16 %v605, %v604
        %v684 = vpack.c.b16 %v607, %v606
        %v685 = vpack.c.b16 %v609, %v608
        %v686 = vpack.c.b16 %v611, %v610
        %v687 = vpack.c.b16 %v613, %v612
        %v688 = vpack.c.b16 %v615, %v614
        %v689 = vpack.c.b16 %v617, %v616
        %v690 = vpack.c.b16 %v619, %v618
        %v691 = vpack.c.b16 %v621, %v620
        %v692 = vpack.c.b16 %v623, %v622
        %v693 = vpack.c.b16 %v625, %v624
        %v694 = vpack.c.b16 %v627, %v626
        %v695 = vpack.c.b16 %v629, %v628
        %v696 = vpack.c.b16 %v631, %v630
        %v697 = vpack.c.b16 %v633, %v632
        %v778 = vunpack.c.l.b16 %v222
        %v779 = vunpack.c.l.b16 %v223
        %v780 = vunpack.c.l.b16 %v224
        %v781 = vunpack.c.l.b16 %v225
        %v782 = vunpack.c.l.b16 %v226
        %v783 = vunpack.c.l.b16 %v227
        %v784 = vunpack.c.l.b16 %v228
        %v785 = vunpack.c.l.b16 %v229
        %v786 = vunpack.c.l.b16 %v230
        %v787 = vunpack.c.l.b16 %v231
        %v788 = vunpack.c.l.b16 %v232
        %v789 = vunpack.c.l.b16 %v233
        %v790 = vunpack.c.l.b16 %v234
        %v791 = vunpack.c.l.b16 %v235
        %v792 = vunpack.c.l.b16 %v236
        %v793 = vunpack.c.l.b16 %v237
        %v794 = vpack.c.b16 %v779, %v778
        %v795 = vpack.c.b16 %v781, %v780
        %v796 = vpack.c.b16 %v783, %v782
        %v797 = vpack.c.b16 %v785, %v784
        %v798 = vpack.c.b16 %v787, %v786
        %v799 = vpack.c.b16 %v789, %v788
        %v800 = vpack.c.b16 %v791, %v790
        %v801 = vpack.c.b16 %v793, %v792
        %810 = vmatprep.subr.bf16.mxu0 0
        %811 = vmatpush1.bf16.msra.mxu0 %v801
        %812 = vmatprep.subr.bf16.mxu0 0
        %813 = vmatpush1.bf16.msra.mxu0 %v800
        %814 = vmatprep.subr.bf16.mxu0 0
        %815 = vmatpush1.bf16.msra.mxu0 %v799
        %816 = vmatprep.subr.bf16.mxu0 0
        %817 = vmatpush1.bf16.msra.mxu0 %v798
        %818 = vmatprep.subr.bf16.mxu0 0
        %819 = vmatpush1.bf16.msra.mxu0 %v797
        %820 = vmatprep.subr.bf16.mxu0 0
        %821 = vmatpush1.bf16.msra.mxu0 %v796
        %822 = vmatprep.subr.bf16.mxu0 0
        %823 = vmatpush1.bf16.msra.mxu0 %v795
        %824 = vmatprep.subr.bf16.mxu0 0
        %825 = vmatpush1.bf16.msra.mxu0 %v794
        %826 = vmatprep.subr.bf16.mxu0 0
        %827 = vmatpush2.bf16.msra.mxu0 0
        %828 = vmatprep.subr.bf16.mxu0 0
        %829 = vmatpush2.bf16.msra.mxu0 0
        %830 = vmatprep.subr.bf16.mxu0 0
        %831 = vmatpush2.bf16.msra.mxu0 0
        %832 = vmatprep.subr.bf16.mxu0 0
        %833 = vmatpush2.bf16.msra.mxu0 0
        %834 = vmatprep.subr.bf16.mxu0 0
        %835 = vmatpush2.bf16.msra.mxu0 0
        %836 = vmatprep.subr.bf16.mxu0 0
        %837 = vmatpush2.bf16.msra.mxu0 0
        %838 = vmatprep.subr.bf16.mxu0 0
        %839 = vmatpush2.bf16.msra.mxu0 0
        %840 = vmatprep.subr.bf16.mxu0 0
        %841 = vmatpush2.bf16.msra.mxu0 0
        %842 = vmatprep.mubr.bf16.mxu0 0
        %843 = vmatmul.mubr.bf16.gmra.mxu0 %v634
        %v844 = vpop.f32.mrf.mxu0
        %v845 = vadd.f32 %v376, %v844
        %v846 = vpop.f32.mrf.mxu0
        %v847 = vpop.f32.mrf.mxu0
        %v848 = vadd.f32 %v376, %v847
        %v849 = vpop.f32.mrf.mxu0
        %850 = vmatprep.mubr.bf16.mxu0 0
        %851 = vmatmul.mubr.bf16.gmra.mxu0 %v635
        %v852 = vpop.f32.mrf.mxu0
        %v853 = vadd.f32 %v376, %v852
        %v854 = vpop.f32.mrf.mxu0
        %v855 = vpop.f32.mrf.mxu0
        %v856 = vadd.f32 %v376, %v855
        %v857 = vpop.f32.mrf.mxu0
        %858 = vmatprep.mubr.bf16.mxu0 0
        %859 = vmatmul.mubr.bf16.gmra.mxu0 %v636
        %v860 = vpop.f32.mrf.mxu0
        %v861 = vadd.f32 %v376, %v860
        %v862 = vpop.f32.mrf.mxu0
        %v863 = vpop.f32.mrf.mxu0
        %v864 = vadd.f32 %v376, %v863
        %v865 = vpop.f32.mrf.mxu0
        %866 = vmatprep.mubr.bf16.mxu0 0
        %867 = vmatmul.mubr.bf16.gmra.mxu0 %v637
        %v868 = vpop.f32.mrf.mxu0
        %v869 = vadd.f32 %v376, %v868
        %v870 = vpop.f32.mrf.mxu0
        %v871 = vpop.f32.mrf.mxu0
        %v872 = vadd.f32 %v376, %v871
        %v873 = vpop.f32.mrf.mxu0
        %874 = vmatprep.mubr.bf16.mxu0 0
        %875 = vmatmul.mubr.bf16.gmra.mxu0 %v638
        %v876 = vpop.f32.mrf.mxu0
        %v877 = vadd.f32 %v376, %v876
        %v878 = vpop.f32.mrf.mxu0
        %v879 = vpop.f32.mrf.mxu0
        %v880 = vadd.f32 %v376, %v879
        %v881 = vpop.f32.mrf.mxu0
        %882 = vmatprep.mubr.bf16.mxu0 0
        %883 = vmatmul.mubr.bf16.gmra.mxu0 %v639
        %v884 = vpop.f32.mrf.mxu0
        %v885 = vadd.f32 %v376, %v884
        %v886 = vpop.f32.mrf.mxu0
        %v887 = vpop.f32.mrf.mxu0
        %v888 = vadd.f32 %v376, %v887
        %v889 = vpop.f32.mrf.mxu0
        %890 = vmatprep.mubr.bf16.mxu0 0
        %891 = vmatmul.mubr.bf16.gmra.mxu0 %v640
        %v892 = vpop.f32.mrf.mxu0
        %v893 = vadd.f32 %v376, %v892
        %v894 = vpop.f32.mrf.mxu0
        %v895 = vpop.f32.mrf.mxu0
        %v896 = vadd.f32 %v376, %v895
        %v897 = vpop.f32.mrf.mxu0
        %898 = vmatprep.mubr.bf16.mxu0 0
        %899 = vmatmul.mubr.bf16.gmra.mxu0 %v641
        %v900 = vpop.f32.mrf.mxu0
        %v901 = vadd.f32 %v376, %v900
        %v902 = vpop.f32.mrf.mxu0
        %v903 = vpop.f32.mrf.mxu0
        %v904 = vadd.f32 %v376, %v903
        %v905 = vpop.f32.mrf.mxu0
        %906 = vmatprep.mubr.bf16.mxu0 0
        %907 = vmatmul.mubr.bf16.gmra.mxu0 %v642
        %v908 = vpop.f32.mrf.mxu0
        %v909 = vadd.f32 %v376, %v908
        %v910 = vpop.f32.mrf.mxu0
        %v911 = vpop.f32.mrf.mxu0
        %v912 = vadd.f32 %v376, %v911
        %v913 = vpop.f32.mrf.mxu0
        %914 = vmatprep.mubr.bf16.mxu0 0
        %915 = vmatmul.mubr.bf16.gmra.mxu0 %v643
        %v916 = vpop.f32.mrf.mxu0
        %v917 = vadd.f32 %v376, %v916
        %v918 = vpop.f32.mrf.mxu0
        %v919 = vpop.f32.mrf.mxu0
        %v920 = vadd.f32 %v376, %v919
        %v921 = vpop.f32.mrf.mxu0
        %922 = vmatprep.mubr.bf16.mxu0 0
        %923 = vmatmul.mubr.bf16.gmra.mxu0 %v644
        %v924 = vpop.f32.mrf.mxu0
        %v925 = vadd.f32 %v376, %v924
        %v926 = vpop.f32.mrf.mxu0
        %v927 = vpop.f32.mrf.mxu0
        %v928 = vadd.f32 %v376, %v927
        %v929 = vpop.f32.mrf.mxu0
        %930 = vmatprep.mubr.bf16.mxu0 0
        %931 = vmatmul.mubr.bf16.gmra.mxu0 %v645
        %v932 = vpop.f32.mrf.mxu0
        %v933 = vadd.f32 %v376, %v932
        %v934 = vpop.f32.mrf.mxu0
        %v935 = vpop.f32.mrf.mxu0
        %v936 = vadd.f32 %v376, %v935
        %v937 = vpop.f32.mrf.mxu0
        %938 = vmatprep.mubr.bf16.mxu0 0
        %939 = vmatmul.mubr.bf16.gmra.mxu0 %v646
        %v940 = vpop.f32.mrf.mxu0
        %v941 = vadd.f32 %v376, %v940
        %v942 = vpop.f32.mrf.mxu0
        %v943 = vpop.f32.mrf.mxu0
        %v944 = vadd.f32 %v376, %v943
        %v945 = vpop.f32.mrf.mxu0
        %946 = vmatprep.mubr.bf16.mxu0 0
        %947 = vmatmul.mubr.bf16.gmra.mxu0 %v647
        %v948 = vpop.f32.mrf.mxu0
        %v949 = vadd.f32 %v376, %v948
        %v950 = vpop.f32.mrf.mxu0
        %v951 = vpop.f32.mrf.mxu0
        %v952 = vadd.f32 %v376, %v951
        %v953 = vpop.f32.mrf.mxu0
        %954 = vmatprep.mubr.bf16.mxu0 0
        %955 = vmatmul.mubr.bf16.gmra.mxu0 %v648
        %v956 = vpop.f32.mrf.mxu0
        %v957 = vadd.f32 %v376, %v956
        %v958 = vpop.f32.mrf.mxu0
        %v959 = vpop.f32.mrf.mxu0
        %v960 = vadd.f32 %v376, %v959
        %v961 = vpop.f32.mrf.mxu0
        %962 = vmatprep.mubr.bf16.mxu0 0
        %963 = vmatmul.mubr.bf16.gmra.mxu0 %v649
        %v964 = vpop.f32.mrf.mxu0
        %v965 = vadd.f32 %v376, %v964
        %v966 = vpop.f32.mrf.mxu0
        %v967 = vpop.f32.mrf.mxu0
        %v968 = vadd.f32 %v376, %v967
        %v969 = vpop.f32.mrf.mxu0
        %970 = vmatprep.mubr.bf16.mxu0 0
        %971 = vmatmul.mubr.bf16.gmra.mxu0 %v650
        %v972 = vpop.f32.mrf.mxu0
        %v973 = vadd.f32 %v376, %v972
        %v974 = vpop.f32.mrf.mxu0
        %v975 = vpop.f32.mrf.mxu0
        %v976 = vadd.f32 %v376, %v975
        %v977 = vpop.f32.mrf.mxu0
        %978 = vmatprep.mubr.bf16.mxu0 0
        %979 = vmatmul.mubr.bf16.gmra.mxu0 %v651
        %v980 = vpop.f32.mrf.mxu0
        %v981 = vadd.f32 %v376, %v980
        %v982 = vpop.f32.mrf.mxu0
        %v983 = vpop.f32.mrf.mxu0
        %v984 = vadd.f32 %v376, %v983
        %v985 = vpop.f32.mrf.mxu0
        %986 = vmatprep.mubr.bf16.mxu0 0
        %987 = vmatmul.mubr.bf16.gmra.mxu0 %v652
        %v988 = vpop.f32.mrf.mxu0
        %v989 = vadd.f32 %v376, %v988
        %v990 = vpop.f32.mrf.mxu0
        %v991 = vpop.f32.mrf.mxu0
        %v992 = vadd.f32 %v376, %v991
        %v993 = vpop.f32.mrf.mxu0
        %994 = vmatprep.mubr.bf16.mxu0 0
        %995 = vmatmul.mubr.bf16.gmra.mxu0 %v653
        %v996 = vpop.f32.mrf.mxu0
        %v997 = vadd.f32 %v376, %v996
        %v998 = vpop.f32.mrf.mxu0
        %v999 = vpop.f32.mrf.mxu0
        %v1000 = vadd.f32 %v376, %v999
        %v1001 = vpop.f32.mrf.mxu0
        %1002 = vmatprep.mubr.bf16.mxu0 0
        %1003 = vmatmul.mubr.bf16.gmra.mxu0 %v654
        %v1004 = vpop.f32.mrf.mxu0
        %v1005 = vadd.f32 %v376, %v1004
        %v1006 = vpop.f32.mrf.mxu0
        %v1007 = vpop.f32.mrf.mxu0
        %v1008 = vadd.f32 %v376, %v1007
        %v1009 = vpop.f32.mrf.mxu0
        %1010 = vmatprep.mubr.bf16.mxu0 0
        %1011 = vmatmul.mubr.bf16.gmra.mxu0 %v655
        %v1012 = vpop.f32.mrf.mxu0
        %v1013 = vadd.f32 %v376, %v1012
        %v1014 = vpop.f32.mrf.mxu0
        %v1015 = vpop.f32.mrf.mxu0
        %v1016 = vadd.f32 %v376, %v1015
        %v1017 = vpop.f32.mrf.mxu0
        %1018 = vmatprep.mubr.bf16.mxu0 0
        %1019 = vmatmul.mubr.bf16.gmra.mxu0 %v656
        %v1020 = vpop.f32.mrf.mxu0
        %v1021 = vadd.f32 %v376, %v1020
        %v1022 = vpop.f32.mrf.mxu0
        %v1023 = vpop.f32.mrf.mxu0
        %v1024 = vadd.f32 %v376, %v1023
        %v1025 = vpop.f32.mrf.mxu0
        %1026 = vmatprep.mubr.bf16.mxu0 0
        %1027 = vmatmul.mubr.bf16.gmra.mxu0 %v657
        %v1028 = vpop.f32.mrf.mxu0
        %v1029 = vadd.f32 %v376, %v1028
        %v1030 = vpop.f32.mrf.mxu0
        %v1031 = vpop.f32.mrf.mxu0
        %v1032 = vadd.f32 %v376, %v1031
        %v1033 = vpop.f32.mrf.mxu0
        %1034 = vmatprep.mubr.bf16.mxu0 0
        %1035 = vmatmul.mubr.bf16.gmra.mxu0 %v658
        %v1036 = vpop.f32.mrf.mxu0
        %v1037 = vadd.f32 %v376, %v1036
        %v1038 = vpop.f32.mrf.mxu0
        %v1039 = vpop.f32.mrf.mxu0
        %v1040 = vadd.f32 %v376, %v1039
        %v1041 = vpop.f32.mrf.mxu0
        %1042 = vmatprep.mubr.bf16.mxu0 0
        %1043 = vmatmul.mubr.bf16.gmra.mxu0 %v659
        %v1044 = vpop.f32.mrf.mxu0
        %v1045 = vadd.f32 %v376, %v1044
        %v1046 = vpop.f32.mrf.mxu0
        %v1047 = vpop.f32.mrf.mxu0
        %v1048 = vadd.f32 %v376, %v1047
        %v1049 = vpop.f32.mrf.mxu0
        %1050 = vmatprep.mubr.bf16.mxu0 0
        %1051 = vmatmul.mubr.bf16.gmra.mxu0 %v660
        %v1052 = vpop.f32.mrf.mxu0
        %v1053 = vadd.f32 %v376, %v1052
        %v1054 = vpop.f32.mrf.mxu0
        %v1055 = vpop.f32.mrf.mxu0
        %v1056 = vadd.f32 %v376, %v1055
        %v1057 = vpop.f32.mrf.mxu0
        %1058 = vmatprep.mubr.bf16.mxu0 0
        %1059 = vmatmul.mubr.bf16.gmra.mxu0 %v661
        %v1060 = vpop.f32.mrf.mxu0
        %v1061 = vadd.f32 %v376, %v1060
        %v1062 = vpop.f32.mrf.mxu0
        %v1063 = vpop.f32.mrf.mxu0
        %v1064 = vadd.f32 %v376, %v1063
        %v1065 = vpop.f32.mrf.mxu0
        %1066 = vmatprep.mubr.bf16.mxu0 0
        %1067 = vmatmul.mubr.bf16.gmra.mxu0 %v662
        %v1068 = vpop.f32.mrf.mxu0
        %v1069 = vadd.f32 %v376, %v1068
        %v1070 = vpop.f32.mrf.mxu0
        %v1071 = vpop.f32.mrf.mxu0
        %v1072 = vadd.f32 %v376, %v1071
        %v1073 = vpop.f32.mrf.mxu0
        %1074 = vmatprep.mubr.bf16.mxu0 0
        %1075 = vmatmul.mubr.bf16.gmra.mxu0 %v663
        %v1076 = vpop.f32.mrf.mxu0
        %v1077 = vadd.f32 %v376, %v1076
        %v1078 = vpop.f32.mrf.mxu0
        %v1079 = vpop.f32.mrf.mxu0
        %v1080 = vadd.f32 %v376, %v1079
        %v1081 = vpop.f32.mrf.mxu0
        %1082 = vmatprep.mubr.bf16.mxu0 0
        %1083 = vmatmul.mubr.bf16.gmra.mxu0 %v664
        %v1084 = vpop.f32.mrf.mxu0
        %v1085 = vadd.f32 %v376, %v1084
        %v1086 = vpop.f32.mrf.mxu0
        %v1087 = vpop.f32.mrf.mxu0
        %v1088 = vadd.f32 %v376, %v1087
        %v1089 = vpop.f32.mrf.mxu0
        %1090 = vmatprep.mubr.bf16.mxu0 0
        %1091 = vmatmul.mubr.bf16.gmra.mxu0 %v665
        %v1092 = vpop.f32.mrf.mxu0
        %v1093 = vadd.f32 %v376, %v1092
        %v1094 = vpop.f32.mrf.mxu0
        %v1095 = vpop.f32.mrf.mxu0
        %v1096 = vadd.f32 %v376, %v1095
        %v1097 = vpop.f32.mrf.mxu0
        %1098 = vmatprep.mubr.bf16.mxu0 0
        %1099 = vmatmul.mubr.bf16.gmra.mxu0 %v666
        %v1100 = vpop.f32.mrf.mxu0
        %v1101 = vadd.f32 %v376, %v1100
        %v1102 = vpop.f32.mrf.mxu0
        %v1103 = vpop.f32.mrf.mxu0
        %v1104 = vadd.f32 %v376, %v1103
        %v1105 = vpop.f32.mrf.mxu0
        %1106 = vmatprep.mubr.bf16.mxu0 0
        %1107 = vmatmul.mubr.bf16.gmra.mxu0 %v667
        %v1108 = vpop.f32.mrf.mxu0
        %v1109 = vadd.f32 %v376, %v1108
        %v1110 = vpop.f32.mrf.mxu0
        %v1111 = vpop.f32.mrf.mxu0
        %v1112 = vadd.f32 %v376, %v1111
        %v1113 = vpop.f32.mrf.mxu0
        %1114 = vmatprep.mubr.bf16.mxu0 0
        %1115 = vmatmul.mubr.bf16.gmra.mxu0 %v668
        %v1116 = vpop.f32.mrf.mxu0
        %v1117 = vadd.f32 %v376, %v1116
        %v1118 = vpop.f32.mrf.mxu0
        %v1119 = vpop.f32.mrf.mxu0
        %v1120 = vadd.f32 %v376, %v1119
        %v1121 = vpop.f32.mrf.mxu0
        %1122 = vmatprep.mubr.bf16.mxu0 0
        %1123 = vmatmul.mubr.bf16.gmra.mxu0 %v669
        %v1124 = vpop.f32.mrf.mxu0
        %v1125 = vadd.f32 %v376, %v1124
        %v1126 = vpop.f32.mrf.mxu0
        %v1127 = vpop.f32.mrf.mxu0
        %v1128 = vadd.f32 %v376, %v1127
        %v1129 = vpop.f32.mrf.mxu0
        %1130 = vmatprep.mubr.bf16.mxu0 0
        %1131 = vmatmul.mubr.bf16.gmra.mxu0 %v670
        %v1132 = vpop.f32.mrf.mxu0
        %v1133 = vadd.f32 %v376, %v1132
        %v1134 = vpop.f32.mrf.mxu0
        %v1135 = vpop.f32.mrf.mxu0
        %v1136 = vadd.f32 %v376, %v1135
        %v1137 = vpop.f32.mrf.mxu0
        %1138 = vmatprep.mubr.bf16.mxu0 0
        %1139 = vmatmul.mubr.bf16.gmra.mxu0 %v671
        %v1140 = vpop.f32.mrf.mxu0
        %v1141 = vadd.f32 %v376, %v1140
        %v1142 = vpop.f32.mrf.mxu0
        %v1143 = vpop.f32.mrf.mxu0
        %v1144 = vadd.f32 %v376, %v1143
        %v1145 = vpop.f32.mrf.mxu0
        %1146 = vmatprep.mubr.bf16.mxu0 0
        %1147 = vmatmul.mubr.bf16.gmra.mxu0 %v672
        %v1148 = vpop.f32.mrf.mxu0
        %v1149 = vadd.f32 %v376, %v1148
        %v1150 = vpop.f32.mrf.mxu0
        %v1151 = vpop.f32.mrf.mxu0
        %v1152 = vadd.f32 %v376, %v1151
        %v1153 = vpop.f32.mrf.mxu0
        %1154 = vmatprep.mubr.bf16.mxu0 0
        %1155 = vmatmul.mubr.bf16.gmra.mxu0 %v673
        %v1156 = vpop.f32.mrf.mxu0
        %v1157 = vadd.f32 %v376, %v1156
        %v1158 = vpop.f32.mrf.mxu0
        %v1159 = vpop.f32.mrf.mxu0
        %v1160 = vadd.f32 %v376, %v1159
        %v1161 = vpop.f32.mrf.mxu0
        %1162 = vmatprep.mubr.bf16.mxu0 0
        %1163 = vmatmul.mubr.bf16.gmra.mxu0 %v674
        %v1164 = vpop.f32.mrf.mxu0
        %v1165 = vadd.f32 %v376, %v1164
        %v1166 = vpop.f32.mrf.mxu0
        %v1167 = vpop.f32.mrf.mxu0
        %v1168 = vadd.f32 %v376, %v1167
        %v1169 = vpop.f32.mrf.mxu0
        %1170 = vmatprep.mubr.bf16.mxu0 0
        %1171 = vmatmul.mubr.bf16.gmra.mxu0 %v675
        %v1172 = vpop.f32.mrf.mxu0
        %v1173 = vadd.f32 %v376, %v1172
        %v1174 = vpop.f32.mrf.mxu0
        %v1175 = vpop.f32.mrf.mxu0
        %v1176 = vadd.f32 %v376, %v1175
        %v1177 = vpop.f32.mrf.mxu0
        %1178 = vmatprep.mubr.bf16.mxu0 0
        %1179 = vmatmul.mubr.bf16.gmra.mxu0 %v676
        %v1180 = vpop.f32.mrf.mxu0
        %v1181 = vadd.f32 %v376, %v1180
        %v1182 = vpop.f32.mrf.mxu0
        %v1183 = vpop.f32.mrf.mxu0
        %v1184 = vadd.f32 %v376, %v1183
        %v1185 = vpop.f32.mrf.mxu0
        %1186 = vmatprep.mubr.bf16.mxu0 0
        %1187 = vmatmul.mubr.bf16.gmra.mxu0 %v677
        %v1188 = vpop.f32.mrf.mxu0
        %v1189 = vadd.f32 %v376, %v1188
        %v1190 = vpop.f32.mrf.mxu0
        %v1191 = vpop.f32.mrf.mxu0
        %v1192 = vadd.f32 %v376, %v1191
        %v1193 = vpop.f32.mrf.mxu0
        %1194 = vmatprep.mubr.bf16.mxu0 0
        %1195 = vmatmul.mubr.bf16.gmra.mxu0 %v678
        %v1196 = vpop.f32.mrf.mxu0
        %v1197 = vadd.f32 %v376, %v1196
        %v1198 = vpop.f32.mrf.mxu0
        %v1199 = vpop.f32.mrf.mxu0
        %v1200 = vadd.f32 %v376, %v1199
        %v1201 = vpop.f32.mrf.mxu0
        %1202 = vmatprep.mubr.bf16.mxu0 0
        %1203 = vmatmul.mubr.bf16.gmra.mxu0 %v679
        %v1204 = vpop.f32.mrf.mxu0
        %v1205 = vadd.f32 %v376, %v1204
        %v1206 = vpop.f32.mrf.mxu0
        %v1207 = vpop.f32.mrf.mxu0
        %v1208 = vadd.f32 %v376, %v1207
        %v1209 = vpop.f32.mrf.mxu0
        %1210 = vmatprep.mubr.bf16.mxu0 0
        %1211 = vmatmul.mubr.bf16.gmra.mxu0 %v680
        %v1212 = vpop.f32.mrf.mxu0
        %v1213 = vadd.f32 %v376, %v1212
        %v1214 = vpop.f32.mrf.mxu0
        %v1215 = vpop.f32.mrf.mxu0
        %v1216 = vadd.f32 %v376, %v1215
        %v1217 = vpop.f32.mrf.mxu0
        %1218 = vmatprep.mubr.bf16.mxu0 0
        %1219 = vmatmul.mubr.bf16.gmra.mxu0 %v681
        %v1220 = vpop.f32.mrf.mxu0
        %v1221 = vadd.f32 %v376, %v1220
        %v1222 = vpop.f32.mrf.mxu0
        %v1223 = vpop.f32.mrf.mxu0
        %v1224 = vadd.f32 %v376, %v1223
        %v1225 = vpop.f32.mrf.mxu0
        %1226 = vmatprep.mubr.bf16.mxu0 0
        %1227 = vmatmul.mubr.bf16.gmra.mxu0 %v682
        %v1228 = vpop.f32.mrf.mxu0
        %v1229 = vadd.f32 %v376, %v1228
        %v1230 = vpop.f32.mrf.mxu0
        %v1231 = vpop.f32.mrf.mxu0
        %v1232 = vadd.f32 %v376, %v1231
        %v1233 = vpop.f32.mrf.mxu0
        %1234 = vmatprep.mubr.bf16.mxu0 0
        %1235 = vmatmul.mubr.bf16.gmra.mxu0 %v683
        %v1236 = vpop.f32.mrf.mxu0
        %v1237 = vadd.f32 %v376, %v1236
        %v1238 = vpop.f32.mrf.mxu0
        %v1239 = vpop.f32.mrf.mxu0
        %v1240 = vadd.f32 %v376, %v1239
        %v1241 = vpop.f32.mrf.mxu0
        %1242 = vmatprep.mubr.bf16.mxu0 0
        %1243 = vmatmul.mubr.bf16.gmra.mxu0 %v684
        %v1244 = vpop.f32.mrf.mxu0
        %v1245 = vadd.f32 %v376, %v1244
        %v1246 = vpop.f32.mrf.mxu0
        %v1247 = vpop.f32.mrf.mxu0
        %v1248 = vadd.f32 %v376, %v1247
        %v1249 = vpop.f32.mrf.mxu0
        %1250 = vmatprep.mubr.bf16.mxu0 0
        %1251 = vmatmul.mubr.bf16.gmra.mxu0 %v685
        %v1252 = vpop.f32.mrf.mxu0
        %v1253 = vadd.f32 %v376, %v1252
        %v1254 = vpop.f32.mrf.mxu0
        %v1255 = vpop.f32.mrf.mxu0
        %v1256 = vadd.f32 %v376, %v1255
        %v1257 = vpop.f32.mrf.mxu0
        %1258 = vmatprep.mubr.bf16.mxu0 0
        %1259 = vmatmul.mubr.bf16.gmra.mxu0 %v686
        %v1260 = vpop.f32.mrf.mxu0
        %v1261 = vadd.f32 %v376, %v1260
        %v1262 = vpop.f32.mrf.mxu0
        %v1263 = vpop.f32.mrf.mxu0
        %v1264 = vadd.f32 %v376, %v1263
        %v1265 = vpop.f32.mrf.mxu0
        %1266 = vmatprep.mubr.bf16.mxu0 0
        %1267 = vmatmul.mubr.bf16.gmra.mxu0 %v687
        %v1268 = vpop.f32.mrf.mxu0
        %v1269 = vadd.f32 %v376, %v1268
        %v1270 = vpop.f32.mrf.mxu0
        %v1271 = vpop.f32.mrf.mxu0
        %v1272 = vadd.f32 %v376, %v1271
        %v1273 = vpop.f32.mrf.mxu0
        %1274 = vmatprep.mubr.bf16.mxu0 0
        %1275 = vmatmul.mubr.bf16.gmra.mxu0 %v688
        %v1276 = vpop.f32.mrf.mxu0
        %v1277 = vadd.f32 %v376, %v1276
        %v1278 = vpop.f32.mrf.mxu0
        %v1279 = vpop.f32.mrf.mxu0
        %v1280 = vadd.f32 %v376, %v1279
        %v1281 = vpop.f32.mrf.mxu0
        %1282 = vmatprep.mubr.bf16.mxu0 0
        %1283 = vmatmul.mubr.bf16.gmra.mxu0 %v689
        %v1284 = vpop.f32.mrf.mxu0
        %v1285 = vadd.f32 %v376, %v1284
        %v1286 = vpop.f32.mrf.mxu0
        %v1287 = vpop.f32.mrf.mxu0
        %v1288 = vadd.f32 %v376, %v1287
        %v1289 = vpop.f32.mrf.mxu0
        %1290 = vmatprep.mubr.bf16.mxu0 0
        %1291 = vmatmul.mubr.bf16.gmra.mxu0 %v690
        %v1292 = vpop.f32.mrf.mxu0
        %v1293 = vadd.f32 %v376, %v1292
        %v1294 = vpop.f32.mrf.mxu0
        %v1295 = vpop.f32.mrf.mxu0
        %v1296 = vadd.f32 %v376, %v1295
        %v1297 = vpop.f32.mrf.mxu0
        %1298 = vmatprep.mubr.bf16.mxu0 0
        %1299 = vmatmul.mubr.bf16.gmra.mxu0 %v691
        %v1300 = vpop.f32.mrf.mxu0
        %v1301 = vadd.f32 %v376, %v1300
        %v1302 = vpop.f32.mrf.mxu0
        %v1303 = vpop.f32.mrf.mxu0
        %v1304 = vadd.f32 %v376, %v1303
        %v1305 = vpop.f32.mrf.mxu0
        %1306 = vmatprep.mubr.bf16.mxu0 0
        %1307 = vmatmul.mubr.bf16.gmra.mxu0 %v692
        %v1308 = vpop.f32.mrf.mxu0
        %v1309 = vadd.f32 %v376, %v1308
        %v1310 = vpop.f32.mrf.mxu0
        %v1311 = vpop.f32.mrf.mxu0
        %v1312 = vadd.f32 %v376, %v1311
        %v1313 = vpop.f32.mrf.mxu0
        %1314 = vmatprep.mubr.bf16.mxu0 0
        %1315 = vmatmul.mubr.bf16.gmra.mxu0 %v693
        %v1316 = vpop.f32.mrf.mxu0
        %v1317 = vadd.f32 %v376, %v1316
        %v1318 = vpop.f32.mrf.mxu0
        %v1319 = vpop.f32.mrf.mxu0
        %v1320 = vadd.f32 %v376, %v1319
        %v1321 = vpop.f32.mrf.mxu0
        %1322 = vmatprep.mubr.bf16.mxu0 0
        %1323 = vmatmul.mubr.bf16.gmra.mxu0 %v694
        %v1324 = vpop.f32.mrf.mxu0
        %v1325 = vadd.f32 %v376, %v1324
        %v1326 = vpop.f32.mrf.mxu0
        %v1327 = vpop.f32.mrf.mxu0
        %v1328 = vadd.f32 %v376, %v1327
        %v1329 = vpop.f32.mrf.mxu0
        %1330 = vmatprep.mubr.bf16.mxu0 0
        %1331 = vmatmul.mubr.bf16.gmra.mxu0 %v695
        %v1332 = vpop.f32.mrf.mxu0
        %v1333 = vadd.f32 %v376, %v1332
        %v1334 = vpop.f32.mrf.mxu0
        %v1335 = vpop.f32.mrf.mxu0
        %v1336 = vadd.f32 %v376, %v1335
        %v1337 = vpop.f32.mrf.mxu0
        %1338 = vmatprep.mubr.bf16.mxu0 0
        %1339 = vmatmul.mubr.bf16.gmra.mxu0 %v696
        %v1340 = vpop.f32.mrf.mxu0
        %v1341 = vadd.f32 %v376, %v1340
        %v1342 = vpop.f32.mrf.mxu0
        %v1343 = vpop.f32.mrf.mxu0
        %v1344 = vadd.f32 %v376, %v1343
        %v1345 = vpop.f32.mrf.mxu0
        %1346 = vmatprep.mubr.bf16.mxu0 0
        %1347 = vmatmul.mubr.bf16.gmra.mxu0 %v697
        %v1348 = vpop.f32.mrf.mxu0
        %v1349 = vadd.f32 %v376, %v1348
        %v1350 = vpop.f32.mrf.mxu0
        %v1351 = vpop.f32.mrf.mxu0
        %v1352 = vadd.f32 %v376, %v1351
        %v1353 = vpop.f32.mrf.mxu0
        %1354 = vdwg.mxu0
        %v1355 = vmax.f32 %v845, 0.0
        %v1356 = vmax.f32 %v848, 0.0
        %v1357 = vmax.f32 %v853, 0.0
        %v1358 = vmax.f32 %v856, 0.0
        %v1359 = vmax.f32 %v861, 0.0
        %v1360 = vmax.f32 %v864, 0.0
        %v1361 = vmax.f32 %v869, 0.0
        %v1362 = vmax.f32 %v872, 0.0
        %v1363 = vmax.f32 %v877, 0.0
        %v1364 = vmax.f32 %v880, 0.0
        %v1365 = vmax.f32 %v885, 0.0
        %v1366 = vmax.f32 %v888, 0.0
        %v1367 = vmax.f32 %v893, 0.0
        %v1368 = vmax.f32 %v896, 0.0
        %v1369 = vmax.f32 %v901, 0.0
        %v1370 = vmax.f32 %v904, 0.0
        %v1371 = vmax.f32 %v909, 0.0
        %v1372 = vmax.f32 %v912, 0.0
        %v1373 = vmax.f32 %v917, 0.0
        %v1374 = vmax.f32 %v920, 0.0
        %v1375 = vmax.f32 %v925, 0.0
        %v1376 = vmax.f32 %v928, 0.0
        %v1377 = vmax.f32 %v933, 0.0
        %v1378 = vmax.f32 %v936, 0.0
        %v1379 = vmax.f32 %v941, 0.0
        %v1380 = vmax.f32 %v944, 0.0
        %v1381 = vmax.f32 %v949, 0.0
        %v1382 = vmax.f32 %v952, 0.0
        %v1383 = vmax.f32 %v957, 0.0
        %v1384 = vmax.f32 %v960, 0.0
        %v1385 = vmax.f32 %v965, 0.0
        %v1386 = vmax.f32 %v968, 0.0
        %v1387 = vmax.f32 %v973, 0.0
        %v1388 = vmax.f32 %v976, 0.0
        %v1389 = vmax.f32 %v981, 0.0
        %v1390 = vmax.f32 %v984, 0.0
        %v1391 = vmax.f32 %v989, 0.0
        %v1392 = vmax.f32 %v992, 0.0
        %v1393 = vmax.f32 %v997, 0.0
        %v1394 = vmax.f32 %v1000, 0.0
        %v1395 = vmax.f32 %v1005, 0.0
        %v1396 = vmax.f32 %v1008, 0.0
        %v1397 = vmax.f32 %v1013, 0.0
        %v1398 = vmax.f32 %v1016, 0.0
        %v1399 = vmax.f32 %v1021, 0.0
        %v1400 = vmax.f32 %v1024, 0.0
        %v1401 = vmax.f32 %v1029, 0.0
        %v1402 = vmax.f32 %v1032, 0.0
        %v1403 = vmax.f32 %v1037, 0.0
        %v1404 = vmax.f32 %v1040, 0.0
        %v1405 = vmax.f32 %v1045, 0.0
        %v1406 = vmax.f32 %v1048, 0.0
        %v1407 = vmax.f32 %v1053, 0.0
        %v1408 = vmax.f32 %v1056, 0.0
        %v1409 = vmax.f32 %v1061, 0.0
        %v1410 = vmax.f32 %v1064, 0.0
        %v1411 = vmax.f32 %v1069, 0.0
        %v1412 = vmax.f32 %v1072, 0.0
        %v1413 = vmax.f32 %v1077, 0.0
        %v1414 = vmax.f32 %v1080, 0.0
        %v1415 = vmax.f32 %v1085, 0.0
        %v1416 = vmax.f32 %v1088, 0.0
        %v1417 = vmax.f32 %v1093, 0.0
        %v1418 = vmax.f32 %v1096, 0.0
        %v1419 = vmax.f32 %v1101, 0.0
        %v1420 = vmax.f32 %v1104, 0.0
        %v1421 = vmax.f32 %v1109, 0.0
        %v1422 = vmax.f32 %v1112, 0.0
        %v1423 = vmax.f32 %v1117, 0.0
        %v1424 = vmax.f32 %v1120, 0.0
        %v1425 = vmax.f32 %v1125, 0.0
        %v1426 = vmax.f32 %v1128, 0.0
        %v1427 = vmax.f32 %v1133, 0.0
        %v1428 = vmax.f32 %v1136, 0.0
        %v1429 = vmax.f32 %v1141, 0.0
        %v1430 = vmax.f32 %v1144, 0.0
        %v1431 = vmax.f32 %v1149, 0.0
        %v1432 = vmax.f32 %v1152, 0.0
        %v1433 = vmax.f32 %v1157, 0.0
        %v1434 = vmax.f32 %v1160, 0.0
        %v1435 = vmax.f32 %v1165, 0.0
        %v1436 = vmax.f32 %v1168, 0.0
        %v1437 = vmax.f32 %v1173, 0.0
        %v1438 = vmax.f32 %v1176, 0.0
        %v1439 = vmax.f32 %v1181, 0.0
        %v1440 = vmax.f32 %v1184, 0.0
        %v1441 = vmax.f32 %v1189, 0.0
        %v1442 = vmax.f32 %v1192, 0.0
        %v1443 = vmax.f32 %v1197, 0.0
        %v1444 = vmax.f32 %v1200, 0.0
        %v1445 = vmax.f32 %v1205, 0.0
        %v1446 = vmax.f32 %v1208, 0.0
        %v1447 = vmax.f32 %v1213, 0.0
        %v1448 = vmax.f32 %v1216, 0.0
        %v1449 = vmax.f32 %v1221, 0.0
        %v1450 = vmax.f32 %v1224, 0.0
        %v1451 = vmax.f32 %v1229, 0.0
        %v1452 = vmax.f32 %v1232, 0.0
        %v1453 = vmax.f32 %v1237, 0.0
        %v1454 = vmax.f32 %v1240, 0.0
        %v1455 = vmax.f32 %v1245, 0.0
        %v1456 = vmax.f32 %v1248, 0.0
        %v1457 = vmax.f32 %v1253, 0.0
        %v1458 = vmax.f32 %v1256, 0.0
        %v1459 = vmax.f32 %v1261, 0.0
        %v1460 = vmax.f32 %v1264, 0.0
        %v1461 = vmax.f32 %v1269, 0.0
        %v1462 = vmax.f32 %v1272, 0.0
        %v1463 = vmax.f32 %v1277, 0.0
        %v1464 = vmax.f32 %v1280, 0.0
        %v1465 = vmax.f32 %v1285, 0.0
        %v1466 = vmax.f32 %v1288, 0.0
        %v1467 = vmax.f32 %v1293, 0.0
        %v1468 = vmax.f32 %v1296, 0.0
        %v1469 = vmax.f32 %v1301, 0.0
        %v1470 = vmax.f32 %v1304, 0.0
        %v1471 = vmax.f32 %v1309, 0.0
        %v1472 = vmax.f32 %v1312, 0.0
        %v1473 = vmax.f32 %v1317, 0.0
        %v1474 = vmax.f32 %v1320, 0.0
        %v1475 = vmax.f32 %v1325, 0.0
        %v1476 = vmax.f32 %v1328, 0.0
        %v1477 = vmax.f32 %v1333, 0.0
        %v1478 = vmax.f32 %v1336, 0.0
        %v1479 = vmax.f32 %v1341, 0.0
        %v1480 = vmax.f32 %v1344, 0.0
        %v1481 = vmax.f32 %v1349, 0.0
        %v1482 = vmax.f32 %v1352, 0.0
        %v1483 = vpack.c.bf16 %v1356, %v1355
        %v1484 = vpack.c.bf16 %v1358, %v1357
        %v1485 = vpack.c.bf16 %v1360, %v1359
        %v1486 = vpack.c.bf16 %v1362, %v1361
        %v1487 = vpack.c.bf16 %v1364, %v1363
        %v1488 = vpack.c.bf16 %v1366, %v1365
        %v1489 = vpack.c.bf16 %v1368, %v1367
        %v1490 = vpack.c.bf16 %v1370, %v1369
        %v1491 = vpack.c.bf16 %v1372, %v1371
        %v1492 = vpack.c.bf16 %v1374, %v1373
        %v1493 = vpack.c.bf16 %v1376, %v1375
        %v1494 = vpack.c.bf16 %v1378, %v1377
        %v1495 = vpack.c.bf16 %v1380, %v1379
        %v1496 = vpack.c.bf16 %v1382, %v1381
        %v1497 = vpack.c.bf16 %v1384, %v1383
        %v1498 = vpack.c.bf16 %v1386, %v1385
        %v1499 = vpack.c.bf16 %v1388, %v1387
        %v1500 = vpack.c.bf16 %v1390, %v1389
        %v1501 = vpack.c.bf16 %v1392, %v1391
        %v1502 = vpack.c.bf16 %v1394, %v1393
        %v1503 = vpack.c.bf16 %v1396, %v1395
        %v1504 = vpack.c.bf16 %v1398, %v1397
        %v1505 = vpack.c.bf16 %v1400, %v1399
        %v1506 = vpack.c.bf16 %v1402, %v1401
        %v1507 = vpack.c.bf16 %v1404, %v1403
        %v1508 = vpack.c.bf16 %v1406, %v1405
        %v1509 = vpack.c.bf16 %v1408, %v1407
        %v1510 = vpack.c.bf16 %v1410, %v1409
        %v1511 = vpack.c.bf16 %v1412, %v1411
        %v1512 = vpack.c.bf16 %v1414, %v1413
        %v1513 = vpack.c.bf16 %v1416, %v1415
        %v1514 = vpack.c.bf16 %v1418, %v1417
        %v1515 = vpack.c.bf16 %v1420, %v1419
        %v1516 = vpack.c.bf16 %v1422, %v1421
        %v1517 = vpack.c.bf16 %v1424, %v1423
        %v1518 = vpack.c.bf16 %v1426, %v1425
        %v1519 = vpack.c.bf16 %v1428, %v1427
        %v1520 = vpack.c.bf16 %v1430, %v1429
        %v1521 = vpack.c.bf16 %v1432, %v1431
        %v1522 = vpack.c.bf16 %v1434, %v1433
        %v1523 = vpack.c.bf16 %v1436, %v1435
        %v1524 = vpack.c.bf16 %v1438, %v1437
        %v1525 = vpack.c.bf16 %v1440, %v1439
        %v1526 = vpack.c.bf16 %v1442, %v1441
        %v1527 = vpack.c.bf16 %v1444, %v1443
        %v1528 = vpack.c.bf16 %v1446, %v1445
        %v1529 = vpack.c.bf16 %v1448, %v1447
        %v1530 = vpack.c.bf16 %v1450, %v1449
        %v1531 = vpack.c.bf16 %v1452, %v1451
        %v1532 = vpack.c.bf16 %v1454, %v1453
        %v1533 = vpack.c.bf16 %v1456, %v1455
        %v1534 = vpack.c.bf16 %v1458, %v1457
        %v1535 = vpack.c.bf16 %v1460, %v1459
        %v1536 = vpack.c.bf16 %v1462, %v1461
        %v1537 = vpack.c.bf16 %v1464, %v1463
        %v1538 = vpack.c.bf16 %v1466, %v1465
        %v1539 = vpack.c.bf16 %v1468, %v1467
        %v1540 = vpack.c.bf16 %v1470, %v1469
        %v1541 = vpack.c.bf16 %v1472, %v1471
        %v1542 = vpack.c.bf16 %v1474, %v1473
        %v1543 = vpack.c.bf16 %v1476, %v1475
        %v1544 = vpack.c.bf16 %v1478, %v1477
        %v1545 = vpack.c.bf16 %v1480, %v1479
        %v1546 = vpack.c.bf16 %v1482, %v1481
        %v1551 = vunpack.c.l.b16 %v238
        %v1552 = vunpack.c.l.b16 %v239
        %v1553 = vunpack.c.l.b16 %v240
        %v1554 = vunpack.c.l.b16 %v241
        %v1555 = vpack.c.b16 %v1552, %v1551
        %v1556 = vpack.c.b16 %v1554, %v1553
        %vm1559 = vcmask 261120
        %v1561 = vsel %vm1559, %v1483, 0
        %v1564 = vsel %vm1559, %v1484, 0
        %v1567 = vsel %vm1559, %v1485, 0
        %v1570 = vsel %vm1559, %v1486, 0
        %v1573 = vsel %vm1559, %v1487, 0
        %v1576 = vsel %vm1559, %v1488, 0
        %v1579 = vsel %vm1559, %v1489, 0
        %v1582 = vsel %vm1559, %v1490, 0
        %v1585 = vsel %vm1559, %v1491, 0
        %v1588 = vsel %vm1559, %v1492, 0
        %v1591 = vsel %vm1559, %v1493, 0
        %v1594 = vsel %vm1559, %v1494, 0
        %v1597 = vsel %vm1559, %v1495, 0
        %v1600 = vsel %vm1559, %v1496, 0
        %v1603 = vsel %vm1559, %v1497, 0
        %v1606 = vsel %vm1559, %v1498, 0
        %v1609 = vsel %vm1559, %v1499, 0
        %v1612 = vsel %vm1559, %v1500, 0
        %v1615 = vsel %vm1559, %v1501, 0
        %v1618 = vsel %vm1559, %v1502, 0
        %v1621 = vsel %vm1559, %v1503, 0
        %v1624 = vsel %vm1559, %v1504, 0
        %v1627 = vsel %vm1559, %v1505, 0
        %v1630 = vsel %vm1559, %v1506, 0
        %v1633 = vsel %vm1559, %v1507, 0
        %v1636 = vsel %vm1559, %v1508, 0
        %v1639 = vsel %vm1559, %v1509, 0
        %v1642 = vsel %vm1559, %v1510, 0
        %v1645 = vsel %vm1559, %v1511, 0
        %v1648 = vsel %vm1559, %v1512, 0
        %v1651 = vsel %vm1559, %v1513, 0
        %v1654 = vsel %vm1559, %v1514, 0
        %v1657 = vsel %vm1559, %v1515, 0
        %v1660 = vsel %vm1559, %v1516, 0
        %v1663 = vsel %vm1559, %v1517, 0
        %v1666 = vsel %vm1559, %v1518, 0
        %v1669 = vsel %vm1559, %v1519, 0
        %v1672 = vsel %vm1559, %v1520, 0
        %v1675 = vsel %vm1559, %v1521, 0
        %v1678 = vsel %vm1559, %v1522, 0
        %v1681 = vsel %vm1559, %v1523, 0
        %v1684 = vsel %vm1559, %v1524, 0
        %v1687 = vsel %vm1559, %v1525, 0
        %v1690 = vsel %vm1559, %v1526, 0
        %v1693 = vsel %vm1559, %v1527, 0
        %v1696 = vsel %vm1559, %v1528, 0
        %v1699 = vsel %vm1559, %v1529, 0
        %v1702 = vsel %vm1559, %v1530, 0
        %v1705 = vsel %vm1559, %v1531, 0
        %v1708 = vsel %vm1559, %v1532, 0
        %v1711 = vsel %vm1559, %v1533, 0
        %v1714 = vsel %vm1559, %v1534, 0
        %v1717 = vsel %vm1559, %v1535, 0
        %v1720 = vsel %vm1559, %v1536, 0
        %v1723 = vsel %vm1559, %v1537, 0
        %v1726 = vsel %vm1559, %v1538, 0
        %v1729 = vsel %vm1559, %v1539, 0
        %v1732 = vsel %vm1559, %v1540, 0
        %v1735 = vsel %vm1559, %v1541, 0
        %v1738 = vsel %vm1559, %v1542, 0
        %v1741 = vsel %vm1559, %v1543, 0
        %v1744 = vsel %vm1559, %v1544, 0
        %v1747 = vsel %vm1559, %v1545, 0
        %v1750 = vsel %vm1559, %v1546, 0
        %1752 = vmatprep.subr.bf16.mxu0 0
        %1753 = vmatpush1.bf16.msra.mxu0 0
        %1754 = vmatprep.subr.bf16.mxu0 0
        %1755 = vmatpush1.bf16.msra.mxu0 0
        %1756 = vmatprep.subr.bf16.mxu0 0
        %1757 = vmatpush1.bf16.msra.mxu0 0
        %1758 = vmatprep.subr.bf16.mxu0 0
        %1759 = vmatpush1.bf16.msra.mxu0 0
        %1760 = vmatprep.subr.bf16.mxu0 0
        %1761 = vmatpush1.bf16.msra.mxu0 0
        %1762 = vmatprep.subr.bf16.mxu0 0
        %1763 = vmatpush1.bf16.msra.mxu0 0
        %1764 = vmatprep.subr.bf16.mxu0 0
        %1765 = vmatpush1.bf16.msra.mxu0 %v1556
        %1766 = vmatprep.subr.bf16.mxu0 0
        %1767 = vmatpush1.bf16.msra.mxu0 %v1555
        %1768 = vmatprep.subr.bf16.mxu0 0
        %1769 = vmatpush2.bf16.msra.mxu0 0
        %1770 = vmatprep.subr.bf16.mxu0 0
        %1771 = vmatpush2.bf16.msra.mxu0 0
        %1772 = vmatprep.subr.bf16.mxu0 0
        %1773 = vmatpush2.bf16.msra.mxu0 0
        %1774 = vmatprep.subr.bf16.mxu0 0
        %1775 = vmatpush2.bf16.msra.mxu0 0
        %1776 = vmatprep.subr.bf16.mxu0 0
        %1777 = vmatpush2.bf16.msra.mxu0 0
        %1778 = vmatprep.subr.bf16.mxu0 0
        %1779 = vmatpush2.bf16.msra.mxu0 0
        %1780 = vmatprep.subr.bf16.mxu0 0
        %1781 = vmatpush2.bf16.msra.mxu0 0
        %1782 = vmatprep.subr.bf16.mxu0 0
        %1783 = vmatpush2.bf16.msra.mxu0 0
        %1784 = vmatprep.mubr.bf16.mxu0 0
        %1785 = vmatmul.mubr.bf16.gmra.mxu0 %v1561
        %v1786 = vpop.f32.mrf.mxu0
        %v1787 = vadd.f32 0.0, %v1786
        %v1788 = vpop.f32.mrf.mxu0
        %v1789 = vpop.f32.mrf.mxu0
        %v1790 = vadd.f32 0.0, %v1789
        %v1791 = vpop.f32.mrf.mxu0
        %1792 = vmatprep.mubr.bf16.mxu0 0
        %1793 = vmatmul.mubr.bf16.gmra.mxu0 %v1564
        %v1794 = vpop.f32.mrf.mxu0
        %v1795 = vadd.f32 0.0, %v1794
        %v1796 = vpop.f32.mrf.mxu0
        %v1797 = vpop.f32.mrf.mxu0
        %v1798 = vadd.f32 0.0, %v1797
        %v1799 = vpop.f32.mrf.mxu0
        %1800 = vmatprep.mubr.bf16.mxu0 0
        %1801 = vmatmul.mubr.bf16.gmra.mxu0 %v1567
        %v1802 = vpop.f32.mrf.mxu0
        %v1803 = vadd.f32 0.0, %v1802
        %v1804 = vpop.f32.mrf.mxu0
        %v1805 = vpop.f32.mrf.mxu0
        %v1806 = vadd.f32 0.0, %v1805
        %v1807 = vpop.f32.mrf.mxu0
        %1808 = vmatprep.mubr.bf16.mxu0 0
        %1809 = vmatmul.mubr.bf16.gmra.mxu0 %v1570
        %v1810 = vpop.f32.mrf.mxu0
        %v1811 = vadd.f32 0.0, %v1810
        %v1812 = vpop.f32.mrf.mxu0
        %v1813 = vpop.f32.mrf.mxu0
        %v1814 = vadd.f32 0.0, %v1813
        %v1815 = vpop.f32.mrf.mxu0
        %1816 = vmatprep.mubr.bf16.mxu0 0
        %1817 = vmatmul.mubr.bf16.gmra.mxu0 %v1573
        %v1818 = vpop.f32.mrf.mxu0
        %v1819 = vadd.f32 0.0, %v1818
        %v1820 = vpop.f32.mrf.mxu0
        %v1821 = vpop.f32.mrf.mxu0
        %v1822 = vadd.f32 0.0, %v1821
        %v1823 = vpop.f32.mrf.mxu0
        %1824 = vmatprep.mubr.bf16.mxu0 0
        %1825 = vmatmul.mubr.bf16.gmra.mxu0 %v1576
        %v1826 = vpop.f32.mrf.mxu0
        %v1827 = vadd.f32 0.0, %v1826
        %v1828 = vpop.f32.mrf.mxu0
        %v1829 = vpop.f32.mrf.mxu0
        %v1830 = vadd.f32 0.0, %v1829
        %v1831 = vpop.f32.mrf.mxu0
        %1832 = vmatprep.mubr.bf16.mxu0 0
        %1833 = vmatmul.mubr.bf16.gmra.mxu0 %v1579
        %v1834 = vpop.f32.mrf.mxu0
        %v1835 = vadd.f32 0.0, %v1834
        %v1836 = vpop.f32.mrf.mxu0
        %v1837 = vpop.f32.mrf.mxu0
        %v1838 = vadd.f32 0.0, %v1837
        %v1839 = vpop.f32.mrf.mxu0
        %1840 = vmatprep.mubr.bf16.mxu0 0
        %1841 = vmatmul.mubr.bf16.gmra.mxu0 %v1582
        %v1842 = vpop.f32.mrf.mxu0
        %v1843 = vadd.f32 0.0, %v1842
        %v1844 = vpop.f32.mrf.mxu0
        %v1845 = vpop.f32.mrf.mxu0
        %v1846 = vadd.f32 0.0, %v1845
        %v1847 = vpop.f32.mrf.mxu0
        %1848 = vmatprep.mubr.bf16.mxu0 0
        %1849 = vmatmul.mubr.bf16.gmra.mxu0 %v1585
        %v1850 = vpop.f32.mrf.mxu0
        %v1851 = vadd.f32 0.0, %v1850
        %v1852 = vpop.f32.mrf.mxu0
        %v1853 = vpop.f32.mrf.mxu0
        %v1854 = vadd.f32 0.0, %v1853
        %v1855 = vpop.f32.mrf.mxu0
        %1856 = vmatprep.mubr.bf16.mxu0 0
        %1857 = vmatmul.mubr.bf16.gmra.mxu0 %v1588
        %v1858 = vpop.f32.mrf.mxu0
        %v1859 = vadd.f32 0.0, %v1858
        %v1860 = vpop.f32.mrf.mxu0
        %v1861 = vpop.f32.mrf.mxu0
        %v1862 = vadd.f32 0.0, %v1861
        %v1863 = vpop.f32.mrf.mxu0
        %1864 = vmatprep.mubr.bf16.mxu0 0
        %1865 = vmatmul.mubr.bf16.gmra.mxu0 %v1591
        %v1866 = vpop.f32.mrf.mxu0
        %v1867 = vadd.f32 0.0, %v1866
        %v1868 = vpop.f32.mrf.mxu0
        %v1869 = vpop.f32.mrf.mxu0
        %v1870 = vadd.f32 0.0, %v1869
        %v1871 = vpop.f32.mrf.mxu0
        %1872 = vmatprep.mubr.bf16.mxu0 0
        %1873 = vmatmul.mubr.bf16.gmra.mxu0 %v1594
        %v1874 = vpop.f32.mrf.mxu0
        %v1875 = vadd.f32 0.0, %v1874
        %v1876 = vpop.f32.mrf.mxu0
        %v1877 = vpop.f32.mrf.mxu0
        %v1878 = vadd.f32 0.0, %v1877
        %v1879 = vpop.f32.mrf.mxu0
        %1880 = vmatprep.mubr.bf16.mxu0 0
        %1881 = vmatmul.mubr.bf16.gmra.mxu0 %v1597
        %v1882 = vpop.f32.mrf.mxu0
        %v1883 = vadd.f32 0.0, %v1882
        %v1884 = vpop.f32.mrf.mxu0
        %v1885 = vpop.f32.mrf.mxu0
        %v1886 = vadd.f32 0.0, %v1885
        %v1887 = vpop.f32.mrf.mxu0
        %1888 = vmatprep.mubr.bf16.mxu0 0
        %1889 = vmatmul.mubr.bf16.gmra.mxu0 %v1600
        %v1890 = vpop.f32.mrf.mxu0
        %v1891 = vadd.f32 0.0, %v1890
        %v1892 = vpop.f32.mrf.mxu0
        %v1893 = vpop.f32.mrf.mxu0
        %v1894 = vadd.f32 0.0, %v1893
        %v1895 = vpop.f32.mrf.mxu0
        %1896 = vmatprep.mubr.bf16.mxu0 0
        %1897 = vmatmul.mubr.bf16.gmra.mxu0 %v1603
        %v1898 = vpop.f32.mrf.mxu0
        %v1899 = vadd.f32 0.0, %v1898
        %v1900 = vpop.f32.mrf.mxu0
        %v1901 = vpop.f32.mrf.mxu0
        %v1902 = vadd.f32 0.0, %v1901
        %v1903 = vpop.f32.mrf.mxu0
        %1904 = vmatprep.mubr.bf16.mxu0 0
        %1905 = vmatmul.mubr.bf16.gmra.mxu0 %v1606
        %v1906 = vpop.f32.mrf.mxu0
        %v1907 = vadd.f32 0.0, %v1906
        %v1908 = vpop.f32.mrf.mxu0
        %v1909 = vpop.f32.mrf.mxu0
        %v1910 = vadd.f32 0.0, %v1909
        %v1911 = vpop.f32.mrf.mxu0
        %1912 = vmatprep.mubr.bf16.mxu0 0
        %1913 = vmatmul.mubr.bf16.gmra.mxu0 %v1609
        %v1914 = vpop.f32.mrf.mxu0
        %v1915 = vadd.f32 0.0, %v1914
        %v1916 = vpop.f32.mrf.mxu0
        %v1917 = vpop.f32.mrf.mxu0
        %v1918 = vadd.f32 0.0, %v1917
        %v1919 = vpop.f32.mrf.mxu0
        %1920 = vmatprep.mubr.bf16.mxu0 0
        %1921 = vmatmul.mubr.bf16.gmra.mxu0 %v1612
        %v1922 = vpop.f32.mrf.mxu0
        %v1923 = vadd.f32 0.0, %v1922
        %v1924 = vpop.f32.mrf.mxu0
        %v1925 = vpop.f32.mrf.mxu0
        %v1926 = vadd.f32 0.0, %v1925
        %v1927 = vpop.f32.mrf.mxu0
        %1928 = vmatprep.mubr.bf16.mxu0 0
        %1929 = vmatmul.mubr.bf16.gmra.mxu0 %v1615
        %v1930 = vpop.f32.mrf.mxu0
        %v1931 = vadd.f32 0.0, %v1930
        %v1932 = vpop.f32.mrf.mxu0
        %v1933 = vpop.f32.mrf.mxu0
        %v1934 = vadd.f32 0.0, %v1933
        %v1935 = vpop.f32.mrf.mxu0
        %1936 = vmatprep.mubr.bf16.mxu0 0
        %1937 = vmatmul.mubr.bf16.gmra.mxu0 %v1618
        %v1938 = vpop.f32.mrf.mxu0
        %v1939 = vadd.f32 0.0, %v1938
        %v1940 = vpop.f32.mrf.mxu0
        %v1941 = vpop.f32.mrf.mxu0
        %v1942 = vadd.f32 0.0, %v1941
        %v1943 = vpop.f32.mrf.mxu0
        %1944 = vmatprep.mubr.bf16.mxu0 0
        %1945 = vmatmul.mubr.bf16.gmra.mxu0 %v1621
        %v1946 = vpop.f32.mrf.mxu0
        %v1947 = vadd.f32 0.0, %v1946
        %v1948 = vpop.f32.mrf.mxu0
        %v1949 = vpop.f32.mrf.mxu0
        %v1950 = vadd.f32 0.0, %v1949
        %v1951 = vpop.f32.mrf.mxu0
        %1952 = vmatprep.mubr.bf16.mxu0 0
        %1953 = vmatmul.mubr.bf16.gmra.mxu0 %v1624
        %v1954 = vpop.f32.mrf.mxu0
        %v1955 = vadd.f32 0.0, %v1954
        %v1956 = vpop.f32.mrf.mxu0
        %v1957 = vpop.f32.mrf.mxu0
        %v1958 = vadd.f32 0.0, %v1957
        %v1959 = vpop.f32.mrf.mxu0
        %1960 = vmatprep.mubr.bf16.mxu0 0
        %1961 = vmatmul.mubr.bf16.gmra.mxu0 %v1627
        %v1962 = vpop.f32.mrf.mxu0
        %v1963 = vadd.f32 0.0, %v1962
        %v1964 = vpop.f32.mrf.mxu0
        %v1965 = vpop.f32.mrf.mxu0
        %v1966 = vadd.f32 0.0, %v1965
        %v1967 = vpop.f32.mrf.mxu0
        %1968 = vmatprep.mubr.bf16.mxu0 0
        %1969 = vmatmul.mubr.bf16.gmra.mxu0 %v1630
        %v1970 = vpop.f32.mrf.mxu0
        %v1971 = vadd.f32 0.0, %v1970
        %v1972 = vpop.f32.mrf.mxu0
        %v1973 = vpop.f32.mrf.mxu0
        %v1974 = vadd.f32 0.0, %v1973
        %v1975 = vpop.f32.mrf.mxu0
        %1976 = vmatprep.mubr.bf16.mxu0 0
        %1977 = vmatmul.mubr.bf16.gmra.mxu0 %v1633
        %v1978 = vpop.f32.mrf.mxu0
        %v1979 = vadd.f32 0.0, %v1978
        %v1980 = vpop.f32.mrf.mxu0
        %v1981 = vpop.f32.mrf.mxu0
        %v1982 = vadd.f32 0.0, %v1981
        %v1983 = vpop.f32.mrf.mxu0
        %1984 = vmatprep.mubr.bf16.mxu0 0
        %1985 = vmatmul.mubr.bf16.gmra.mxu0 %v1636
        %v1986 = vpop.f32.mrf.mxu0
        %v1987 = vadd.f32 0.0, %v1986
        %v1988 = vpop.f32.mrf.mxu0
        %v1989 = vpop.f32.mrf.mxu0
        %v1990 = vadd.f32 0.0, %v1989
        %v1991 = vpop.f32.mrf.mxu0
        %1992 = vmatprep.mubr.bf16.mxu0 0
        %1993 = vmatmul.mubr.bf16.gmra.mxu0 %v1639
        %v1994 = vpop.f32.mrf.mxu0
        %v1995 = vadd.f32 0.0, %v1994
        %v1996 = vpop.f32.mrf.mxu0
        %v1997 = vpop.f32.mrf.mxu0
        %v1998 = vadd.f32 0.0, %v1997
        %v1999 = vpop.f32.mrf.mxu0
        %2000 = vmatprep.mubr.bf16.mxu0 0
        %2001 = vmatmul.mubr.bf16.gmra.mxu0 %v1642
        %v2002 = vpop.f32.mrf.mxu0
        %v2003 = vadd.f32 0.0, %v2002
        %v2004 = vpop.f32.mrf.mxu0
        %v2005 = vpop.f32.mrf.mxu0
        %v2006 = vadd.f32 0.0, %v2005
        %v2007 = vpop.f32.mrf.mxu0
        %2008 = vmatprep.mubr.bf16.mxu0 0
        %2009 = vmatmul.mubr.bf16.gmra.mxu0 %v1645
        %v2010 = vpop.f32.mrf.mxu0
        %v2011 = vadd.f32 0.0, %v2010
        %v2012 = vpop.f32.mrf.mxu0
        %v2013 = vpop.f32.mrf.mxu0
        %v2014 = vadd.f32 0.0, %v2013
        %v2015 = vpop.f32.mrf.mxu0
        %2016 = vmatprep.mubr.bf16.mxu0 0
        %2017 = vmatmul.mubr.bf16.gmra.mxu0 %v1648
        %v2018 = vpop.f32.mrf.mxu0
        %v2019 = vadd.f32 0.0, %v2018
        %v2020 = vpop.f32.mrf.mxu0
        %v2021 = vpop.f32.mrf.mxu0
        %v2022 = vadd.f32 0.0, %v2021
        %v2023 = vpop.f32.mrf.mxu0
        %2024 = vmatprep.mubr.bf16.mxu0 0
        %2025 = vmatmul.mubr.bf16.gmra.mxu0 %v1651
        %v2026 = vpop.f32.mrf.mxu0
        %v2027 = vadd.f32 0.0, %v2026
        %v2028 = vpop.f32.mrf.mxu0
        %v2029 = vpop.f32.mrf.mxu0
        %v2030 = vadd.f32 0.0, %v2029
        %v2031 = vpop.f32.mrf.mxu0
        %2032 = vmatprep.mubr.bf16.mxu0 0
        %2033 = vmatmul.mubr.bf16.gmra.mxu0 %v1654
        %v2034 = vpop.f32.mrf.mxu0
        %v2035 = vadd.f32 0.0, %v2034
        %v2036 = vpop.f32.mrf.mxu0
        %v2037 = vpop.f32.mrf.mxu0
        %v2038 = vadd.f32 0.0, %v2037
        %v2039 = vpop.f32.mrf.mxu0
        %2040 = vmatprep.mubr.bf16.mxu0 0
        %2041 = vmatmul.mubr.bf16.gmra.mxu0 %v1657
        %v2042 = vpop.f32.mrf.mxu0
        %v2043 = vadd.f32 0.0, %v2042
        %v2044 = vpop.f32.mrf.mxu0
        %v2045 = vpop.f32.mrf.mxu0
        %v2046 = vadd.f32 0.0, %v2045
        %v2047 = vpop.f32.mrf.mxu0
        %2048 = vmatprep.mubr.bf16.mxu0 0
        %2049 = vmatmul.mubr.bf16.gmra.mxu0 %v1660
        %v2050 = vpop.f32.mrf.mxu0
        %v2051 = vadd.f32 0.0, %v2050
        %v2052 = vpop.f32.mrf.mxu0
        %v2053 = vpop.f32.mrf.mxu0
        %v2054 = vadd.f32 0.0, %v2053
        %v2055 = vpop.f32.mrf.mxu0
        %2056 = vmatprep.mubr.bf16.mxu0 0
        %2057 = vmatmul.mubr.bf16.gmra.mxu0 %v1663
        %v2058 = vpop.f32.mrf.mxu0
        %v2059 = vadd.f32 0.0, %v2058
        %v2060 = vpop.f32.mrf.mxu0
        %v2061 = vpop.f32.mrf.mxu0
        %v2062 = vadd.f32 0.0, %v2061
        %v2063 = vpop.f32.mrf.mxu0
        %2064 = vmatprep.mubr.bf16.mxu0 0
        %2065 = vmatmul.mubr.bf16.gmra.mxu0 %v1666
        %v2066 = vpop.f32.mrf.mxu0
        %v2067 = vadd.f32 0.0, %v2066
        %v2068 = vpop.f32.mrf.mxu0
        %v2069 = vpop.f32.mrf.mxu0
        %v2070 = vadd.f32 0.0, %v2069
        %v2071 = vpop.f32.mrf.mxu0
        %2072 = vmatprep.mubr.bf16.mxu0 0
        %2073 = vmatmul.mubr.bf16.gmra.mxu0 %v1669
        %v2074 = vpop.f32.mrf.mxu0
        %v2075 = vadd.f32 0.0, %v2074
        %v2076 = vpop.f32.mrf.mxu0
        %v2077 = vpop.f32.mrf.mxu0
        %v2078 = vadd.f32 0.0, %v2077
        %v2079 = vpop.f32.mrf.mxu0
        %2080 = vmatprep.mubr.bf16.mxu0 0
        %2081 = vmatmul.mubr.bf16.gmra.mxu0 %v1672
        %v2082 = vpop.f32.mrf.mxu0
        %v2083 = vadd.f32 0.0, %v2082
        %v2084 = vpop.f32.mrf.mxu0
        %v2085 = vpop.f32.mrf.mxu0
        %v2086 = vadd.f32 0.0, %v2085
        %v2087 = vpop.f32.mrf.mxu0
        %2088 = vmatprep.mubr.bf16.mxu0 0
        %2089 = vmatmul.mubr.bf16.gmra.mxu0 %v1675
        %v2090 = vpop.f32.mrf.mxu0
        %v2091 = vadd.f32 0.0, %v2090
        %v2092 = vpop.f32.mrf.mxu0
        %v2093 = vpop.f32.mrf.mxu0
        %v2094 = vadd.f32 0.0, %v2093
        %v2095 = vpop.f32.mrf.mxu0
        %2096 = vmatprep.mubr.bf16.mxu0 0
        %2097 = vmatmul.mubr.bf16.gmra.mxu0 %v1678
        %v2098 = vpop.f32.mrf.mxu0
        %v2099 = vadd.f32 0.0, %v2098
        %v2100 = vpop.f32.mrf.mxu0
        %v2101 = vpop.f32.mrf.mxu0
        %v2102 = vadd.f32 0.0, %v2101
        %v2103 = vpop.f32.mrf.mxu0
        %2104 = vmatprep.mubr.bf16.mxu0 0
        %2105 = vmatmul.mubr.bf16.gmra.mxu0 %v1681
        %v2106 = vpop.f32.mrf.mxu0
        %v2107 = vadd.f32 0.0, %v2106
        %v2108 = vpop.f32.mrf.mxu0
        %v2109 = vpop.f32.mrf.mxu0
        %v2110 = vadd.f32 0.0, %v2109
        %v2111 = vpop.f32.mrf.mxu0
        %2112 = vmatprep.mubr.bf16.mxu0 0
        %2113 = vmatmul.mubr.bf16.gmra.mxu0 %v1684
        %v2114 = vpop.f32.mrf.mxu0
        %v2115 = vadd.f32 0.0, %v2114
        %v2116 = vpop.f32.mrf.mxu0
        %v2117 = vpop.f32.mrf.mxu0
        %v2118 = vadd.f32 0.0, %v2117
        %v2119 = vpop.f32.mrf.mxu0
        %2120 = vmatprep.mubr.bf16.mxu0 0
        %2121 = vmatmul.mubr.bf16.gmra.mxu0 %v1687
        %v2122 = vpop.f32.mrf.mxu0
        %v2123 = vadd.f32 0.0, %v2122
        %v2124 = vpop.f32.mrf.mxu0
        %v2125 = vpop.f32.mrf.mxu0
        %v2126 = vadd.f32 0.0, %v2125
        %v2127 = vpop.f32.mrf.mxu0
        %2128 = vmatprep.mubr.bf16.mxu0 0
        %2129 = vmatmul.mubr.bf16.gmra.mxu0 %v1690
        %v2130 = vpop.f32.mrf.mxu0
        %v2131 = vadd.f32 0.0, %v2130
        %v2132 = vpop.f32.mrf.mxu0
        %v2133 = vpop.f32.mrf.mxu0
        %v2134 = vadd.f32 0.0, %v2133
        %v2135 = vpop.f32.mrf.mxu0
        %2136 = vmatprep.mubr.bf16.mxu0 0
        %2137 = vmatmul.mubr.bf16.gmra.mxu0 %v1693
        %v2138 = vpop.f32.mrf.mxu0
        %v2139 = vadd.f32 0.0, %v2138
        %v2140 = vpop.f32.mrf.mxu0
        %v2141 = vpop.f32.mrf.mxu0
        %v2142 = vadd.f32 0.0, %v2141
        %v2143 = vpop.f32.mrf.mxu0
        %2144 = vmatprep.mubr.bf16.mxu0 0
        %2145 = vmatmul.mubr.bf16.gmra.mxu0 %v1696
        %v2146 = vpop.f32.mrf.mxu0
        %v2147 = vadd.f32 0.0, %v2146
        %v2148 = vpop.f32.mrf.mxu0
        %v2149 = vpop.f32.mrf.mxu0
        %v2150 = vadd.f32 0.0, %v2149
        %v2151 = vpop.f32.mrf.mxu0
        %2152 = vmatprep.mubr.bf16.mxu0 0
        %2153 = vmatmul.mubr.bf16.gmra.mxu0 %v1699
        %v2154 = vpop.f32.mrf.mxu0
        %v2155 = vadd.f32 0.0, %v2154
        %v2156 = vpop.f32.mrf.mxu0
        %v2157 = vpop.f32.mrf.mxu0
        %v2158 = vadd.f32 0.0, %v2157
        %v2159 = vpop.f32.mrf.mxu0
        %2160 = vmatprep.mubr.bf16.mxu0 0
        %2161 = vmatmul.mubr.bf16.gmra.mxu0 %v1702
        %v2162 = vpop.f32.mrf.mxu0
        %v2163 = vadd.f32 0.0, %v2162
        %v2164 = vpop.f32.mrf.mxu0
        %v2165 = vpop.f32.mrf.mxu0
        %v2166 = vadd.f32 0.0, %v2165
        %v2167 = vpop.f32.mrf.mxu0
        %2168 = vmatprep.mubr.bf16.mxu0 0
        %2169 = vmatmul.mubr.bf16.gmra.mxu0 %v1705
        %v2170 = vpop.f32.mrf.mxu0
        %v2171 = vadd.f32 0.0, %v2170
        %v2172 = vpop.f32.mrf.mxu0
        %v2173 = vpop.f32.mrf.mxu0
        %v2174 = vadd.f32 0.0, %v2173
        %v2175 = vpop.f32.mrf.mxu0
        %2176 = vmatprep.mubr.bf16.mxu0 0
        %2177 = vmatmul.mubr.bf16.gmra.mxu0 %v1708
        %v2178 = vpop.f32.mrf.mxu0
        %v2179 = vadd.f32 0.0, %v2178
        %v2180 = vpop.f32.mrf.mxu0
        %v2181 = vpop.f32.mrf.mxu0
        %v2182 = vadd.f32 0.0, %v2181
        %v2183 = vpop.f32.mrf.mxu0
        %2184 = vmatprep.mubr.bf16.mxu0 0
        %2185 = vmatmul.mubr.bf16.gmra.mxu0 %v1711
        %v2186 = vpop.f32.mrf.mxu0
        %v2187 = vadd.f32 0.0, %v2186
        %v2188 = vpop.f32.mrf.mxu0
        %v2189 = vpop.f32.mrf.mxu0
        %v2190 = vadd.f32 0.0, %v2189
        %v2191 = vpop.f32.mrf.mxu0
        %2192 = vmatprep.mubr.bf16.mxu0 0
        %2193 = vmatmul.mubr.bf16.gmra.mxu0 %v1714
        %v2194 = vpop.f32.mrf.mxu0
        %v2195 = vadd.f32 0.0, %v2194
        %v2196 = vpop.f32.mrf.mxu0
        %v2197 = vpop.f32.mrf.mxu0
        %v2198 = vadd.f32 0.0, %v2197
        %v2199 = vpop.f32.mrf.mxu0
        %2200 = vmatprep.mubr.bf16.mxu0 0
        %2201 = vmatmul.mubr.bf16.gmra.mxu0 %v1717
        %v2202 = vpop.f32.mrf.mxu0
        %v2203 = vadd.f32 0.0, %v2202
        %v2204 = vpop.f32.mrf.mxu0
        %v2205 = vpop.f32.mrf.mxu0
        %v2206 = vadd.f32 0.0, %v2205
        %v2207 = vpop.f32.mrf.mxu0
        %2208 = vmatprep.mubr.bf16.mxu0 0
        %2209 = vmatmul.mubr.bf16.gmra.mxu0 %v1720
        %v2210 = vpop.f32.mrf.mxu0
        %v2211 = vadd.f32 0.0, %v2210
        %v2212 = vpop.f32.mrf.mxu0
        %v2213 = vpop.f32.mrf.mxu0
        %v2214 = vadd.f32 0.0, %v2213
        %v2215 = vpop.f32.mrf.mxu0
        %2216 = vmatprep.mubr.bf16.mxu0 0
        %2217 = vmatmul.mubr.bf16.gmra.mxu0 %v1723
        %v2218 = vpop.f32.mrf.mxu0
        %v2219 = vadd.f32 0.0, %v2218
        %v2220 = vpop.f32.mrf.mxu0
        %v2221 = vpop.f32.mrf.mxu0
        %v2222 = vadd.f32 0.0, %v2221
        %v2223 = vpop.f32.mrf.mxu0
        %2224 = vmatprep.mubr.bf16.mxu0 0
        %2225 = vmatmul.mubr.bf16.gmra.mxu0 %v1726
        %v2226 = vpop.f32.mrf.mxu0
        %v2227 = vadd.f32 0.0, %v2226
        %v2228 = vpop.f32.mrf.mxu0
        %v2229 = vpop.f32.mrf.mxu0
        %v2230 = vadd.f32 0.0, %v2229
        %v2231 = vpop.f32.mrf.mxu0
        %2232 = vmatprep.mubr.bf16.mxu0 0
        %2233 = vmatmul.mubr.bf16.gmra.mxu0 %v1729
        %v2234 = vpop.f32.mrf.mxu0
        %v2235 = vadd.f32 0.0, %v2234
        %v2236 = vpop.f32.mrf.mxu0
        %v2237 = vpop.f32.mrf.mxu0
        %v2238 = vadd.f32 0.0, %v2237
        %v2239 = vpop.f32.mrf.mxu0
        %2240 = vmatprep.mubr.bf16.mxu0 0
        %2241 = vmatmul.mubr.bf16.gmra.mxu0 %v1732
        %v2242 = vpop.f32.mrf.mxu0
        %v2243 = vadd.f32 0.0, %v2242
        %v2244 = vpop.f32.mrf.mxu0
        %v2245 = vpop.f32.mrf.mxu0
        %v2246 = vadd.f32 0.0, %v2245
        %v2247 = vpop.f32.mrf.mxu0
        %2248 = vmatprep.mubr.bf16.mxu0 0
        %2249 = vmatmul.mubr.bf16.gmra.mxu0 %v1735
        %v2250 = vpop.f32.mrf.mxu0
        %v2251 = vadd.f32 0.0, %v2250
        %v2252 = vpop.f32.mrf.mxu0
        %v2253 = vpop.f32.mrf.mxu0
        %v2254 = vadd.f32 0.0, %v2253
        %v2255 = vpop.f32.mrf.mxu0
        %2256 = vmatprep.mubr.bf16.mxu0 0
        %2257 = vmatmul.mubr.bf16.gmra.mxu0 %v1738
        %v2258 = vpop.f32.mrf.mxu0
        %v2259 = vadd.f32 0.0, %v2258
        %v2260 = vpop.f32.mrf.mxu0
        %v2261 = vpop.f32.mrf.mxu0
        %v2262 = vadd.f32 0.0, %v2261
        %v2263 = vpop.f32.mrf.mxu0
        %2264 = vmatprep.mubr.bf16.mxu0 0
        %2265 = vmatmul.mubr.bf16.gmra.mxu0 %v1741
        %v2266 = vpop.f32.mrf.mxu0
        %v2267 = vadd.f32 0.0, %v2266
        %v2268 = vpop.f32.mrf.mxu0
        %v2269 = vpop.f32.mrf.mxu0
        %v2270 = vadd.f32 0.0, %v2269
        %v2271 = vpop.f32.mrf.mxu0
        %2272 = vmatprep.mubr.bf16.mxu0 0
        %2273 = vmatmul.mubr.bf16.gmra.mxu0 %v1744
        %v2274 = vpop.f32.mrf.mxu0
        %v2275 = vadd.f32 0.0, %v2274
        %v2276 = vpop.f32.mrf.mxu0
        %v2277 = vpop.f32.mrf.mxu0
        %v2278 = vadd.f32 0.0, %v2277
        %v2279 = vpop.f32.mrf.mxu0
        %2280 = vmatprep.mubr.bf16.mxu0 0
        %2281 = vmatmul.mubr.bf16.gmra.mxu0 %v1747
        %v2282 = vpop.f32.mrf.mxu0
        %v2283 = vadd.f32 0.0, %v2282
        %v2284 = vpop.f32.mrf.mxu0
        %v2285 = vpop.f32.mrf.mxu0
        %v2286 = vadd.f32 0.0, %v2285
        %v2287 = vpop.f32.mrf.mxu0
        %2288 = vmatprep.mubr.bf16.mxu0 0
        %2289 = vmatmul.mubr.bf16.gmra.mxu0 %v1750
        %v2290 = vpop.f32.mrf.mxu0
        %v2291 = vadd.f32 0.0, %v2290
        %v2292 = vpop.f32.mrf.mxu0
        %v2293 = vpop.f32.mrf.mxu0
        %v2294 = vadd.f32 0.0, %v2293
        %v2295 = vpop.f32.mrf.mxu0
        %2296 = vdwg.mxu0
        %v2297 = vld [vmem:[%s219] sm:$0xf]
        %v2298 = vld [vmem:[%s219 + $0x4] sm:$0xf]
        %v2299 = vld [vmem:[%s219 + $0x8] sm:$0xf]
        %v2300 = vld [vmem:[%s219 + $0xc] sm:$0xf]
        %v2301 = vld [vmem:[%s219 + $0x10] sm:$0xf]
        %v2302 = vld [vmem:[%s219 + $0x14] sm:$0xf]
        %v2303 = vld [vmem:[%s219 + $0x18] sm:$0xf]
        %v2304 = vld [vmem:[%s219 + $0x1c] sm:$0xf]
        %v2305 = vld [vmem:[%s219 + $0x20] sm:$0xf]
        %v2306 = vld [vmem:[%s219 + $0x24] sm:$0xf]
        %v2307 = vld [vmem:[%s219 + $0x28] sm:$0xf]
        %v2308 = vld [vmem:[%s219 + $0x2c] sm:$0xf]
        %v2309 = vld [vmem:[%s219 + $0x30] sm:$0xf]
        %v2310 = vld [vmem:[%s219 + $0x34] sm:$0xf]
        %v2311 = vld [vmem:[%s219 + $0x38] sm:$0xf]
        %v2312 = vld [vmem:[%s219 + $0x3c] sm:$0xf]
        %v2313 = vpack.c.bf16 %v1790, %v1787
        %v2314 = vpack.c.bf16 %v1798, %v1795
        %v2315 = vpack.c.bf16 %v1806, %v1803
        %v2316 = vpack.c.bf16 %v1814, %v1811
        %v2317 = vpack.c.bf16 %v1822, %v1819
        %v2318 = vpack.c.bf16 %v1830, %v1827
        %v2319 = vpack.c.bf16 %v1838, %v1835
        %v2320 = vpack.c.bf16 %v1846, %v1843
        %v2322 = vlaneseq
        %v2323 = vshrl.u32 %v2322, 7
        %v2324 = vsub.s32 0, %v2323
        %v2325 = vrot.slane %v243, %v2324
        %v2343 = vunpack.c.l.b16 %v2297
        %v2344 = vunpack.c.l.b16 %v2298
        %v2345 = vunpack.c.l.b16 %v2299
        %v2346 = vunpack.c.l.b16 %v2300
        %v2347 = vunpack.c.l.b16 %v2301
        %v2348 = vunpack.c.l.b16 %v2302
        %v2349 = vunpack.c.l.b16 %v2303
        %v2350 = vunpack.c.l.b16 %v2304
        %v2351 = vunpack.c.l.b16 %v2305
        %v2352 = vunpack.c.l.b16 %v2306
        %v2353 = vunpack.c.l.b16 %v2307
        %v2354 = vunpack.c.l.b16 %v2308
        %v2355 = vunpack.c.l.b16 %v2309
        %v2356 = vunpack.c.l.b16 %v2310
        %v2357 = vunpack.c.l.b16 %v2311
        %v2358 = vunpack.c.l.b16 %v2312
        %v2359 = vpack.c.b16 %v2344, %v2343
        %v2360 = vpack.c.b16 %v2346, %v2345
        %v2361 = vpack.c.b16 %v2348, %v2347
        %v2362 = vpack.c.b16 %v2350, %v2349
        %v2363 = vpack.c.b16 %v2352, %v2351
        %v2364 = vpack.c.b16 %v2354, %v2353
        %v2365 = vpack.c.b16 %v2356, %v2355
        %v2366 = vpack.c.b16 %v2358, %v2357
        %2375 = vmatprep.subr.bf16.mxu0 0
        %2376 = vmatpush1.bf16.msra.mxu0 %v2320
        %2377 = vmatprep.subr.bf16.mxu0 0
        %2378 = vmatpush1.bf16.msra.mxu0 %v2319
        %2379 = vmatprep.subr.bf16.mxu0 0
        %2380 = vmatpush1.bf16.msra.mxu0 %v2318
        %2381 = vmatprep.subr.bf16.mxu0 0
        %2382 = vmatpush1.bf16.msra.mxu0 %v2317
        %2383 = vmatprep.subr.bf16.mxu0 0
        %2384 = vmatpush1.bf16.msra.mxu0 %v2316
        %2385 = vmatprep.subr.bf16.mxu0 0
        %2386 = vmatpush1.bf16.msra.mxu0 %v2315
        %2387 = vmatprep.subr.bf16.mxu0 0
        %2388 = vmatpush1.bf16.msra.mxu0 %v2314
        %2389 = vmatprep.subr.bf16.mxu0 0
        %2390 = vmatpush1.bf16.msra.mxu0 %v2313
        %2391 = vmatprep.subr.bf16.mxu0 0
        %2392 = vmatpush2.bf16.msra.mxu0 0
        %2393 = vmatprep.subr.bf16.mxu0 0
        %2394 = vmatpush2.bf16.msra.mxu0 0
        %2395 = vmatprep.subr.bf16.mxu0 0
        %2396 = vmatpush2.bf16.msra.mxu0 0
        %2397 = vmatprep.subr.bf16.mxu0 0
        %2398 = vmatpush2.bf16.msra.mxu0 0
        %2399 = vmatprep.subr.bf16.mxu0 0
        %2400 = vmatpush2.bf16.msra.mxu0 0
        %2401 = vmatprep.subr.bf16.mxu0 0
        %2402 = vmatpush2.bf16.msra.mxu0 0
        %2403 = vmatprep.subr.bf16.mxu0 0
        %2404 = vmatpush2.bf16.msra.mxu0 0
        %2405 = vmatprep.subr.bf16.mxu0 0
        %2406 = vmatpush2.bf16.msra.mxu0 0
        %2407 = vmatprep.mubr.bf16.mxu0 0
        %2408 = vmatmul.mubr.bf16.gmra.mxu0 %v2359
        %v2409 = vpop.f32.mrf.mxu0
        %v2410 = vadd.f32 %v2325, %v2409
        %v2411 = vpop.f32.mrf.mxu0
        %v2412 = vpop.f32.mrf.mxu0
        %v2413 = vadd.f32 %v2325, %v2412
        %v2414 = vpop.f32.mrf.mxu0
        %2415 = vmatprep.mubr.bf16.mxu0 0
        %2416 = vmatmul.mubr.bf16.gmra.mxu0 %v2360
        %v2417 = vpop.f32.mrf.mxu0
        %v2418 = vadd.f32 %v2325, %v2417
        %v2419 = vpop.f32.mrf.mxu0
        %v2420 = vpop.f32.mrf.mxu0
        %v2421 = vadd.f32 %v2325, %v2420
        %v2422 = vpop.f32.mrf.mxu0
        %2423 = vmatprep.mubr.bf16.mxu0 0
        %2424 = vmatmul.mubr.bf16.gmra.mxu0 %v2361
        %v2425 = vpop.f32.mrf.mxu0
        %v2426 = vadd.f32 %v2325, %v2425
        %v2427 = vpop.f32.mrf.mxu0
        %v2428 = vpop.f32.mrf.mxu0
        %v2429 = vadd.f32 %v2325, %v2428
        %v2430 = vpop.f32.mrf.mxu0
        %2431 = vmatprep.mubr.bf16.mxu0 0
        %2432 = vmatmul.mubr.bf16.gmra.mxu0 %v2362
        %v2433 = vpop.f32.mrf.mxu0
        %v2434 = vadd.f32 %v2325, %v2433
        %v2435 = vpop.f32.mrf.mxu0
        %v2436 = vpop.f32.mrf.mxu0
        %v2437 = vadd.f32 %v2325, %v2436
        %v2438 = vpop.f32.mrf.mxu0
        %2439 = vmatprep.mubr.bf16.mxu0 0
        %2440 = vmatmul.mubr.bf16.gmra.mxu0 %v2363
        %v2441 = vpop.f32.mrf.mxu0
        %v2442 = vadd.f32 %v2325, %v2441
        %v2443 = vpop.f32.mrf.mxu0
        %v2444 = vpop.f32.mrf.mxu0
        %v2445 = vadd.f32 %v2325, %v2444
        %v2446 = vpop.f32.mrf.mxu0
        %2447 = vmatprep.mubr.bf16.mxu0 0
        %2448 = vmatmul.mubr.bf16.gmra.mxu0 %v2364
        %v2449 = vpop.f32.mrf.mxu0
        %v2450 = vadd.f32 %v2325, %v2449
        %v2451 = vpop.f32.mrf.mxu0
        %v2452 = vpop.f32.mrf.mxu0
        %v2453 = vadd.f32 %v2325, %v2452
        %v2454 = vpop.f32.mrf.mxu0
        %2455 = vmatprep.mubr.bf16.mxu0 0
        %2456 = vmatmul.mubr.bf16.gmra.mxu0 %v2365
        %v2457 = vpop.f32.mrf.mxu0
        %v2458 = vadd.f32 %v2325, %v2457
        %v2459 = vpop.f32.mrf.mxu0
        %v2460 = vpop.f32.mrf.mxu0
        %v2461 = vadd.f32 %v2325, %v2460
        %v2462 = vpop.f32.mrf.mxu0
        %2463 = vmatprep.mubr.bf16.mxu0 0
        %2464 = vmatmul.mubr.bf16.gmra.mxu0 %v2366
        %v2465 = vpop.f32.mrf.mxu0
        %v2466 = vadd.f32 %v2325, %v2465
        %v2467 = vpop.f32.mrf.mxu0
        %v2468 = vpop.f32.mrf.mxu0
        %v2469 = vadd.f32 %v2325, %v2468
        %v2470 = vpop.f32.mrf.mxu0
        %2471 = vdwg.mxu0
        %vm2472 = vcmask 130048
        %2473 = vst.msk [vmem:[%s214] sm:$0xff] %vm2472, %v2410
        %2474 = vst.msk [vmem:[%s214 + $0x8] sm:$0xff] %vm2472, %v2413
        %2475 = vst.msk [vmem:[%s214 + $0x10] sm:$0xff] %vm2472, %v2418
        %2476 = vst.msk [vmem:[%s214 + $0x18] sm:$0xff] %vm2472, %v2421
        %2477 = vst.msk [vmem:[%s214 + $0x20] sm:$0xff] %vm2472, %v2426
        %2478 = vst.msk [vmem:[%s214 + $0x28] sm:$0xff] %vm2472, %v2429
        %2479 = vst.msk [vmem:[%s214 + $0x30] sm:$0xff] %vm2472, %v2434
        %2480 = vst.msk [vmem:[%s214 + $0x38] sm:$0xff] %vm2472, %v2437
        %2481 = vst.msk [vmem:[%s214 + $0x40] sm:$0xff] %vm2472, %v2442
        %2482 = vst.msk [vmem:[%s214 + $0x48] sm:$0xff] %vm2472, %v2445
        %2483 = vst.msk [vmem:[%s214 + $0x50] sm:$0xff] %vm2472, %v2450
        %2484 = vst.msk [vmem:[%s214 + $0x58] sm:$0xff] %vm2472, %v2453
        %2485 = vst.msk [vmem:[%s214 + $0x60] sm:$0xff] %vm2472, %v2458
        %2486 = vst.msk [vmem:[%s214 + $0x68] sm:$0xff] %vm2472, %v2461
        %2487 = vst.msk [vmem:[%s214 + $0x70] sm:$0xff] %vm2472, %v2466
        %2488 = vst.msk [vmem:[%s214 + $0x78] sm:$0xff] %vm2472, %v2469
        %v2489 = vld [vmem:[%s219 + $0x40] sm:$0xf]
        %v2490 = vld [vmem:[%s219 + $0x44] sm:$0xf]
        %v2491 = vld [vmem:[%s219 + $0x48] sm:$0xf]
        %v2492 = vld [vmem:[%s219 + $0x4c] sm:$0xf]
        %v2493 = vld [vmem:[%s219 + $0x50] sm:$0xf]
        %v2494 = vld [vmem:[%s219 + $0x54] sm:$0xf]
        %v2495 = vld [vmem:[%s219 + $0x58] sm:$0xf]
        %v2496 = vld [vmem:[%s219 + $0x5c] sm:$0xf]
        %v2497 = vld [vmem:[%s219 + $0x60] sm:$0xf]
        %v2498 = vld [vmem:[%s219 + $0x64] sm:$0xf]
        %v2499 = vld [vmem:[%s219 + $0x68] sm:$0xf]
        %v2500 = vld [vmem:[%s219 + $0x6c] sm:$0xf]
        %v2501 = vld [vmem:[%s219 + $0x70] sm:$0xf]
        %v2502 = vld [vmem:[%s219 + $0x74] sm:$0xf]
        %v2503 = vld [vmem:[%s219 + $0x78] sm:$0xf]
        %v2504 = vld [vmem:[%s219 + $0x7c] sm:$0xf]
        %v2505 = vpack.c.bf16 %v1854, %v1851
        %v2506 = vpack.c.bf16 %v1862, %v1859
        %v2507 = vpack.c.bf16 %v1870, %v1867
        %v2508 = vpack.c.bf16 %v1878, %v1875
        %v2509 = vpack.c.bf16 %v1886, %v1883
        %v2510 = vpack.c.bf16 %v1894, %v1891
        %v2511 = vpack.c.bf16 %v1902, %v1899
        %v2512 = vpack.c.bf16 %v1910, %v1907
        %v2529 = vunpack.c.l.b16 %v2489
        %v2530 = vunpack.c.l.b16 %v2490
        %v2531 = vunpack.c.l.b16 %v2491
        %v2532 = vunpack.c.l.b16 %v2492
        %v2533 = vunpack.c.l.b16 %v2493
        %v2534 = vunpack.c.l.b16 %v2494
        %v2535 = vunpack.c.l.b16 %v2495
        %v2536 = vunpack.c.l.b16 %v2496
        %v2537 = vunpack.c.l.b16 %v2497
        %v2538 = vunpack.c.l.b16 %v2498
        %v2539 = vunpack.c.l.b16 %v2499
        %v2540 = vunpack.c.l.b16 %v2500
        %v2541 = vunpack.c.l.b16 %v2501
        %v2542 = vunpack.c.l.b16 %v2502
        %v2543 = vunpack.c.l.b16 %v2503
        %v2544 = vunpack.c.l.b16 %v2504
        %v2545 = vpack.c.b16 %v2530, %v2529
        %v2546 = vpack.c.b16 %v2532, %v2531
        %v2547 = vpack.c.b16 %v2534, %v2533
        %v2548 = vpack.c.b16 %v2536, %v2535
        %v2549 = vpack.c.b16 %v2538, %v2537
        %v2550 = vpack.c.b16 %v2540, %v2539
        %v2551 = vpack.c.b16 %v2542, %v2541
        %v2552 = vpack.c.b16 %v2544, %v2543
        %2561 = vmatprep.subr.bf16.mxu0 0
        %2562 = vmatpush1.bf16.msra.mxu0 %v2512
        %2563 = vmatprep.subr.bf16.mxu0 0
        %2564 = vmatpush1.bf16.msra.mxu0 %v2511
        %2565 = vmatprep.subr.bf16.mxu0 0
        %2566 = vmatpush1.bf16.msra.mxu0 %v2510
        %2567 = vmatprep.subr.bf16.mxu0 0
        %2568 = vmatpush1.bf16.msra.mxu0 %v2509
        %2569 = vmatprep.subr.bf16.mxu0 0
        %2570 = vmatpush1.bf16.msra.mxu0 %v2508
        %2571 = vmatprep.subr.bf16.mxu0 0
        %2572 = vmatpush1.bf16.msra.mxu0 %v2507
        %2573 = vmatprep.subr.bf16.mxu0 0
        %2574 = vmatpush1.bf16.msra.mxu0 %v2506
        %2575 = vmatprep.subr.bf16.mxu0 0
        %2576 = vmatpush1.bf16.msra.mxu0 %v2505
        %2577 = vmatprep.subr.bf16.mxu0 0
        %2578 = vmatpush2.bf16.msra.mxu0 0
        %2579 = vmatprep.subr.bf16.mxu0 0
        %2580 = vmatpush2.bf16.msra.mxu0 0
        %2581 = vmatprep.subr.bf16.mxu0 0
        %2582 = vmatpush2.bf16.msra.mxu0 0
        %2583 = vmatprep.subr.bf16.mxu0 0
        %2584 = vmatpush2.bf16.msra.mxu0 0
        %2585 = vmatprep.subr.bf16.mxu0 0
        %2586 = vmatpush2.bf16.msra.mxu0 0
        %2587 = vmatprep.subr.bf16.mxu0 0
        %2588 = vmatpush2.bf16.msra.mxu0 0
        %2589 = vmatprep.subr.bf16.mxu0 0
        %2590 = vmatpush2.bf16.msra.mxu0 0
        %2591 = vmatprep.subr.bf16.mxu0 0
        %2592 = vmatpush2.bf16.msra.mxu0 0
        %2593 = vmatprep.mubr.bf16.mxu0 0
        %2594 = vmatmul.mubr.bf16.gmra.mxu0 %v2545
        %v2595 = vpop.f32.mrf.mxu0
        %v2596 = vadd.f32 %v2325, %v2595
        %v2597 = vpop.f32.mrf.mxu0
        %v2598 = vpop.f32.mrf.mxu0
        %v2599 = vadd.f32 %v2325, %v2598
        %v2600 = vpop.f32.mrf.mxu0
        %2601 = vmatprep.mubr.bf16.mxu0 0
        %2602 = vmatmul.mubr.bf16.gmra.mxu0 %v2546
        %v2603 = vpop.f32.mrf.mxu0
        %v2604 = vadd.f32 %v2325, %v2603
        %v2605 = vpop.f32.mrf.mxu0
        %v2606 = vpop.f32.mrf.mxu0
        %v2607 = vadd.f32 %v2325, %v2606
        %v2608 = vpop.f32.mrf.mxu0
        %2609 = vmatprep.mubr.bf16.mxu0 0
        %2610 = vmatmul.mubr.bf16.gmra.mxu0 %v2547
        %v2611 = vpop.f32.mrf.mxu0
        %v2612 = vadd.f32 %v2325, %v2611
        %v2613 = vpop.f32.mrf.mxu0
        %v2614 = vpop.f32.mrf.mxu0
        %v2615 = vadd.f32 %v2325, %v2614
        %v2616 = vpop.f32.mrf.mxu0
        %2617 = vmatprep.mubr.bf16.mxu0 0
        %2618 = vmatmul.mubr.bf16.gmra.mxu0 %v2548
        %v2619 = vpop.f32.mrf.mxu0
        %v2620 = vadd.f32 %v2325, %v2619
        %v2621 = vpop.f32.mrf.mxu0
        %v2622 = vpop.f32.mrf.mxu0
        %v2623 = vadd.f32 %v2325, %v2622
        %v2624 = vpop.f32.mrf.mxu0
        %2625 = vmatprep.mubr.bf16.mxu0 0
        %2626 = vmatmul.mubr.bf16.gmra.mxu0 %v2549
        %v2627 = vpop.f32.mrf.mxu0
        %v2628 = vadd.f32 %v2325, %v2627
        %v2629 = vpop.f32.mrf.mxu0
        %v2630 = vpop.f32.mrf.mxu0
        %v2631 = vadd.f32 %v2325, %v2630
        %v2632 = vpop.f32.mrf.mxu0
        %2633 = vmatprep.mubr.bf16.mxu0 0
        %2634 = vmatmul.mubr.bf16.gmra.mxu0 %v2550
        %v2635 = vpop.f32.mrf.mxu0
        %v2636 = vadd.f32 %v2325, %v2635
        %v2637 = vpop.f32.mrf.mxu0
        %v2638 = vpop.f32.mrf.mxu0
        %v2639 = vadd.f32 %v2325, %v2638
        %v2640 = vpop.f32.mrf.mxu0
        %2641 = vmatprep.mubr.bf16.mxu0 0
        %2642 = vmatmul.mubr.bf16.gmra.mxu0 %v2551
        %v2643 = vpop.f32.mrf.mxu0
        %v2644 = vadd.f32 %v2325, %v2643
        %v2645 = vpop.f32.mrf.mxu0
        %v2646 = vpop.f32.mrf.mxu0
        %v2647 = vadd.f32 %v2325, %v2646
        %v2648 = vpop.f32.mrf.mxu0
        %2649 = vmatprep.mubr.bf16.mxu0 0
        %2650 = vmatmul.mubr.bf16.gmra.mxu0 %v2552
        %v2651 = vpop.f32.mrf.mxu0
        %v2652 = vadd.f32 %v2325, %v2651
        %v2653 = vpop.f32.mrf.mxu0
        %v2654 = vpop.f32.mrf.mxu0
        %v2655 = vadd.f32 %v2325, %v2654
        %v2656 = vpop.f32.mrf.mxu0
        %2657 = vdwg.mxu0
        %2674 = vrot.lane.b32.xlu0 %v2596, 16
        %v2675 = vpop.permute.xlu0 %2674
        %2676 = vrot.lane.b32.xlu0 %v2599, 16
        %v2677 = vpop.permute.xlu0 %2676
        %2678 = vrot.lane.b32.xlu0 %v2604, 16
        %v2679 = vpop.permute.xlu0 %2678
        %2680 = vrot.lane.b32.xlu0 %v2607, 16
        %v2681 = vpop.permute.xlu0 %2680
        %2682 = vrot.lane.b32.xlu0 %v2612, 16
        %v2683 = vpop.permute.xlu0 %2682
        %2684 = vrot.lane.b32.xlu0 %v2615, 16
        %v2685 = vpop.permute.xlu0 %2684
        %2686 = vrot.lane.b32.xlu0 %v2620, 16
        %v2687 = vpop.permute.xlu0 %2686
        %2688 = vrot.lane.b32.xlu0 %v2623, 16
        %v2689 = vpop.permute.xlu0 %2688
        %2690 = vrot.lane.b32.xlu0 %v2628, 16
        %v2691 = vpop.permute.xlu0 %2690
        %2692 = vrot.lane.b32.xlu0 %v2631, 16
        %v2693 = vpop.permute.xlu0 %2692
        %2694 = vrot.lane.b32.xlu0 %v2636, 16
        %v2695 = vpop.permute.xlu0 %2694
        %2696 = vrot.lane.b32.xlu0 %v2639, 16
        %v2697 = vpop.permute.xlu0 %2696
        %2698 = vrot.lane.b32.xlu0 %v2644, 16
        %v2699 = vpop.permute.xlu0 %2698
        %2700 = vrot.lane.b32.xlu0 %v2647, 16
        %v2701 = vpop.permute.xlu0 %2700
        %2702 = vrot.lane.b32.xlu0 %v2652, 16
        %v2703 = vpop.permute.xlu0 %2702
        %2704 = vrot.lane.b32.xlu0 %v2655, 16
        %v2705 = vpop.permute.xlu0 %2704
        %vm2722 = vcmask 261248
        %2723 = vst.msk [vmem:[%s214] sm:$0xff] %vm2722, %v2675
        %2724 = vst.msk [vmem:[%s214 + $0x8] sm:$0xff] %vm2722, %v2677
        %2725 = vst.msk [vmem:[%s214 + $0x10] sm:$0xff] %vm2722, %v2679
        %2726 = vst.msk [vmem:[%s214 + $0x18] sm:$0xff] %vm2722, %v2681
        %2727 = vst.msk [vmem:[%s214 + $0x20] sm:$0xff] %vm2722, %v2683
        %2728 = vst.msk [vmem:[%s214 + $0x28] sm:$0xff] %vm2722, %v2685
        %2729 = vst.msk [vmem:[%s214 + $0x30] sm:$0xff] %vm2722, %v2687
        %2730 = vst.msk [vmem:[%s214 + $0x38] sm:$0xff] %vm2722, %v2689
        %2731 = vst.msk [vmem:[%s214 + $0x40] sm:$0xff] %vm2722, %v2691
        %2732 = vst.msk [vmem:[%s214 + $0x48] sm:$0xff] %vm2722, %v2693
        %2733 = vst.msk [vmem:[%s214 + $0x50] sm:$0xff] %vm2722, %v2695
        %2734 = vst.msk [vmem:[%s214 + $0x58] sm:$0xff] %vm2722, %v2697
        %2735 = vst.msk [vmem:[%s214 + $0x60] sm:$0xff] %vm2722, %v2699
        %2736 = vst.msk [vmem:[%s214 + $0x68] sm:$0xff] %vm2722, %v2701
        %2737 = vst.msk [vmem:[%s214 + $0x70] sm:$0xff] %vm2722, %v2703
        %2738 = vst.msk [vmem:[%s214 + $0x78] sm:$0xff] %vm2722, %v2705
        %v2739 = vld [vmem:[%s219 + $0x80] sm:$0xf]
        %v2740 = vld [vmem:[%s219 + $0x84] sm:$0xf]
        %v2741 = vld [vmem:[%s219 + $0x88] sm:$0xf]
        %v2742 = vld [vmem:[%s219 + $0x8c] sm:$0xf]
        %v2743 = vld [vmem:[%s219 + $0x90] sm:$0xf]
        %v2744 = vld [vmem:[%s219 + $0x94] sm:$0xf]
        %v2745 = vld [vmem:[%s219 + $0x98] sm:$0xf]
        %v2746 = vld [vmem:[%s219 + $0x9c] sm:$0xf]
        %v2747 = vld [vmem:[%s219 + $0xa0] sm:$0xf]
        %v2748 = vld [vmem:[%s219 + $0xa4] sm:$0xf]
        %v2749 = vld [vmem:[%s219 + $0xa8] sm:$0xf]
        %v2750 = vld [vmem:[%s219 + $0xac] sm:$0xf]
        %v2751 = vld [vmem:[%s219 + $0xb0] sm:$0xf]
        %v2752 = vld [vmem:[%s219 + $0xb4] sm:$0xf]
        %v2753 = vld [vmem:[%s219 + $0xb8] sm:$0xf]
        %v2754 = vld [vmem:[%s219 + $0xbc] sm:$0xf]
        %v2755 = vpack.c.bf16 %v1918, %v1915
        %v2756 = vpack.c.bf16 %v1926, %v1923
        %v2757 = vpack.c.bf16 %v1934, %v1931
        %v2758 = vpack.c.bf16 %v1942, %v1939
        %v2759 = vpack.c.bf16 %v1950, %v1947
        %v2760 = vpack.c.bf16 %v1958, %v1955
        %v2761 = vpack.c.bf16 %v1966, %v1963
        %v2762 = vpack.c.bf16 %v1974, %v1971
        %v2779 = vunpack.c.l.b16 %v2739
        %v2780 = vunpack.c.l.b16 %v2740
        %v2781 = vunpack.c.l.b16 %v2741
        %v2782 = vunpack.c.l.b16 %v2742
        %v2783 = vunpack.c.l.b16 %v2743
        %v2784 = vunpack.c.l.b16 %v2744
        %v2785 = vunpack.c.l.b16 %v2745
        %v2786 = vunpack.c.l.b16 %v2746
        %v2787 = vunpack.c.l.b16 %v2747
        %v2788 = vunpack.c.l.b16 %v2748
        %v2789 = vunpack.c.l.b16 %v2749
        %v2790 = vunpack.c.l.b16 %v2750
        %v2791 = vunpack.c.l.b16 %v2751
        %v2792 = vunpack.c.l.b16 %v2752
        %v2793 = vunpack.c.l.b16 %v2753
        %v2794 = vunpack.c.l.b16 %v2754
        %v2795 = vpack.c.b16 %v2780, %v2779
        %v2796 = vpack.c.b16 %v2782, %v2781
        %v2797 = vpack.c.b16 %v2784, %v2783
        %v2798 = vpack.c.b16 %v2786, %v2785
        %v2799 = vpack.c.b16 %v2788, %v2787
        %v2800 = vpack.c.b16 %v2790, %v2789
        %v2801 = vpack.c.b16 %v2792, %v2791
        %v2802 = vpack.c.b16 %v2794, %v2793
        %2811 = vmatprep.subr.bf16.mxu0 0
        %2812 = vmatpush1.bf16.msra.mxu0 %v2762
        %2813 = vmatprep.subr.bf16.mxu0 0
        %2814 = vmatpush1.bf16.msra.mxu0 %v2761
        %2815 = vmatprep.subr.bf16.mxu0 0
        %2816 = vmatpush1.bf16.msra.mxu0 %v2760
        %2817 = vmatprep.subr.bf16.mxu0 0
        %2818 = vmatpush1.bf16.msra.mxu0 %v2759
        %2819 = vmatprep.subr.bf16.mxu0 0
        %2820 = vmatpush1.bf16.msra.mxu0 %v2758
        %2821 = vmatprep.subr.bf16.mxu0 0
        %2822 = vmatpush1.bf16.msra.mxu0 %v2757
        %2823 = vmatprep.subr.bf16.mxu0 0
        %2824 = vmatpush1.bf16.msra.mxu0 %v2756
        %2825 = vmatprep.subr.bf16.mxu0 0
        %2826 = vmatpush1.bf16.msra.mxu0 %v2755
        %2827 = vmatprep.subr.bf16.mxu0 0
        %2828 = vmatpush2.bf16.msra.mxu0 0
        %2829 = vmatprep.subr.bf16.mxu0 0
        %2830 = vmatpush2.bf16.msra.mxu0 0
        %2831 = vmatprep.subr.bf16.mxu0 0
        %2832 = vmatpush2.bf16.msra.mxu0 0
        %2833 = vmatprep.subr.bf16.mxu0 0
        %2834 = vmatpush2.bf16.msra.mxu0 0
        %2835 = vmatprep.subr.bf16.mxu0 0
        %2836 = vmatpush2.bf16.msra.mxu0 0
        %2837 = vmatprep.subr.bf16.mxu0 0
        %2838 = vmatpush2.bf16.msra.mxu0 0
        %2839 = vmatprep.subr.bf16.mxu0 0
        %2840 = vmatpush2.bf16.msra.mxu0 0
        %2841 = vmatprep.subr.bf16.mxu0 0
        %2842 = vmatpush2.bf16.msra.mxu0 0
        %2843 = vmatprep.mubr.bf16.mxu0 0
        %2844 = vmatmul.mubr.bf16.gmra.mxu0 %v2795
        %v2845 = vpop.f32.mrf.mxu0
        %v2846 = vadd.f32 %v2325, %v2845
        %v2847 = vpop.f32.mrf.mxu0
        %v2848 = vpop.f32.mrf.mxu0
        %v2849 = vadd.f32 %v2325, %v2848
        %v2850 = vpop.f32.mrf.mxu0
        %2851 = vmatprep.mubr.bf16.mxu0 0
        %2852 = vmatmul.mubr.bf16.gmra.mxu0 %v2796
        %v2853 = vpop.f32.mrf.mxu0
        %v2854 = vadd.f32 %v2325, %v2853
        %v2855 = vpop.f32.mrf.mxu0
        %v2856 = vpop.f32.mrf.mxu0
        %v2857 = vadd.f32 %v2325, %v2856
        %v2858 = vpop.f32.mrf.mxu0
        %2859 = vmatprep.mubr.bf16.mxu0 0
        %2860 = vmatmul.mubr.bf16.gmra.mxu0 %v2797
        %v2861 = vpop.f32.mrf.mxu0
        %v2862 = vadd.f32 %v2325, %v2861
        %v2863 = vpop.f32.mrf.mxu0
        %v2864 = vpop.f32.mrf.mxu0
        %v2865 = vadd.f32 %v2325, %v2864
        %v2866 = vpop.f32.mrf.mxu0
        %2867 = vmatprep.mubr.bf16.mxu0 0
        %2868 = vmatmul.mubr.bf16.gmra.mxu0 %v2798
        %v2869 = vpop.f32.mrf.mxu0
        %v2870 = vadd.f32 %v2325, %v2869
        %v2871 = vpop.f32.mrf.mxu0
        %v2872 = vpop.f32.mrf.mxu0
        %v2873 = vadd.f32 %v2325, %v2872
        %v2874 = vpop.f32.mrf.mxu0
        %2875 = vmatprep.mubr.bf16.mxu0 0
        %2876 = vmatmul.mubr.bf16.gmra.mxu0 %v2799
        %v2877 = vpop.f32.mrf.mxu0
        %v2878 = vadd.f32 %v2325, %v2877
        %v2879 = vpop.f32.mrf.mxu0
        %v2880 = vpop.f32.mrf.mxu0
        %v2881 = vadd.f32 %v2325, %v2880
        %v2882 = vpop.f32.mrf.mxu0
        %2883 = vmatprep.mubr.bf16.mxu0 0
        %2884 = vmatmul.mubr.bf16.gmra.mxu0 %v2800
        %v2885 = vpop.f32.mrf.mxu0
        %v2886 = vadd.f32 %v2325, %v2885
        %v2887 = vpop.f32.mrf.mxu0
        %v2888 = vpop.f32.mrf.mxu0
        %v2889 = vadd.f32 %v2325, %v2888
        %v2890 = vpop.f32.mrf.mxu0
        %2891 = vmatprep.mubr.bf16.mxu0 0
        %2892 = vmatmul.mubr.bf16.gmra.mxu0 %v2801
        %v2893 = vpop.f32.mrf.mxu0
        %v2894 = vadd.f32 %v2325, %v2893
        %v2895 = vpop.f32.mrf.mxu0
        %v2896 = vpop.f32.mrf.mxu0
        %v2897 = vadd.f32 %v2325, %v2896
        %v2898 = vpop.f32.mrf.mxu0
        %2899 = vmatprep.mubr.bf16.mxu0 0
        %2900 = vmatmul.mubr.bf16.gmra.mxu0 %v2802
        %v2901 = vpop.f32.mrf.mxu0
        %v2902 = vadd.f32 %v2325, %v2901
        %v2903 = vpop.f32.mrf.mxu0
        %v2904 = vpop.f32.mrf.mxu0
        %v2905 = vadd.f32 %v2325, %v2904
        %v2906 = vpop.f32.mrf.mxu0
        %2907 = vdwg.mxu0
        %2924 = vrot.lane.b32.xlu0 %v2846, 32
        %v2925 = vpop.permute.xlu0 %2924
        %2926 = vrot.lane.b32.xlu0 %v2849, 32
        %v2927 = vpop.permute.xlu0 %2926
        %2928 = vrot.lane.b32.xlu0 %v2854, 32
        %v2929 = vpop.permute.xlu0 %2928
        %2930 = vrot.lane.b32.xlu0 %v2857, 32
        %v2931 = vpop.permute.xlu0 %2930
        %2932 = vrot.lane.b32.xlu0 %v2862, 32
        %v2933 = vpop.permute.xlu0 %2932
        %2934 = vrot.lane.b32.xlu0 %v2865, 32
        %v2935 = vpop.permute.xlu0 %2934
        %2936 = vrot.lane.b32.xlu0 %v2870, 32
        %v2937 = vpop.permute.xlu0 %2936
        %2938 = vrot.lane.b32.xlu0 %v2873, 32
        %v2939 = vpop.permute.xlu0 %2938
        %2940 = vrot.lane.b32.xlu0 %v2878, 32
        %v2941 = vpop.permute.xlu0 %2940
        %2942 = vrot.lane.b32.xlu0 %v2881, 32
        %v2943 = vpop.permute.xlu0 %2942
        %2944 = vrot.lane.b32.xlu0 %v2886, 32
        %v2945 = vpop.permute.xlu0 %2944
        %2946 = vrot.lane.b32.xlu0 %v2889, 32
        %v2947 = vpop.permute.xlu0 %2946
        %2948 = vrot.lane.b32.xlu0 %v2894, 32
        %v2949 = vpop.permute.xlu0 %2948
        %2950 = vrot.lane.b32.xlu0 %v2897, 32
        %v2951 = vpop.permute.xlu0 %2950
        %2952 = vrot.lane.b32.xlu0 %v2902, 32
        %v2953 = vpop.permute.xlu0 %2952
        %2954 = vrot.lane.b32.xlu0 %v2905, 32
        %v2955 = vpop.permute.xlu0 %2954
        %vm2972 = vcmask 392448
        %2973 = vst.msk [vmem:[%s214] sm:$0xff] %vm2972, %v2925
        %2974 = vst.msk [vmem:[%s214 + $0x8] sm:$0xff] %vm2972, %v2927
        %2975 = vst.msk [vmem:[%s214 + $0x10] sm:$0xff] %vm2972, %v2929
        %2976 = vst.msk [vmem:[%s214 + $0x18] sm:$0xff] %vm2972, %v2931
        %2977 = vst.msk [vmem:[%s214 + $0x20] sm:$0xff] %vm2972, %v2933
        %2978 = vst.msk [vmem:[%s214 + $0x28] sm:$0xff] %vm2972, %v2935
        %2979 = vst.msk [vmem:[%s214 + $0x30] sm:$0xff] %vm2972, %v2937
        %2980 = vst.msk [vmem:[%s214 + $0x38] sm:$0xff] %vm2972, %v2939
        %2981 = vst.msk [vmem:[%s214 + $0x40] sm:$0xff] %vm2972, %v2941
        %2982 = vst.msk [vmem:[%s214 + $0x48] sm:$0xff] %vm2972, %v2943
        %2983 = vst.msk [vmem:[%s214 + $0x50] sm:$0xff] %vm2972, %v2945
        %2984 = vst.msk [vmem:[%s214 + $0x58] sm:$0xff] %vm2972, %v2947
        %2985 = vst.msk [vmem:[%s214 + $0x60] sm:$0xff] %vm2972, %v2949
        %2986 = vst.msk [vmem:[%s214 + $0x68] sm:$0xff] %vm2972, %v2951
        %2987 = vst.msk [vmem:[%s214 + $0x70] sm:$0xff] %vm2972, %v2953
        %2988 = vst.msk [vmem:[%s214 + $0x78] sm:$0xff] %vm2972, %v2955
        %v2989 = vld [vmem:[%s219 + $0xc0] sm:$0xf]
        %v2990 = vld [vmem:[%s219 + $0xc4] sm:$0xf]
        %v2991 = vld [vmem:[%s219 + $0xc8] sm:$0xf]
        %v2992 = vld [vmem:[%s219 + $0xcc] sm:$0xf]
        %v2993 = vld [vmem:[%s219 + $0xd0] sm:$0xf]
        %v2994 = vld [vmem:[%s219 + $0xd4] sm:$0xf]
        %v2995 = vld [vmem:[%s219 + $0xd8] sm:$0xf]
        %v2996 = vld [vmem:[%s219 + $0xdc] sm:$0xf]
        %v2997 = vld [vmem:[%s219 + $0xe0] sm:$0xf]
        %v2998 = vld [vmem:[%s219 + $0xe4] sm:$0xf]
        %v2999 = vld [vmem:[%s219 + $0xe8] sm:$0xf]
        %v3000 = vld [vmem:[%s219 + $0xec] sm:$0xf]
        %v3001 = vld [vmem:[%s219 + $0xf0] sm:$0xf]
        %v3002 = vld [vmem:[%s219 + $0xf4] sm:$0xf]
        %v3003 = vld [vmem:[%s219 + $0xf8] sm:$0xf]
        %v3004 = vld [vmem:[%s219 + $0xfc] sm:$0xf]
        %v3005 = vpack.c.bf16 %v1982, %v1979
        %v3006 = vpack.c.bf16 %v1990, %v1987
        %v3007 = vpack.c.bf16 %v1998, %v1995
        %v3008 = vpack.c.bf16 %v2006, %v2003
        %v3009 = vpack.c.bf16 %v2014, %v2011
        %v3010 = vpack.c.bf16 %v2022, %v2019
        %v3011 = vpack.c.bf16 %v2030, %v2027
        %v3012 = vpack.c.bf16 %v2038, %v2035
        %v3029 = vunpack.c.l.b16 %v2989
        %v3030 = vunpack.c.l.b16 %v2990
        %v3031 = vunpack.c.l.b16 %v2991
        %v3032 = vunpack.c.l.b16 %v2992
        %v3033 = vunpack.c.l.b16 %v2993
        %v3034 = vunpack.c.l.b16 %v2994
        %v3035 = vunpack.c.l.b16 %v2995
        %v3036 = vunpack.c.l.b16 %v2996
        %v3037 = vunpack.c.l.b16 %v2997
        %v3038 = vunpack.c.l.b16 %v2998
        %v3039 = vunpack.c.l.b16 %v2999
        %v3040 = vunpack.c.l.b16 %v3000
        %v3041 = vunpack.c.l.b16 %v3001
        %v3042 = vunpack.c.l.b16 %v3002
        %v3043 = vunpack.c.l.b16 %v3003
        %v3044 = vunpack.c.l.b16 %v3004
        %v3045 = vpack.c.b16 %v3030, %v3029
        %v3046 = vpack.c.b16 %v3032, %v3031
        %v3047 = vpack.c.b16 %v3034, %v3033
        %v3048 = vpack.c.b16 %v3036, %v3035
        %v3049 = vpack.c.b16 %v3038, %v3037
        %v3050 = vpack.c.b16 %v3040, %v3039
        %v3051 = vpack.c.b16 %v3042, %v3041
        %v3052 = vpack.c.b16 %v3044, %v3043
        %3061 = vmatprep.subr.bf16.mxu0 0
        %3062 = vmatpush1.bf16.msra.mxu0 %v3012
        %3063 = vmatprep.subr.bf16.mxu0 0
        %3064 = vmatpush1.bf16.msra.mxu0 %v3011
        %3065 = vmatprep.subr.bf16.mxu0 0
        %3066 = vmatpush1.bf16.msra.mxu0 %v3010
        %3067 = vmatprep.subr.bf16.mxu0 0
        %3068 = vmatpush1.bf16.msra.mxu0 %v3009
        %3069 = vmatprep.subr.bf16.mxu0 0
        %3070 = vmatpush1.bf16.msra.mxu0 %v3008
        %3071 = vmatprep.subr.bf16.mxu0 0
        %3072 = vmatpush1.bf16.msra.mxu0 %v3007
        %3073 = vmatprep.subr.bf16.mxu0 0
        %3074 = vmatpush1.bf16.msra.mxu0 %v3006
        %3075 = vmatprep.subr.bf16.mxu0 0
        %3076 = vmatpush1.bf16.msra.mxu0 %v3005
        %3077 = vmatprep.subr.bf16.mxu0 0
        %3078 = vmatpush2.bf16.msra.mxu0 0
        %3079 = vmatprep.subr.bf16.mxu0 0
        %3080 = vmatpush2.bf16.msra.mxu0 0
        %3081 = vmatprep.subr.bf16.mxu0 0
        %3082 = vmatpush2.bf16.msra.mxu0 0
        %3083 = vmatprep.subr.bf16.mxu0 0
        %3084 = vmatpush2.bf16.msra.mxu0 0
        %3085 = vmatprep.subr.bf16.mxu0 0
        %3086 = vmatpush2.bf16.msra.mxu0 0
        %3087 = vmatprep.subr.bf16.mxu0 0
        %3088 = vmatpush2.bf16.msra.mxu0 0
        %3089 = vmatprep.subr.bf16.mxu0 0
        %3090 = vmatpush2.bf16.msra.mxu0 0
        %3091 = vmatprep.subr.bf16.mxu0 0
        %3092 = vmatpush2.bf16.msra.mxu0 0
        %3093 = vmatprep.mubr.bf16.mxu0 0
        %3094 = vmatmul.mubr.bf16.gmra.mxu0 %v3045
        %v3095 = vpop.f32.mrf.mxu0
        %v3096 = vadd.f32 %v2325, %v3095
        %v3097 = vpop.f32.mrf.mxu0
        %v3098 = vpop.f32.mrf.mxu0
        %v3099 = vadd.f32 %v2325, %v3098
        %v3100 = vpop.f32.mrf.mxu0
        %3101 = vmatprep.mubr.bf16.mxu0 0
        %3102 = vmatmul.mubr.bf16.gmra.mxu0 %v3046
        %v3103 = vpop.f32.mrf.mxu0
        %v3104 = vadd.f32 %v2325, %v3103
        %v3105 = vpop.f32.mrf.mxu0
        %v3106 = vpop.f32.mrf.mxu0
        %v3107 = vadd.f32 %v2325, %v3106
        %v3108 = vpop.f32.mrf.mxu0
        %3109 = vmatprep.mubr.bf16.mxu0 0
        %3110 = vmatmul.mubr.bf16.gmra.mxu0 %v3047
        %v3111 = vpop.f32.mrf.mxu0
        %v3112 = vadd.f32 %v2325, %v3111
        %v3113 = vpop.f32.mrf.mxu0
        %v3114 = vpop.f32.mrf.mxu0
        %v3115 = vadd.f32 %v2325, %v3114
        %v3116 = vpop.f32.mrf.mxu0
        %3117 = vmatprep.mubr.bf16.mxu0 0
        %3118 = vmatmul.mubr.bf16.gmra.mxu0 %v3048
        %v3119 = vpop.f32.mrf.mxu0
        %v3120 = vadd.f32 %v2325, %v3119
        %v3121 = vpop.f32.mrf.mxu0
        %v3122 = vpop.f32.mrf.mxu0
        %v3123 = vadd.f32 %v2325, %v3122
        %v3124 = vpop.f32.mrf.mxu0
        %3125 = vmatprep.mubr.bf16.mxu0 0
        %3126 = vmatmul.mubr.bf16.gmra.mxu0 %v3049
        %v3127 = vpop.f32.mrf.mxu0
        %v3128 = vadd.f32 %v2325, %v3127
        %v3129 = vpop.f32.mrf.mxu0
        %v3130 = vpop.f32.mrf.mxu0
        %v3131 = vadd.f32 %v2325, %v3130
        %v3132 = vpop.f32.mrf.mxu0
        %3133 = vmatprep.mubr.bf16.mxu0 0
        %3134 = vmatmul.mubr.bf16.gmra.mxu0 %v3050
        %v3135 = vpop.f32.mrf.mxu0
        %v3136 = vadd.f32 %v2325, %v3135
        %v3137 = vpop.f32.mrf.mxu0
        %v3138 = vpop.f32.mrf.mxu0
        %v3139 = vadd.f32 %v2325, %v3138
        %v3140 = vpop.f32.mrf.mxu0
        %3141 = vmatprep.mubr.bf16.mxu0 0
        %3142 = vmatmul.mubr.bf16.gmra.mxu0 %v3051
        %v3143 = vpop.f32.mrf.mxu0
        %v3144 = vadd.f32 %v2325, %v3143
        %v3145 = vpop.f32.mrf.mxu0
        %v3146 = vpop.f32.mrf.mxu0
        %v3147 = vadd.f32 %v2325, %v3146
        %v3148 = vpop.f32.mrf.mxu0
        %3149 = vmatprep.mubr.bf16.mxu0 0
        %3150 = vmatmul.mubr.bf16.gmra.mxu0 %v3052
        %v3151 = vpop.f32.mrf.mxu0
        %v3152 = vadd.f32 %v2325, %v3151
        %v3153 = vpop.f32.mrf.mxu0
        %v3154 = vpop.f32.mrf.mxu0
        %v3155 = vadd.f32 %v2325, %v3154
        %v3156 = vpop.f32.mrf.mxu0
        %3157 = vdwg.mxu0
        %3174 = vrot.lane.b32.xlu0 %v3096, 48
        %v3175 = vpop.permute.xlu0 %3174
        %3176 = vrot.lane.b32.xlu0 %v3099, 48
        %v3177 = vpop.permute.xlu0 %3176
        %3178 = vrot.lane.b32.xlu0 %v3104, 48
        %v3179 = vpop.permute.xlu0 %3178
        %3180 = vrot.lane.b32.xlu0 %v3107, 48
        %v3181 = vpop.permute.xlu0 %3180
        %3182 = vrot.lane.b32.xlu0 %v3112, 48
        %v3183 = vpop.permute.xlu0 %3182
        %3184 = vrot.lane.b32.xlu0 %v3115, 48
        %v3185 = vpop.permute.xlu0 %3184
        %3186 = vrot.lane.b32.xlu0 %v3120, 48
        %v3187 = vpop.permute.xlu0 %3186
        %3188 = vrot.lane.b32.xlu0 %v3123, 48
        %v3189 = vpop.permute.xlu0 %3188
        %3190 = vrot.lane.b32.xlu0 %v3128, 48
        %v3191 = vpop.permute.xlu0 %3190
        %3192 = vrot.lane.b32.xlu0 %v3131, 48
        %v3193 = vpop.permute.xlu0 %3192
        %3194 = vrot.lane.b32.xlu0 %v3136, 48
        %v3195 = vpop.permute.xlu0 %3194
        %3196 = vrot.lane.b32.xlu0 %v3139, 48
        %v3197 = vpop.permute.xlu0 %3196
        %3198 = vrot.lane.b32.xlu0 %v3144, 48
        %v3199 = vpop.permute.xlu0 %3198
        %3200 = vrot.lane.b32.xlu0 %v3147, 48
        %v3201 = vpop.permute.xlu0 %3200
        %3202 = vrot.lane.b32.xlu0 %v3152, 48
        %v3203 = vpop.permute.xlu0 %3202
        %3204 = vrot.lane.b32.xlu0 %v3155, 48
        %v3205 = vpop.permute.xlu0 %3204
        %vm3222 = vcmask 523648
        %3223 = vst.msk [vmem:[%s214] sm:$0xff] %vm3222, %v3175
        %3224 = vst.msk [vmem:[%s214 + $0x8] sm:$0xff] %vm3222, %v3177
        %3225 = vst.msk [vmem:[%s214 + $0x10] sm:$0xff] %vm3222, %v3179
        %3226 = vst.msk [vmem:[%s214 + $0x18] sm:$0xff] %vm3222, %v3181
        %3227 = vst.msk [vmem:[%s214 + $0x20] sm:$0xff] %vm3222, %v3183
        %3228 = vst.msk [vmem:[%s214 + $0x28] sm:$0xff] %vm3222, %v3185
        %3229 = vst.msk [vmem:[%s214 + $0x30] sm:$0xff] %vm3222, %v3187
        %3230 = vst.msk [vmem:[%s214 + $0x38] sm:$0xff] %vm3222, %v3189
        %3231 = vst.msk [vmem:[%s214 + $0x40] sm:$0xff] %vm3222, %v3191
        %3232 = vst.msk [vmem:[%s214 + $0x48] sm:$0xff] %vm3222, %v3193
        %3233 = vst.msk [vmem:[%s214 + $0x50] sm:$0xff] %vm3222, %v3195
        %3234 = vst.msk [vmem:[%s214 + $0x58] sm:$0xff] %vm3222, %v3197
        %3235 = vst.msk [vmem:[%s214 + $0x60] sm:$0xff] %vm3222, %v3199
        %3236 = vst.msk [vmem:[%s214 + $0x68] sm:$0xff] %vm3222, %v3201
        %3237 = vst.msk [vmem:[%s214 + $0x70] sm:$0xff] %vm3222, %v3203
        %3238 = vst.msk [vmem:[%s214 + $0x78] sm:$0xff] %vm3222, %v3205
        %v3239 = vld [vmem:[%s219 + $0x100] sm:$0xf]
        %v3240 = vld [vmem:[%s219 + $0x104] sm:$0xf]
        %v3241 = vld [vmem:[%s219 + $0x108] sm:$0xf]
        %v3242 = vld [vmem:[%s219 + $0x10c] sm:$0xf]
        %v3243 = vld [vmem:[%s219 + $0x110] sm:$0xf]
        %v3244 = vld [vmem:[%s219 + $0x114] sm:$0xf]
        %v3245 = vld [vmem:[%s219 + $0x118] sm:$0xf]
        %v3246 = vld [vmem:[%s219 + $0x11c] sm:$0xf]
        %v3247 = vld [vmem:[%s219 + $0x120] sm:$0xf]
        %v3248 = vld [vmem:[%s219 + $0x124] sm:$0xf]
        %v3249 = vld [vmem:[%s219 + $0x128] sm:$0xf]
        %v3250 = vld [vmem:[%s219 + $0x12c] sm:$0xf]
        %v3251 = vld [vmem:[%s219 + $0x130] sm:$0xf]
        %v3252 = vld [vmem:[%s219 + $0x134] sm:$0xf]
        %v3253 = vld [vmem:[%s219 + $0x138] sm:$0xf]
        %v3254 = vld [vmem:[%s219 + $0x13c] sm:$0xf]
        %v3255 = vpack.c.bf16 %v2046, %v2043
        %v3256 = vpack.c.bf16 %v2054, %v2051
        %v3257 = vpack.c.bf16 %v2062, %v2059
        %v3258 = vpack.c.bf16 %v2070, %v2067
        %v3259 = vpack.c.bf16 %v2078, %v2075
        %v3260 = vpack.c.bf16 %v2086, %v2083
        %v3261 = vpack.c.bf16 %v2094, %v2091
        %v3262 = vpack.c.bf16 %v2102, %v2099
        %v3279 = vunpack.c.l.b16 %v3239
        %v3280 = vunpack.c.l.b16 %v3240
        %v3281 = vunpack.c.l.b16 %v3241
        %v3282 = vunpack.c.l.b16 %v3242
        %v3283 = vunpack.c.l.b16 %v3243
        %v3284 = vunpack.c.l.b16 %v3244
        %v3285 = vunpack.c.l.b16 %v3245
        %v3286 = vunpack.c.l.b16 %v3246
        %v3287 = vunpack.c.l.b16 %v3247
        %v3288 = vunpack.c.l.b16 %v3248
        %v3289 = vunpack.c.l.b16 %v3249
        %v3290 = vunpack.c.l.b16 %v3250
        %v3291 = vunpack.c.l.b16 %v3251
        %v3292 = vunpack.c.l.b16 %v3252
        %v3293 = vunpack.c.l.b16 %v3253
        %v3294 = vunpack.c.l.b16 %v3254
        %v3295 = vpack.c.b16 %v3280, %v3279
        %v3296 = vpack.c.b16 %v3282, %v3281
        %v3297 = vpack.c.b16 %v3284, %v3283
        %v3298 = vpack.c.b16 %v3286, %v3285
        %v3299 = vpack.c.b16 %v3288, %v3287
        %v3300 = vpack.c.b16 %v3290, %v3289
        %v3301 = vpack.c.b16 %v3292, %v3291
        %v3302 = vpack.c.b16 %v3294, %v3293
        %3311 = vmatprep.subr.bf16.mxu0 0
        %3312 = vmatpush1.bf16.msra.mxu0 %v3262
        %3313 = vmatprep.subr.bf16.mxu0 0
        %3314 = vmatpush1.bf16.msra.mxu0 %v3261
        %3315 = vmatprep.subr.bf16.mxu0 0
        %3316 = vmatpush1.bf16.msra.mxu0 %v3260
        %3317 = vmatprep.subr.bf16.mxu0 0
        %3318 = vmatpush1.bf16.msra.mxu0 %v3259
        %3319 = vmatprep.subr.bf16.mxu0 0
        %3320 = vmatpush1.bf16.msra.mxu0 %v3258
        %3321 = vmatprep.subr.bf16.mxu0 0
        %3322 = vmatpush1.bf16.msra.mxu0 %v3257
        %3323 = vmatprep.subr.bf16.mxu0 0
        %3324 = vmatpush1.bf16.msra.mxu0 %v3256
        %3325 = vmatprep.subr.bf16.mxu0 0
        %3326 = vmatpush1.bf16.msra.mxu0 %v3255
        %3327 = vmatprep.subr.bf16.mxu0 0
        %3328 = vmatpush2.bf16.msra.mxu0 0
        %3329 = vmatprep.subr.bf16.mxu0 0
        %3330 = vmatpush2.bf16.msra.mxu0 0
        %3331 = vmatprep.subr.bf16.mxu0 0
        %3332 = vmatpush2.bf16.msra.mxu0 0
        %3333 = vmatprep.subr.bf16.mxu0 0
        %3334 = vmatpush2.bf16.msra.mxu0 0
        %3335 = vmatprep.subr.bf16.mxu0 0
        %3336 = vmatpush2.bf16.msra.mxu0 0
        %3337 = vmatprep.subr.bf16.mxu0 0
        %3338 = vmatpush2.bf16.msra.mxu0 0
        %3339 = vmatprep.subr.bf16.mxu0 0
        %3340 = vmatpush2.bf16.msra.mxu0 0
        %3341 = vmatprep.subr.bf16.mxu0 0
        %3342 = vmatpush2.bf16.msra.mxu0 0
        %3343 = vmatprep.mubr.bf16.mxu0 0
        %3344 = vmatmul.mubr.bf16.gmra.mxu0 %v3295
        %v3345 = vpop.f32.mrf.mxu0
        %v3346 = vadd.f32 %v2325, %v3345
        %v3347 = vpop.f32.mrf.mxu0
        %v3348 = vpop.f32.mrf.mxu0
        %v3349 = vadd.f32 %v2325, %v3348
        %v3350 = vpop.f32.mrf.mxu0
        %3351 = vmatprep.mubr.bf16.mxu0 0
        %3352 = vmatmul.mubr.bf16.gmra.mxu0 %v3296
        %v3353 = vpop.f32.mrf.mxu0
        %v3354 = vadd.f32 %v2325, %v3353
        %v3355 = vpop.f32.mrf.mxu0
        %v3356 = vpop.f32.mrf.mxu0
        %v3357 = vadd.f32 %v2325, %v3356
        %v3358 = vpop.f32.mrf.mxu0
        %3359 = vmatprep.mubr.bf16.mxu0 0
        %3360 = vmatmul.mubr.bf16.gmra.mxu0 %v3297
        %v3361 = vpop.f32.mrf.mxu0
        %v3362 = vadd.f32 %v2325, %v3361
        %v3363 = vpop.f32.mrf.mxu0
        %v3364 = vpop.f32.mrf.mxu0
        %v3365 = vadd.f32 %v2325, %v3364
        %v3366 = vpop.f32.mrf.mxu0
        %3367 = vmatprep.mubr.bf16.mxu0 0
        %3368 = vmatmul.mubr.bf16.gmra.mxu0 %v3298
        %v3369 = vpop.f32.mrf.mxu0
        %v3370 = vadd.f32 %v2325, %v3369
        %v3371 = vpop.f32.mrf.mxu0
        %v3372 = vpop.f32.mrf.mxu0
        %v3373 = vadd.f32 %v2325, %v3372
        %v3374 = vpop.f32.mrf.mxu0
        %3375 = vmatprep.mubr.bf16.mxu0 0
        %3376 = vmatmul.mubr.bf16.gmra.mxu0 %v3299
        %v3377 = vpop.f32.mrf.mxu0
        %v3378 = vadd.f32 %v2325, %v3377
        %v3379 = vpop.f32.mrf.mxu0
        %v3380 = vpop.f32.mrf.mxu0
        %v3381 = vadd.f32 %v2325, %v3380
        %v3382 = vpop.f32.mrf.mxu0
        %3383 = vmatprep.mubr.bf16.mxu0 0
        %3384 = vmatmul.mubr.bf16.gmra.mxu0 %v3300
        %v3385 = vpop.f32.mrf.mxu0
        %v3386 = vadd.f32 %v2325, %v3385
        %v3387 = vpop.f32.mrf.mxu0
        %v3388 = vpop.f32.mrf.mxu0
        %v3389 = vadd.f32 %v2325, %v3388
        %v3390 = vpop.f32.mrf.mxu0
        %3391 = vmatprep.mubr.bf16.mxu0 0
        %3392 = vmatmul.mubr.bf16.gmra.mxu0 %v3301
        %v3393 = vpop.f32.mrf.mxu0
        %v3394 = vadd.f32 %v2325, %v3393
        %v3395 = vpop.f32.mrf.mxu0
        %v3396 = vpop.f32.mrf.mxu0
        %v3397 = vadd.f32 %v2325, %v3396
        %v3398 = vpop.f32.mrf.mxu0
        %3399 = vmatprep.mubr.bf16.mxu0 0
        %3400 = vmatmul.mubr.bf16.gmra.mxu0 %v3302
        %v3401 = vpop.f32.mrf.mxu0
        %v3402 = vadd.f32 %v2325, %v3401
        %v3403 = vpop.f32.mrf.mxu0
        %v3404 = vpop.f32.mrf.mxu0
        %v3405 = vadd.f32 %v2325, %v3404
        %v3406 = vpop.f32.mrf.mxu0
        %3407 = vdwg.mxu0
        %3424 = vrot.lane.b32.xlu0 %v3346, 64
        %v3425 = vpop.permute.xlu0 %3424
        %3426 = vrot.lane.b32.xlu0 %v3349, 64
        %v3427 = vpop.permute.xlu0 %3426
        %3428 = vrot.lane.b32.xlu0 %v3354, 64
        %v3429 = vpop.permute.xlu0 %3428
        %3430 = vrot.lane.b32.xlu0 %v3357, 64
        %v3431 = vpop.permute.xlu0 %3430
        %3432 = vrot.lane.b32.xlu0 %v3362, 64
        %v3433 = vpop.permute.xlu0 %3432
        %3434 = vrot.lane.b32.xlu0 %v3365, 64
        %v3435 = vpop.permute.xlu0 %3434
        %3436 = vrot.lane.b32.xlu0 %v3370, 64
        %v3437 = vpop.permute.xlu0 %3436
        %3438 = vrot.lane.b32.xlu0 %v3373, 64
        %v3439 = vpop.permute.xlu0 %3438
        %3440 = vrot.lane.b32.xlu0 %v3378, 64
        %v3441 = vpop.permute.xlu0 %3440
        %3442 = vrot.lane.b32.xlu0 %v3381, 64
        %v3443 = vpop.permute.xlu0 %3442
        %3444 = vrot.lane.b32.xlu0 %v3386, 64
        %v3445 = vpop.permute.xlu0 %3444
        %3446 = vrot.lane.b32.xlu0 %v3389, 64
        %v3447 = vpop.permute.xlu0 %3446
        %3448 = vrot.lane.b32.xlu0 %v3394, 64
        %v3449 = vpop.permute.xlu0 %3448
        %3450 = vrot.lane.b32.xlu0 %v3397, 64
        %v3451 = vpop.permute.xlu0 %3450
        %3452 = vrot.lane.b32.xlu0 %v3402, 64
        %v3453 = vpop.permute.xlu0 %3452
        %3454 = vrot.lane.b32.xlu0 %v3405, 64
        %v3455 = vpop.permute.xlu0 %3454
        %vm3472 = vcmask 654848
        %3473 = vst.msk [vmem:[%s214] sm:$0xff] %vm3472, %v3425
        %3474 = vst.msk [vmem:[%s214 + $0x8] sm:$0xff] %vm3472, %v3427
        %3475 = vst.msk [vmem:[%s214 + $0x10] sm:$0xff] %vm3472, %v3429
        %3476 = vst.msk [vmem:[%s214 + $0x18] sm:$0xff] %vm3472, %v3431
        %3477 = vst.msk [vmem:[%s214 + $0x20] sm:$0xff] %vm3472, %v3433
        %3478 = vst.msk [vmem:[%s214 + $0x28] sm:$0xff] %vm3472, %v3435
        %3479 = vst.msk [vmem:[%s214 + $0x30] sm:$0xff] %vm3472, %v3437
        %3480 = vst.msk [vmem:[%s214 + $0x38] sm:$0xff] %vm3472, %v3439
        %3481 = vst.msk [vmem:[%s214 + $0x40] sm:$0xff] %vm3472, %v3441
        %3482 = vst.msk [vmem:[%s214 + $0x48] sm:$0xff] %vm3472, %v3443
        %3483 = vst.msk [vmem:[%s214 + $0x50] sm:$0xff] %vm3472, %v3445
        %3484 = vst.msk [vmem:[%s214 + $0x58] sm:$0xff] %vm3472, %v3447
        %3485 = vst.msk [vmem:[%s214 + $0x60] sm:$0xff] %vm3472, %v3449
        %3486 = vst.msk [vmem:[%s214 + $0x68] sm:$0xff] %vm3472, %v3451
        %3487 = vst.msk [vmem:[%s214 + $0x70] sm:$0xff] %vm3472, %v3453
        %3488 = vst.msk [vmem:[%s214 + $0x78] sm:$0xff] %vm3472, %v3455
        %v3489 = vld [vmem:[%s219 + $0x140] sm:$0xf]
        %v3490 = vld [vmem:[%s219 + $0x144] sm:$0xf]
        %v3491 = vld [vmem:[%s219 + $0x148] sm:$0xf]
        %v3492 = vld [vmem:[%s219 + $0x14c] sm:$0xf]
        %v3493 = vld [vmem:[%s219 + $0x150] sm:$0xf]
        %v3494 = vld [vmem:[%s219 + $0x154] sm:$0xf]
        %v3495 = vld [vmem:[%s219 + $0x158] sm:$0xf]
        %v3496 = vld [vmem:[%s219 + $0x15c] sm:$0xf]
        %v3497 = vld [vmem:[%s219 + $0x160] sm:$0xf]
        %v3498 = vld [vmem:[%s219 + $0x164] sm:$0xf]
        %v3499 = vld [vmem:[%s219 + $0x168] sm:$0xf]
        %v3500 = vld [vmem:[%s219 + $0x16c] sm:$0xf]
        %v3501 = vld [vmem:[%s219 + $0x170] sm:$0xf]
        %v3502 = vld [vmem:[%s219 + $0x174] sm:$0xf]
        %v3503 = vld [vmem:[%s219 + $0x178] sm:$0xf]
        %v3504 = vld [vmem:[%s219 + $0x17c] sm:$0xf]
        %v3505 = vpack.c.bf16 %v2110, %v2107
        %v3506 = vpack.c.bf16 %v2118, %v2115
        %v3507 = vpack.c.bf16 %v2126, %v2123
        %v3508 = vpack.c.bf16 %v2134, %v2131
        %v3509 = vpack.c.bf16 %v2142, %v2139
        %v3510 = vpack.c.bf16 %v2150, %v2147
        %v3511 = vpack.c.bf16 %v2158, %v2155
        %v3512 = vpack.c.bf16 %v2166, %v2163
        %v3529 = vunpack.c.l.b16 %v3489
        %v3530 = vunpack.c.l.b16 %v3490
        %v3531 = vunpack.c.l.b16 %v3491
        %v3532 = vunpack.c.l.b16 %v3492
        %v3533 = vunpack.c.l.b16 %v3493
        %v3534 = vunpack.c.l.b16 %v3494
        %v3535 = vunpack.c.l.b16 %v3495
        %v3536 = vunpack.c.l.b16 %v3496
        %v3537 = vunpack.c.l.b16 %v3497
        %v3538 = vunpack.c.l.b16 %v3498
        %v3539 = vunpack.c.l.b16 %v3499
        %v3540 = vunpack.c.l.b16 %v3500
        %v3541 = vunpack.c.l.b16 %v3501
        %v3542 = vunpack.c.l.b16 %v3502
        %v3543 = vunpack.c.l.b16 %v3503
        %v3544 = vunpack.c.l.b16 %v3504
        %v3545 = vpack.c.b16 %v3530, %v3529
        %v3546 = vpack.c.b16 %v3532, %v3531
        %v3547 = vpack.c.b16 %v3534, %v3533
        %v3548 = vpack.c.b16 %v3536, %v3535
        %v3549 = vpack.c.b16 %v3538, %v3537
        %v3550 = vpack.c.b16 %v3540, %v3539
        %v3551 = vpack.c.b16 %v3542, %v3541
        %v3552 = vpack.c.b16 %v3544, %v3543
        %3561 = vmatprep.subr.bf16.mxu0 0
        %3562 = vmatpush1.bf16.msra.mxu0 %v3512
        %3563 = vmatprep.subr.bf16.mxu0 0
        %3564 = vmatpush1.bf16.msra.mxu0 %v3511
        %3565 = vmatprep.subr.bf16.mxu0 0
        %3566 = vmatpush1.bf16.msra.mxu0 %v3510
        %3567 = vmatprep.subr.bf16.mxu0 0
        %3568 = vmatpush1.bf16.msra.mxu0 %v3509
        %3569 = vmatprep.subr.bf16.mxu0 0
        %3570 = vmatpush1.bf16.msra.mxu0 %v3508
        %3571 = vmatprep.subr.bf16.mxu0 0
        %3572 = vmatpush1.bf16.msra.mxu0 %v3507
        %3573 = vmatprep.subr.bf16.mxu0 0
        %3574 = vmatpush1.bf16.msra.mxu0 %v3506
        %3575 = vmatprep.subr.bf16.mxu0 0
        %3576 = vmatpush1.bf16.msra.mxu0 %v3505
        %3577 = vmatprep.subr.bf16.mxu0 0
        %3578 = vmatpush2.bf16.msra.mxu0 0
        %3579 = vmatprep.subr.bf16.mxu0 0
        %3580 = vmatpush2.bf16.msra.mxu0 0
        %3581 = vmatprep.subr.bf16.mxu0 0
        %3582 = vmatpush2.bf16.msra.mxu0 0
        %3583 = vmatprep.subr.bf16.mxu0 0
        %3584 = vmatpush2.bf16.msra.mxu0 0
        %3585 = vmatprep.subr.bf16.mxu0 0
        %3586 = vmatpush2.bf16.msra.mxu0 0
        %3587 = vmatprep.subr.bf16.mxu0 0
        %3588 = vmatpush2.bf16.msra.mxu0 0
        %3589 = vmatprep.subr.bf16.mxu0 0
        %3590 = vmatpush2.bf16.msra.mxu0 0
        %3591 = vmatprep.subr.bf16.mxu0 0
        %3592 = vmatpush2.bf16.msra.mxu0 0
        %3593 = vmatprep.mubr.bf16.mxu0 0
        %3594 = vmatmul.mubr.bf16.gmra.mxu0 %v3545
        %v3595 = vpop.f32.mrf.mxu0
        %v3596 = vadd.f32 %v2325, %v3595
        %v3597 = vpop.f32.mrf.mxu0
        %v3598 = vpop.f32.mrf.mxu0
        %v3599 = vadd.f32 %v2325, %v3598
        %v3600 = vpop.f32.mrf.mxu0
        %3601 = vmatprep.mubr.bf16.mxu0 0
        %3602 = vmatmul.mubr.bf16.gmra.mxu0 %v3546
        %v3603 = vpop.f32.mrf.mxu0
        %v3604 = vadd.f32 %v2325, %v3603
        %v3605 = vpop.f32.mrf.mxu0
        %v3606 = vpop.f32.mrf.mxu0
        %v3607 = vadd.f32 %v2325, %v3606
        %v3608 = vpop.f32.mrf.mxu0
        %3609 = vmatprep.mubr.bf16.mxu0 0
        %3610 = vmatmul.mubr.bf16.gmra.mxu0 %v3547
        %v3611 = vpop.f32.mrf.mxu0
        %v3612 = vadd.f32 %v2325, %v3611
        %v3613 = vpop.f32.mrf.mxu0
        %v3614 = vpop.f32.mrf.mxu0
        %v3615 = vadd.f32 %v2325, %v3614
        %v3616 = vpop.f32.mrf.mxu0
        %3617 = vmatprep.mubr.bf16.mxu0 0
        %3618 = vmatmul.mubr.bf16.gmra.mxu0 %v3548
        %v3619 = vpop.f32.mrf.mxu0
        %v3620 = vadd.f32 %v2325, %v3619
        %v3621 = vpop.f32.mrf.mxu0
        %v3622 = vpop.f32.mrf.mxu0
        %v3623 = vadd.f32 %v2325, %v3622
        %v3624 = vpop.f32.mrf.mxu0
        %3625 = vmatprep.mubr.bf16.mxu0 0
        %3626 = vmatmul.mubr.bf16.gmra.mxu0 %v3549
        %v3627 = vpop.f32.mrf.mxu0
        %v3628 = vadd.f32 %v2325, %v3627
        %v3629 = vpop.f32.mrf.mxu0
        %v3630 = vpop.f32.mrf.mxu0
        %v3631 = vadd.f32 %v2325, %v3630
        %v3632 = vpop.f32.mrf.mxu0
        %3633 = vmatprep.mubr.bf16.mxu0 0
        %3634 = vmatmul.mubr.bf16.gmra.mxu0 %v3550
        %v3635 = vpop.f32.mrf.mxu0
        %v3636 = vadd.f32 %v2325, %v3635
        %v3637 = vpop.f32.mrf.mxu0
        %v3638 = vpop.f32.mrf.mxu0
        %v3639 = vadd.f32 %v2325, %v3638
        %v3640 = vpop.f32.mrf.mxu0
        %3641 = vmatprep.mubr.bf16.mxu0 0
        %3642 = vmatmul.mubr.bf16.gmra.mxu0 %v3551
        %v3643 = vpop.f32.mrf.mxu0
        %v3644 = vadd.f32 %v2325, %v3643
        %v3645 = vpop.f32.mrf.mxu0
        %v3646 = vpop.f32.mrf.mxu0
        %v3647 = vadd.f32 %v2325, %v3646
        %v3648 = vpop.f32.mrf.mxu0
        %3649 = vmatprep.mubr.bf16.mxu0 0
        %3650 = vmatmul.mubr.bf16.gmra.mxu0 %v3552
        %v3651 = vpop.f32.mrf.mxu0
        %v3652 = vadd.f32 %v2325, %v3651
        %v3653 = vpop.f32.mrf.mxu0
        %v3654 = vpop.f32.mrf.mxu0
        %v3655 = vadd.f32 %v2325, %v3654
        %v3656 = vpop.f32.mrf.mxu0
        %3657 = vdwg.mxu0
        %3674 = vrot.lane.b32.xlu0 %v3596, 80
        %v3675 = vpop.permute.xlu0 %3674
        %3676 = vrot.lane.b32.xlu0 %v3599, 80
        %v3677 = vpop.permute.xlu0 %3676
        %3678 = vrot.lane.b32.xlu0 %v3604, 80
        %v3679 = vpop.permute.xlu0 %3678
        %3680 = vrot.lane.b32.xlu0 %v3607, 80
        %v3681 = vpop.permute.xlu0 %3680
        %3682 = vrot.lane.b32.xlu0 %v3612, 80
        %v3683 = vpop.permute.xlu0 %3682
        %3684 = vrot.lane.b32.xlu0 %v3615, 80
        %v3685 = vpop.permute.xlu0 %3684
        %3686 = vrot.lane.b32.xlu0 %v3620, 80
        %v3687 = vpop.permute.xlu0 %3686
        %3688 = vrot.lane.b32.xlu0 %v3623, 80
        %v3689 = vpop.permute.xlu0 %3688
        %3690 = vrot.lane.b32.xlu0 %v3628, 80
        %v3691 = vpop.permute.xlu0 %3690
        %3692 = vrot.lane.b32.xlu0 %v3631, 80
        %v3693 = vpop.permute.xlu0 %3692
        %3694 = vrot.lane.b32.xlu0 %v3636, 80
        %v3695 = vpop.permute.xlu0 %3694
        %3696 = vrot.lane.b32.xlu0 %v3639, 80
        %v3697 = vpop.permute.xlu0 %3696
        %3698 = vrot.lane.b32.xlu0 %v3644, 80
        %v3699 = vpop.permute.xlu0 %3698
        %3700 = vrot.lane.b32.xlu0 %v3647, 80
        %v3701 = vpop.permute.xlu0 %3700
        %3702 = vrot.lane.b32.xlu0 %v3652, 80
        %v3703 = vpop.permute.xlu0 %3702
        %3704 = vrot.lane.b32.xlu0 %v3655, 80
        %v3705 = vpop.permute.xlu0 %3704
        %vm3722 = vcmask 786048
        %3723 = vst.msk [vmem:[%s214] sm:$0xff] %vm3722, %v3675
        %3724 = vst.msk [vmem:[%s214 + $0x8] sm:$0xff] %vm3722, %v3677
        %3725 = vst.msk [vmem:[%s214 + $0x10] sm:$0xff] %vm3722, %v3679
        %3726 = vst.msk [vmem:[%s214 + $0x18] sm:$0xff] %vm3722, %v3681
        %3727 = vst.msk [vmem:[%s214 + $0x20] sm:$0xff] %vm3722, %v3683
        %3728 = vst.msk [vmem:[%s214 + $0x28] sm:$0xff] %vm3722, %v3685
        %3729 = vst.msk [vmem:[%s214 + $0x30] sm:$0xff] %vm3722, %v3687
        %3730 = vst.msk [vmem:[%s214 + $0x38] sm:$0xff] %vm3722, %v3689
        %3731 = vst.msk [vmem:[%s214 + $0x40] sm:$0xff] %vm3722, %v3691
        %3732 = vst.msk [vmem:[%s214 + $0x48] sm:$0xff] %vm3722, %v3693
        %3733 = vst.msk [vmem:[%s214 + $0x50] sm:$0xff] %vm3722, %v3695
        %3734 = vst.msk [vmem:[%s214 + $0x58] sm:$0xff] %vm3722, %v3697
        %3735 = vst.msk [vmem:[%s214 + $0x60] sm:$0xff] %vm3722, %v3699
        %3736 = vst.msk [vmem:[%s214 + $0x68] sm:$0xff] %vm3722, %v3701
        %3737 = vst.msk [vmem:[%s214 + $0x70] sm:$0xff] %vm3722, %v3703
        %3738 = vst.msk [vmem:[%s214 + $0x78] sm:$0xff] %vm3722, %v3705
        %v3739 = vld [vmem:[%s219 + $0x180] sm:$0xf]
        %v3740 = vld [vmem:[%s219 + $0x184] sm:$0xf]
        %v3741 = vld [vmem:[%s219 + $0x188] sm:$0xf]
        %v3742 = vld [vmem:[%s219 + $0x18c] sm:$0xf]
        %v3743 = vld [vmem:[%s219 + $0x190] sm:$0xf]
        %v3744 = vld [vmem:[%s219 + $0x194] sm:$0xf]
        %v3745 = vld [vmem:[%s219 + $0x198] sm:$0xf]
        %v3746 = vld [vmem:[%s219 + $0x19c] sm:$0xf]
        %v3747 = vld [vmem:[%s219 + $0x1a0] sm:$0xf]
        %v3748 = vld [vmem:[%s219 + $0x1a4] sm:$0xf]
        %v3749 = vld [vmem:[%s219 + $0x1a8] sm:$0xf]
        %v3750 = vld [vmem:[%s219 + $0x1ac] sm:$0xf]
        %v3751 = vld [vmem:[%s219 + $0x1b0] sm:$0xf]
        %v3752 = vld [vmem:[%s219 + $0x1b4] sm:$0xf]
        %v3753 = vld [vmem:[%s219 + $0x1b8] sm:$0xf]
        %v3754 = vld [vmem:[%s219 + $0x1bc] sm:$0xf]
        %v3755 = vpack.c.bf16 %v2174, %v2171
        %v3756 = vpack.c.bf16 %v2182, %v2179
        %v3757 = vpack.c.bf16 %v2190, %v2187
        %v3758 = vpack.c.bf16 %v2198, %v2195
        %v3759 = vpack.c.bf16 %v2206, %v2203
        %v3760 = vpack.c.bf16 %v2214, %v2211
        %v3761 = vpack.c.bf16 %v2222, %v2219
        %v3762 = vpack.c.bf16 %v2230, %v2227
        %v3779 = vunpack.c.l.b16 %v3739
        %v3780 = vunpack.c.l.b16 %v3740
        %v3781 = vunpack.c.l.b16 %v3741
        %v3782 = vunpack.c.l.b16 %v3742
        %v3783 = vunpack.c.l.b16 %v3743
        %v3784 = vunpack.c.l.b16 %v3744
        %v3785 = vunpack.c.l.b16 %v3745
        %v3786 = vunpack.c.l.b16 %v3746
        %v3787 = vunpack.c.l.b16 %v3747
        %v3788 = vunpack.c.l.b16 %v3748
        %v3789 = vunpack.c.l.b16 %v3749
        %v3790 = vunpack.c.l.b16 %v3750
        %v3791 = vunpack.c.l.b16 %v3751
        %v3792 = vunpack.c.l.b16 %v3752
        %v3793 = vunpack.c.l.b16 %v3753
        %v3794 = vunpack.c.l.b16 %v3754
        %v3795 = vpack.c.b16 %v3780, %v3779
        %v3796 = vpack.c.b16 %v3782, %v3781
        %v3797 = vpack.c.b16 %v3784, %v3783
        %v3798 = vpack.c.b16 %v3786, %v3785
        %v3799 = vpack.c.b16 %v3788, %v3787
        %v3800 = vpack.c.b16 %v3790, %v3789
        %v3801 = vpack.c.b16 %v3792, %v3791
        %v3802 = vpack.c.b16 %v3794, %v3793
        %3811 = vmatprep.subr.bf16.mxu0 0
        %3812 = vmatpush1.bf16.msra.mxu0 %v3762
        %3813 = vmatprep.subr.bf16.mxu0 0
        %3814 = vmatpush1.bf16.msra.mxu0 %v3761
        %3815 = vmatprep.subr.bf16.mxu0 0
        %3816 = vmatpush1.bf16.msra.mxu0 %v3760
        %3817 = vmatprep.subr.bf16.mxu0 0
        %3818 = vmatpush1.bf16.msra.mxu0 %v3759
        %3819 = vmatprep.subr.bf16.mxu0 0
        %3820 = vmatpush1.bf16.msra.mxu0 %v3758
        %3821 = vmatprep.subr.bf16.mxu0 0
        %3822 = vmatpush1.bf16.msra.mxu0 %v3757
        %3823 = vmatprep.subr.bf16.mxu0 0
        %3824 = vmatpush1.bf16.msra.mxu0 %v3756
        %3825 = vmatprep.subr.bf16.mxu0 0
        %3826 = vmatpush1.bf16.msra.mxu0 %v3755
        %3827 = vmatprep.subr.bf16.mxu0 0
        %3828 = vmatpush2.bf16.msra.mxu0 0
        %3829 = vmatprep.subr.bf16.mxu0 0
        %3830 = vmatpush2.bf16.msra.mxu0 0
        %3831 = vmatprep.subr.bf16.mxu0 0
        %3832 = vmatpush2.bf16.msra.mxu0 0
        %3833 = vmatprep.subr.bf16.mxu0 0
        %3834 = vmatpush2.bf16.msra.mxu0 0
        %3835 = vmatprep.subr.bf16.mxu0 0
        %3836 = vmatpush2.bf16.msra.mxu0 0
        %3837 = vmatprep.subr.bf16.mxu0 0
        %3838 = vmatpush2.bf16.msra.mxu0 0
        %3839 = vmatprep.subr.bf16.mxu0 0
        %3840 = vmatpush2.bf16.msra.mxu0 0
        %3841 = vmatprep.subr.bf16.mxu0 0
        %3842 = vmatpush2.bf16.msra.mxu0 0
        %3843 = vmatprep.mubr.bf16.mxu0 0
        %3844 = vmatmul.mubr.bf16.gmra.mxu0 %v3795
        %v3845 = vpop.f32.mrf.mxu0
        %v3846 = vadd.f32 %v2325, %v3845
        %v3847 = vpop.f32.mrf.mxu0
        %v3848 = vpop.f32.mrf.mxu0
        %v3849 = vadd.f32 %v2325, %v3848
        %v3850 = vpop.f32.mrf.mxu0
        %3851 = vmatprep.mubr.bf16.mxu0 0
        %3852 = vmatmul.mubr.bf16.gmra.mxu0 %v3796
        %v3853 = vpop.f32.mrf.mxu0
        %v3854 = vadd.f32 %v2325, %v3853
        %v3855 = vpop.f32.mrf.mxu0
        %v3856 = vpop.f32.mrf.mxu0
        %v3857 = vadd.f32 %v2325, %v3856
        %v3858 = vpop.f32.mrf.mxu0
        %3859 = vmatprep.mubr.bf16.mxu0 0
        %3860 = vmatmul.mubr.bf16.gmra.mxu0 %v3797
        %v3861 = vpop.f32.mrf.mxu0
        %v3862 = vadd.f32 %v2325, %v3861
        %v3863 = vpop.f32.mrf.mxu0
        %v3864 = vpop.f32.mrf.mxu0
        %v3865 = vadd.f32 %v2325, %v3864
        %v3866 = vpop.f32.mrf.mxu0
        %3867 = vmatprep.mubr.bf16.mxu0 0
        %3868 = vmatmul.mubr.bf16.gmra.mxu0 %v3798
        %v3869 = vpop.f32.mrf.mxu0
        %v3870 = vadd.f32 %v2325, %v3869
        %v3871 = vpop.f32.mrf.mxu0
        %v3872 = vpop.f32.mrf.mxu0
        %v3873 = vadd.f32 %v2325, %v3872
        %v3874 = vpop.f32.mrf.mxu0
        %3875 = vmatprep.mubr.bf16.mxu0 0
        %3876 = vmatmul.mubr.bf16.gmra.mxu0 %v3799
        %v3877 = vpop.f32.mrf.mxu0
        %v3878 = vadd.f32 %v2325, %v3877
        %v3879 = vpop.f32.mrf.mxu0
        %v3880 = vpop.f32.mrf.mxu0
        %v3881 = vadd.f32 %v2325, %v3880
        %v3882 = vpop.f32.mrf.mxu0
        %3883 = vmatprep.mubr.bf16.mxu0 0
        %3884 = vmatmul.mubr.bf16.gmra.mxu0 %v3800
        %v3885 = vpop.f32.mrf.mxu0
        %v3886 = vadd.f32 %v2325, %v3885
        %v3887 = vpop.f32.mrf.mxu0
        %v3888 = vpop.f32.mrf.mxu0
        %v3889 = vadd.f32 %v2325, %v3888
        %v3890 = vpop.f32.mrf.mxu0
        %3891 = vmatprep.mubr.bf16.mxu0 0
        %3892 = vmatmul.mubr.bf16.gmra.mxu0 %v3801
        %v3893 = vpop.f32.mrf.mxu0
        %v3894 = vadd.f32 %v2325, %v3893
        %v3895 = vpop.f32.mrf.mxu0
        %v3896 = vpop.f32.mrf.mxu0
        %v3897 = vadd.f32 %v2325, %v3896
        %v3898 = vpop.f32.mrf.mxu0
        %3899 = vmatprep.mubr.bf16.mxu0 0
        %3900 = vmatmul.mubr.bf16.gmra.mxu0 %v3802
        %v3901 = vpop.f32.mrf.mxu0
        %v3902 = vadd.f32 %v2325, %v3901
        %v3903 = vpop.f32.mrf.mxu0
        %v3904 = vpop.f32.mrf.mxu0
        %v3905 = vadd.f32 %v2325, %v3904
        %v3906 = vpop.f32.mrf.mxu0
        %3907 = vdwg.mxu0
        %3924 = vrot.lane.b32.xlu0 %v3846, 96
        %v3925 = vpop.permute.xlu0 %3924
        %3926 = vrot.lane.b32.xlu0 %v3849, 96
        %v3927 = vpop.permute.xlu0 %3926
        %3928 = vrot.lane.b32.xlu0 %v3854, 96
        %v3929 = vpop.permute.xlu0 %3928
        %3930 = vrot.lane.b32.xlu0 %v3857, 96
        %v3931 = vpop.permute.xlu0 %3930
        %3932 = vrot.lane.b32.xlu0 %v3862, 96
        %v3933 = vpop.permute.xlu0 %3932
        %3934 = vrot.lane.b32.xlu0 %v3865, 96
        %v3935 = vpop.permute.xlu0 %3934
        %3936 = vrot.lane.b32.xlu0 %v3870, 96
        %v3937 = vpop.permute.xlu0 %3936
        %3938 = vrot.lane.b32.xlu0 %v3873, 96
        %v3939 = vpop.permute.xlu0 %3938
        %3940 = vrot.lane.b32.xlu0 %v3878, 96
        %v3941 = vpop.permute.xlu0 %3940
        %3942 = vrot.lane.b32.xlu0 %v3881, 96
        %v3943 = vpop.permute.xlu0 %3942
        %3944 = vrot.lane.b32.xlu0 %v3886, 96
        %v3945 = vpop.permute.xlu0 %3944
        %3946 = vrot.lane.b32.xlu0 %v3889, 96
        %v3947 = vpop.permute.xlu0 %3946
        %3948 = vrot.lane.b32.xlu0 %v3894, 96
        %v3949 = vpop.permute.xlu0 %3948
        %3950 = vrot.lane.b32.xlu0 %v3897, 96
        %v3951 = vpop.permute.xlu0 %3950
        %3952 = vrot.lane.b32.xlu0 %v3902, 96
        %v3953 = vpop.permute.xlu0 %3952
        %3954 = vrot.lane.b32.xlu0 %v3905, 96
        %v3955 = vpop.permute.xlu0 %3954
        %vm3972 = vcmask 917248
        %3973 = vst.msk [vmem:[%s214] sm:$0xff] %vm3972, %v3925
        %3974 = vst.msk [vmem:[%s214 + $0x8] sm:$0xff] %vm3972, %v3927
        %3975 = vst.msk [vmem:[%s214 + $0x10] sm:$0xff] %vm3972, %v3929
        %3976 = vst.msk [vmem:[%s214 + $0x18] sm:$0xff] %vm3972, %v3931
        %3977 = vst.msk [vmem:[%s214 + $0x20] sm:$0xff] %vm3972, %v3933
        %3978 = vst.msk [vmem:[%s214 + $0x28] sm:$0xff] %vm3972, %v3935
        %3979 = vst.msk [vmem:[%s214 + $0x30] sm:$0xff] %vm3972, %v3937
        %3980 = vst.msk [vmem:[%s214 + $0x38] sm:$0xff] %vm3972, %v3939
        %3981 = vst.msk [vmem:[%s214 + $0x40] sm:$0xff] %vm3972, %v3941
        %3982 = vst.msk [vmem:[%s214 + $0x48] sm:$0xff] %vm3972, %v3943
        %3983 = vst.msk [vmem:[%s214 + $0x50] sm:$0xff] %vm3972, %v3945
        %3984 = vst.msk [vmem:[%s214 + $0x58] sm:$0xff] %vm3972, %v3947
        %3985 = vst.msk [vmem:[%s214 + $0x60] sm:$0xff] %vm3972, %v3949
        %3986 = vst.msk [vmem:[%s214 + $0x68] sm:$0xff] %vm3972, %v3951
        %3987 = vst.msk [vmem:[%s214 + $0x70] sm:$0xff] %vm3972, %v3953
        %3988 = vst.msk [vmem:[%s214 + $0x78] sm:$0xff] %vm3972, %v3955
        %v3989 = vld [vmem:[%s219 + $0x1c0] sm:$0xf]
        %v3990 = vld [vmem:[%s219 + $0x1c4] sm:$0xf]
        %v3991 = vld [vmem:[%s219 + $0x1c8] sm:$0xf]
        %v3992 = vld [vmem:[%s219 + $0x1cc] sm:$0xf]
        %v3993 = vld [vmem:[%s219 + $0x1d0] sm:$0xf]
        %v3994 = vld [vmem:[%s219 + $0x1d4] sm:$0xf]
        %v3995 = vld [vmem:[%s219 + $0x1d8] sm:$0xf]
        %v3996 = vld [vmem:[%s219 + $0x1dc] sm:$0xf]
        %v3997 = vld [vmem:[%s219 + $0x1e0] sm:$0xf]
        %v3998 = vld [vmem:[%s219 + $0x1e4] sm:$0xf]
        %v3999 = vld [vmem:[%s219 + $0x1e8] sm:$0xf]
        %v4000 = vld [vmem:[%s219 + $0x1ec] sm:$0xf]
        %v4001 = vld [vmem:[%s219 + $0x1f0] sm:$0xf]
        %v4002 = vld [vmem:[%s219 + $0x1f4] sm:$0xf]
        %v4003 = vld [vmem:[%s219 + $0x1f8] sm:$0xf]
        %v4004 = vld [vmem:[%s219 + $0x1fc] sm:$0xf]
        %v4005 = vpack.c.bf16 %v2238, %v2235
        %v4006 = vpack.c.bf16 %v2246, %v2243
        %v4007 = vpack.c.bf16 %v2254, %v2251
        %v4008 = vpack.c.bf16 %v2262, %v2259
        %v4009 = vpack.c.bf16 %v2270, %v2267
        %v4010 = vpack.c.bf16 %v2278, %v2275
        %v4011 = vpack.c.bf16 %v2286, %v2283
        %v4012 = vpack.c.bf16 %v2294, %v2291
        %v4029 = vunpack.c.l.b16 %v3989
        %v4030 = vunpack.c.l.b16 %v3990
        %v4031 = vunpack.c.l.b16 %v3991
        %v4032 = vunpack.c.l.b16 %v3992
        %v4033 = vunpack.c.l.b16 %v3993
        %v4034 = vunpack.c.l.b16 %v3994
        %v4035 = vunpack.c.l.b16 %v3995
        %v4036 = vunpack.c.l.b16 %v3996
        %v4037 = vunpack.c.l.b16 %v3997
        %v4038 = vunpack.c.l.b16 %v3998
        %v4039 = vunpack.c.l.b16 %v3999
        %v4040 = vunpack.c.l.b16 %v4000
        %v4041 = vunpack.c.l.b16 %v4001
        %v4042 = vunpack.c.l.b16 %v4002
        %v4043 = vunpack.c.l.b16 %v4003
        %v4044 = vunpack.c.l.b16 %v4004
        %v4045 = vpack.c.b16 %v4030, %v4029
        %v4046 = vpack.c.b16 %v4032, %v4031
        %v4047 = vpack.c.b16 %v4034, %v4033
        %v4048 = vpack.c.b16 %v4036, %v4035
        %v4049 = vpack.c.b16 %v4038, %v4037
        %v4050 = vpack.c.b16 %v4040, %v4039
        %v4051 = vpack.c.b16 %v4042, %v4041
        %v4052 = vpack.c.b16 %v4044, %v4043
        %4061 = vmatprep.subr.bf16.mxu0 0
        %4062 = vmatpush1.bf16.msra.mxu0 %v4012
        %4063 = vmatprep.subr.bf16.mxu0 0
        %4064 = vmatpush1.bf16.msra.mxu0 %v4011
        %4065 = vmatprep.subr.bf16.mxu0 0
        %4066 = vmatpush1.bf16.msra.mxu0 %v4010
        %4067 = vmatprep.subr.bf16.mxu0 0
        %4068 = vmatpush1.bf16.msra.mxu0 %v4009
        %4069 = vmatprep.subr.bf16.mxu0 0
        %4070 = vmatpush1.bf16.msra.mxu0 %v4008
        %4071 = vmatprep.subr.bf16.mxu0 0
        %4072 = vmatpush1.bf16.msra.mxu0 %v4007
        %4073 = vmatprep.subr.bf16.mxu0 0
        %4074 = vmatpush1.bf16.msra.mxu0 %v4006
        %4075 = vmatprep.subr.bf16.mxu0 0
        %4076 = vmatpush1.bf16.msra.mxu0 %v4005
        %4077 = vmatprep.subr.bf16.mxu0 0
        %4078 = vmatpush2.bf16.msra.mxu0 0
        %4079 = vmatprep.subr.bf16.mxu0 0
        %4080 = vmatpush2.bf16.msra.mxu0 0
        %4081 = vmatprep.subr.bf16.mxu0 0
        %4082 = vmatpush2.bf16.msra.mxu0 0
        %4083 = vmatprep.subr.bf16.mxu0 0
        %4084 = vmatpush2.bf16.msra.mxu0 0
        %4085 = vmatprep.subr.bf16.mxu0 0
        %4086 = vmatpush2.bf16.msra.mxu0 0
        %4087 = vmatprep.subr.bf16.mxu0 0
        %4088 = vmatpush2.bf16.msra.mxu0 0
        %4089 = vmatprep.subr.bf16.mxu0 0
        %4090 = vmatpush2.bf16.msra.mxu0 0
        %4091 = vmatprep.subr.bf16.mxu0 0
        %4092 = vmatpush2.bf16.msra.mxu0 0
        %4093 = vmatprep.mubr.bf16.mxu0 0
        %4094 = vmatmul.mubr.bf16.gmra.mxu0 %v4045
        %v4095 = vpop.f32.mrf.mxu0
        %v4096 = vadd.f32 %v2325, %v4095
        %v4097 = vpop.f32.mrf.mxu0
        %v4098 = vpop.f32.mrf.mxu0
        %v4099 = vadd.f32 %v2325, %v4098
        %v4100 = vpop.f32.mrf.mxu0
        %4101 = vmatprep.mubr.bf16.mxu0 0
        %4102 = vmatmul.mubr.bf16.gmra.mxu0 %v4046
        %v4103 = vpop.f32.mrf.mxu0
        %v4104 = vadd.f32 %v2325, %v4103
        %v4105 = vpop.f32.mrf.mxu0
        %v4106 = vpop.f32.mrf.mxu0
        %v4107 = vadd.f32 %v2325, %v4106
        %v4108 = vpop.f32.mrf.mxu0
        %4109 = vmatprep.mubr.bf16.mxu0 0
        %4110 = vmatmul.mubr.bf16.gmra.mxu0 %v4047
        %v4111 = vpop.f32.mrf.mxu0
        %v4112 = vadd.f32 %v2325, %v4111
        %v4113 = vpop.f32.mrf.mxu0
        %v4114 = vpop.f32.mrf.mxu0
        %v4115 = vadd.f32 %v2325, %v4114
        %v4116 = vpop.f32.mrf.mxu0
        %4117 = vmatprep.mubr.bf16.mxu0 0
        %4118 = vmatmul.mubr.bf16.gmra.mxu0 %v4048
        %v4119 = vpop.f32.mrf.mxu0
        %v4120 = vadd.f32 %v2325, %v4119
        %v4121 = vpop.f32.mrf.mxu0
        %v4122 = vpop.f32.mrf.mxu0
        %v4123 = vadd.f32 %v2325, %v4122
        %v4124 = vpop.f32.mrf.mxu0
        %4125 = vmatprep.mubr.bf16.mxu0 0
        %4126 = vmatmul.mubr.bf16.gmra.mxu0 %v4049
        %v4127 = vpop.f32.mrf.mxu0
        %v4128 = vadd.f32 %v2325, %v4127
        %v4129 = vpop.f32.mrf.mxu0
        %v4130 = vpop.f32.mrf.mxu0
        %v4131 = vadd.f32 %v2325, %v4130
        %v4132 = vpop.f32.mrf.mxu0
        %4133 = vmatprep.mubr.bf16.mxu0 0
        %4134 = vmatmul.mubr.bf16.gmra.mxu0 %v4050
        %v4135 = vpop.f32.mrf.mxu0
        %v4136 = vadd.f32 %v2325, %v4135
        %v4137 = vpop.f32.mrf.mxu0
        %v4138 = vpop.f32.mrf.mxu0
        %v4139 = vadd.f32 %v2325, %v4138
        %v4140 = vpop.f32.mrf.mxu0
        %4141 = vmatprep.mubr.bf16.mxu0 0
        %4142 = vmatmul.mubr.bf16.gmra.mxu0 %v4051
        %v4143 = vpop.f32.mrf.mxu0
        %v4144 = vadd.f32 %v2325, %v4143
        %v4145 = vpop.f32.mrf.mxu0
        %v4146 = vpop.f32.mrf.mxu0
        %v4147 = vadd.f32 %v2325, %v4146
        %v4148 = vpop.f32.mrf.mxu0
        %4149 = vmatprep.mubr.bf16.mxu0 0
        %4150 = vmatmul.mubr.bf16.gmra.mxu0 %v4052
        %v4151 = vpop.f32.mrf.mxu0
        %v4152 = vadd.f32 %v2325, %v4151
        %v4153 = vpop.f32.mrf.mxu0
        %v4154 = vpop.f32.mrf.mxu0
        %v4155 = vadd.f32 %v2325, %v4154
        %v4156 = vpop.f32.mrf.mxu0
        %4157 = vdwg.mxu0
        %4174 = vrot.lane.b32.xlu0 %v4096, 112
        %v4175 = vpop.permute.xlu0 %4174
        %4176 = vrot.lane.b32.xlu0 %v4099, 112
        %v4177 = vpop.permute.xlu0 %4176
        %4178 = vrot.lane.b32.xlu0 %v4104, 112
        %v4179 = vpop.permute.xlu0 %4178
        %4180 = vrot.lane.b32.xlu0 %v4107, 112
        %v4181 = vpop.permute.xlu0 %4180
        %4182 = vrot.lane.b32.xlu0 %v4112, 112
        %v4183 = vpop.permute.xlu0 %4182
        %4184 = vrot.lane.b32.xlu0 %v4115, 112
        %v4185 = vpop.permute.xlu0 %4184
        %4186 = vrot.lane.b32.xlu0 %v4120, 112
        %v4187 = vpop.permute.xlu0 %4186
        %4188 = vrot.lane.b32.xlu0 %v4123, 112
        %v4189 = vpop.permute.xlu0 %4188
        %4190 = vrot.lane.b32.xlu0 %v4128, 112
        %v4191 = vpop.permute.xlu0 %4190
        %4192 = vrot.lane.b32.xlu0 %v4131, 112
        %v4193 = vpop.permute.xlu0 %4192
        %4194 = vrot.lane.b32.xlu0 %v4136, 112
        %v4195 = vpop.permute.xlu0 %4194
        %4196 = vrot.lane.b32.xlu0 %v4139, 112
        %v4197 = vpop.permute.xlu0 %4196
        %4198 = vrot.lane.b32.xlu0 %v4144, 112
        %v4199 = vpop.permute.xlu0 %4198
        %4200 = vrot.lane.b32.xlu0 %v4147, 112
        %v4201 = vpop.permute.xlu0 %4200
        %4202 = vrot.lane.b32.xlu0 %v4152, 112
        %v4203 = vpop.permute.xlu0 %4202
        %4204 = vrot.lane.b32.xlu0 %v4155, 112
        %v4205 = vpop.permute.xlu0 %4204
        %vm4222 = vcmask 1048448
        %4223 = vst.msk [vmem:[%s214] sm:$0xff] %vm4222, %v4175
        %4224 = vst.msk [vmem:[%s214 + $0x8] sm:$0xff] %vm4222, %v4177
        %4225 = vst.msk [vmem:[%s214 + $0x10] sm:$0xff] %vm4222, %v4179
        %4226 = vst.msk [vmem:[%s214 + $0x18] sm:$0xff] %vm4222, %v4181
        %4227 = vst.msk [vmem:[%s214 + $0x20] sm:$0xff] %vm4222, %v4183
        %4228 = vst.msk [vmem:[%s214 + $0x28] sm:$0xff] %vm4222, %v4185
        %4229 = vst.msk [vmem:[%s214 + $0x30] sm:$0xff] %vm4222, %v4187
        %4230 = vst.msk [vmem:[%s214 + $0x38] sm:$0xff] %vm4222, %v4189
        %4231 = vst.msk [vmem:[%s214 + $0x40] sm:$0xff] %vm4222, %v4191
        %4232 = vst.msk [vmem:[%s214 + $0x48] sm:$0xff] %vm4222, %v4193
        %4233 = vst.msk [vmem:[%s214 + $0x50] sm:$0xff] %vm4222, %v4195
        %4234 = vst.msk [vmem:[%s214 + $0x58] sm:$0xff] %vm4222, %v4197
        %4235 = vst.msk [vmem:[%s214 + $0x60] sm:$0xff] %vm4222, %v4199
        %4236 = vst.msk [vmem:[%s214 + $0x68] sm:$0xff] %vm4222, %v4201
        %4237 = vst.msk [vmem:[%s214 + $0x70] sm:$0xff] %vm4222, %v4203
        %4238 = vst.msk [vmem:[%s214 + $0x78] sm:$0xff] %vm4222, %v4205
        %s4239 = sand.u32 %s134, 1
        %s4240 = sand.u32 %s134, 1
        %s4241 = smul.addr %s4240, 128
        %s4242 = scalar_lea.vmem [#allocation2], %s4241
        // Predicated region
        $region41: #{vgae_forward.1} parent=39 // pred_check
          %p4243 = pneg %p144
        $region42: #{vgae_forward.1} parent=39 // pred_check_branch
          %4245 = sbr.rel (%p4243) target = $region44
        $region43: #{vgae_forward.1} parent=39 // pred_region
          %s4246 = smul.addr %s16, 8
          %s4247 = scalar_lea.vmem %s5, %s4246
          // Predicated region
          $region45: #{vgae_forward.1} parent=43 // pred_check
            _
          $region46: #{vgae_forward.1} parent=43 // pred_check_branch
            %4249 = sbr.rel (0) target = $region48
          $region47: #{vgae_forward.1} parent=43 // pred_region
            // Predicated region
            $region49: #{vgae_forward.1} parent=47 // pred_check
              _
            $region50: #{vgae_forward.1} parent=47 // pred_check_branch
              %4251 = sbr.rel (0) target = $region52
            $region51: #{vgae_forward.1} parent=47 // pred_region
              // Predicated region
              $region64: #{vgae_forward.1} parent=51 // pred_check
                _
              $region65: #{vgae_forward.1} parent=51 // pred_check_branch
                %4297 = sbr.rel (0) target = $region67
              $region66: #{vgae_forward.1} parent=51 // pred_region
                loop: start=0, step=1, limit=1
                $region68: #{vgae_forward.1} parent=66 // loop_pre_header
                  _
                $region69: #{vgae_forward.1} parent=66 // loop_header
                  %s4299 = sphi 0, %s4303
                  %p4300 = scmp.ge.s32.totalorder %s4299, 1
                  %s4304 = sphi %s4242, %s4242
                  %s4305 = sphi %s4247, %s4247
                $region70: #{vgae_forward.1} parent=66 // loop_header_branch
                  %4302 = sbr.rel (%p4300) target = $region74
                $region71: #{vgae_forward.1} parent=66 // loop_body
                  %v4306 = vld [vmem:[%s4304] sm:$0xff]
                  %4307 = vst [vmem:[%s4305] sm:$0xff] %v4306
                  %v4308 = vld [vmem:[%s4304 + $0x8] sm:$0xff]
                  %4309 = vst [vmem:[%s4305 + $0x10] sm:$0xff] %v4308
                  %v4310 = vld [vmem:[%s4304 + $0x10] sm:$0xff]
                  %4311 = vst [vmem:[%s4305 + $0x20] sm:$0xff] %v4310
                  %v4312 = vld [vmem:[%s4304 + $0x18] sm:$0xff]
                  %4313 = vst [vmem:[%s4305 + $0x30] sm:$0xff] %v4312
                  %v4314 = vld [vmem:[%s4304 + $0x20] sm:$0xff]
                  %4315 = vst [vmem:[%s4305 + $0x40] sm:$0xff] %v4314
                  %v4316 = vld [vmem:[%s4304 + $0x28] sm:$0xff]
                  %4317 = vst [vmem:[%s4305 + $0x50] sm:$0xff] %v4316
                  %v4318 = vld [vmem:[%s4304 + $0x30] sm:$0xff]
                  %4319 = vst [vmem:[%s4305 + $0x60] sm:$0xff] %v4318
                  %v4320 = vld [vmem:[%s4304 + $0x38] sm:$0xff]
                  %4321 = vst [vmem:[%s4305 + $0x70] sm:$0xff] %v4320
                  %v4322 = vld [vmem:[%s4304 + $0x40] sm:$0xff]
                  %4323 = vst [vmem:[%s4305 + $0x80] sm:$0xff] %v4322
                  %v4324 = vld [vmem:[%s4304 + $0x48] sm:$0xff]
                  %4325 = vst [vmem:[%s4305 + $0x90] sm:$0xff] %v4324
                  %v4326 = vld [vmem:[%s4304 + $0x50] sm:$0xff]
                  %4327 = vst [vmem:[%s4305 + $0xa0] sm:$0xff] %v4326
                  %v4328 = vld [vmem:[%s4304 + $0x58] sm:$0xff]
                  %4329 = vst [vmem:[%s4305 + $0xb0] sm:$0xff] %v4328
                  %v4330 = vld [vmem:[%s4304 + $0x60] sm:$0xff]
                  %4331 = vst [vmem:[%s4305 + $0xc0] sm:$0xff] %v4330
                  %v4332 = vld [vmem:[%s4304 + $0x68] sm:$0xff]
                  %4333 = vst [vmem:[%s4305 + $0xd0] sm:$0xff] %v4332
                  %v4334 = vld [vmem:[%s4304 + $0x70] sm:$0xff]
                  %4335 = vst [vmem:[%s4305 + $0xe0] sm:$0xff] %v4334
                  %v4336 = vld [vmem:[%s4304 + $0x78] sm:$0xff]
                  %4337 = vst [vmem:[%s4305 + $0xf0] sm:$0xff] %v4336
                $region72: #{vgae_forward.1} parent=66 // loop_footer
                  %s4303 = sadd.s32 1, %s4299
                $region73: #{vgae_forward.1} parent=66 // loop_footer_branch
                  %4298 = sbr.rel target = $region69
                $region74: #{vgae_forward.1} parent=66 // loop_exit
                  _
              $region67: #{vgae_forward.1} parent=51 // pred_fallthru
                _
              // Predicated region
              $region75: #{vgae_forward.1} parent=51 // pred_check
                _
              $region76: #{vgae_forward.1} parent=51 // pred_check_branch
                %4339 = sbr.rel target = $region78
              $region77: #{vgae_forward.1} parent=51 // pred_region
                _
              $region78: #{vgae_forward.1} parent=51 // pred_fallthru
                _
            $region52: #{vgae_forward.1} parent=47 // pred_fallthru
              _
            // Predicated region
            $region53: #{vgae_forward.1} parent=47 // pred_check
              _
            $region54: #{vgae_forward.1} parent=47 // pred_check_branch
              %4253 = sbr.rel target = $region56
            $region55: #{vgae_forward.1} parent=47 // pred_region
              %s4255 = ssub.s32 256, 1
              loop: start=0, step=1, limit=1
              $region57: #{vgae_forward.1} parent=55 // loop_pre_header
                _
              $region58: #{vgae_forward.1} parent=55 // loop_header
                %s4257 = sphi 0, %s4261
                %p4258 = scmp.ge.s32.totalorder %s4257, 1
                %s4262 = sphi %s4242, %s4242
                %s4263 = sphi %s4247, %s4247
              $region59: #{vgae_forward.1} parent=55 // loop_header_branch
                %4260 = sbr.rel (%p4258) target = $region63
              $region60: #{vgae_forward.1} parent=55 // loop_body
                %v4264 = vld [vmem:[%s4262] sm:%s4255]
                %4265 = vst [vmem:[%s4263] sm:%s4255] %v4264
                %v4266 = vld [vmem:[%s4262 + $0x8] sm:%s4255]
                %4267 = vst [vmem:[%s4263 + $0x10] sm:%s4255] %v4266
                %v4268 = vld [vmem:[%s4262 + $0x10] sm:%s4255]
                %4269 = vst [vmem:[%s4263 + $0x20] sm:%s4255] %v4268
                %v4270 = vld [vmem:[%s4262 + $0x18] sm:%s4255]
                %4271 = vst [vmem:[%s4263 + $0x30] sm:%s4255] %v4270
                %v4272 = vld [vmem:[%s4262 + $0x20] sm:%s4255]
                %4273 = vst [vmem:[%s4263 + $0x40] sm:%s4255] %v4272
                %v4274 = vld [vmem:[%s4262 + $0x28] sm:%s4255]
                %4275 = vst [vmem:[%s4263 + $0x50] sm:%s4255] %v4274
                %v4276 = vld [vmem:[%s4262 + $0x30] sm:%s4255]
                %4277 = vst [vmem:[%s4263 + $0x60] sm:%s4255] %v4276
                %v4278 = vld [vmem:[%s4262 + $0x38] sm:%s4255]
                %4279 = vst [vmem:[%s4263 + $0x70] sm:%s4255] %v4278
                %v4280 = vld [vmem:[%s4262 + $0x40] sm:%s4255]
                %4281 = vst [vmem:[%s4263 + $0x80] sm:%s4255] %v4280
                %v4282 = vld [vmem:[%s4262 + $0x48] sm:%s4255]
                %4283 = vst [vmem:[%s4263 + $0x90] sm:%s4255] %v4282
                %v4284 = vld [vmem:[%s4262 + $0x50] sm:%s4255]
                %4285 = vst [vmem:[%s4263 + $0xa0] sm:%s4255] %v4284
                %v4286 = vld [vmem:[%s4262 + $0x58] sm:%s4255]
                %4287 = vst [vmem:[%s4263 + $0xb0] sm:%s4255] %v4286
                %v4288 = vld [vmem:[%s4262 + $0x60] sm:%s4255]
                %4289 = vst [vmem:[%s4263 + $0xc0] sm:%s4255] %v4288
                %v4290 = vld [vmem:[%s4262 + $0x68] sm:%s4255]
                %4291 = vst [vmem:[%s4263 + $0xd0] sm:%s4255] %v4290
                %v4292 = vld [vmem:[%s4262 + $0x70] sm:%s4255]
                %4293 = vst [vmem:[%s4263 + $0xe0] sm:%s4255] %v4292
                %v4294 = vld [vmem:[%s4262 + $0x78] sm:%s4255]
                %4295 = vst [vmem:[%s4263 + $0xf0] sm:%s4255] %v4294
              $region61: #{vgae_forward.1} parent=55 // loop_footer
                %s4261 = sadd.s32 1, %s4257
              $region62: #{vgae_forward.1} parent=55 // loop_footer_branch
                %4256 = sbr.rel target = $region58
              $region63: #{vgae_forward.1} parent=55 // loop_exit
                _
            $region56: #{vgae_forward.1} parent=47 // pred_fallthru
              _
          $region48: #{vgae_forward.1} parent=43 // pred_fallthru
            _
          %4340 = vnop
        $region44: #{vgae_forward.1} parent=39 // pred_fallthru
          _
      $region40: #{vgae_forward.1} parent=5 // pred_fallthru
        _
      %p4341 = scmp.le.s32.totalorder 2, %s11
      // Predicated region
      $region79: #{vgae_forward.1} parent=5 // pred_check
        %p4342 = pneg %p4341
      $region80: #{vgae_forward.1} parent=5 // pred_check_branch
        %4344 = sbr.rel (%p4342) target = $region82
      $region81: #{vgae_forward.1} parent=5 // pred_region
        %s4345 = ssub.s32 %s11, 2
        // Predicated region
        $region83: #{vgae_forward.1} parent=81 // pred_check
          %p4346 = pneg %p150
        $region84: #{vgae_forward.1} parent=81 // pred_check_branch
          %4348 = sbr.rel (%p4346) target = $region86
        $region85: #{vgae_forward.1} parent=81 // pred_region
          %s4349 = sand.u32 %s135, 1
          %s4350 = sand.u32 %s135, 1
          %s4351 = smul.addr %s4350, 128
          %s4352 = scalar_lea.vmem [#allocation2], %s4351
        $region86: #{vgae_forward.1} parent=81 // pred_fallthru
          _
      $region82: #{vgae_forward.1} parent=5 // pred_fallthru
        _
    $region6: #{vgae_forward.1} parent=1 // loop_footer
      %s15 = sadd.s32 1, %s11
    $region7: #{vgae_forward.1} parent=1 // loop_footer_branch
      %10 = sbr.rel target = $region3
    $region8: #{vgae_forward.1} parent=1 // loop_exit
      _

</llo_original>
